<compile_context>
chip_gen: v7x
topology: tpu7x:2x2x1
jax: 0.10.0
libtpu: 0.0.40
codegen_flags: <defaults>
</compile_context>

<pallas_src>
import functools

import jax
import jax.numpy as jnp
import numpy as np
from jax.experimental import pallas as pl
from jax.experimental.pallas import tpu as pltpu

# Make the XLA reference matmuls full-f32 so the Pallas/XLA comparison is tight.
jax.config.update("jax_default_matmul_precision", "highest")


# ----------------------------- Pallas kernels ------------------------------

def _matmul_kernel(x_ref, w_ref, o_ref):
    # x: (TN, C) @ w: (C, Cout) -> o: (TN, Cout), f32 accumulation on the MXU.
    o_ref[...] = jnp.dot(
        x_ref[...], w_ref[...], preferred_element_type=jnp.float32
    ).astype(o_ref.dtype)


def _axial_attn_kernel(q_ref, k_ref, v_ref, o_ref, *, scale):
    # q/k/v: (TG, L, D) -> softmax(q k^T * scale) v, per group (batched matmul).
    q = q_ref[...].astype(jnp.float32)
    k = k_ref[...].astype(jnp.float32)
    v = v_ref[...].astype(jnp.float32)
    s = jnp.einsum("gld,gmd->glm", q, k,
                   preferred_element_type=jnp.float32) * scale
    s = s - jnp.max(s, axis=-1, keepdims=True)
    p = jnp.exp(s)
    p = p / jnp.sum(p, axis=-1, keepdims=True)
    o = jnp.einsum("glm,gmd->gld", p, v, preferred_element_type=jnp.float32)
    o_ref[...] = o.astype(o_ref.dtype)


def _outproj_sum_kernel(aw_ref, ah_ref, at_ref,
                        ww_ref, wh_ref, wt_ref, b_ref, o_ref):
    # Fused: a_w @ Ww + a_h @ Wh + a_t @ Wt + (b_w + b_h + b_t), single f32 acc.
    acc = jnp.dot(aw_ref[...], ww_ref[...], preferred_element_type=jnp.float32)
    acc = acc + jnp.dot(ah_ref[...], wh_ref[...],
                        preferred_element_type=jnp.float32)
    acc = acc + jnp.dot(at_ref[...], wt_ref[...],
                        preferred_element_type=jnp.float32)
    o_ref[...] = (acc + b_ref[...]).astype(o_ref.dtype)


# ------------------------------ pallas_call wrappers ------------------------

def _row_tile(n, target=512):
    """Large row tile (amortize per-step overhead) while keeping >=2 grid steps
    when possible (v7x has 2 TensorCores)."""
    if n <= target:
        if n % 2 == 0 and (n // 2) % 8 == 0:
            return n // 2
        return n
    for t in range(min(target, n), 7, -1):
        if n % t == 0 and t % 8 == 0:
            return t
    return n


def _linear_nobias(x, w):
    """[N, C] @ [C, Cout] with row-tiled grid; weight block is grid-invariant."""
    N, C = x.shape
    Cout = w.shape[1]
    tile = _row_tile(N)
    grid = (N // tile,)
    return pl.pallas_call(
        _matmul_kernel,
        out_shape=jax.ShapeDtypeStruct((N, Cout), x.dtype),
        grid_spec=pltpu.PrefetchScalarGridSpec(
            num_scalar_prefetch=0,
            grid=grid,
            in_specs=[
                pl.BlockSpec((tile, C), lambda i: (i, 0)),
                pl.BlockSpec((C, Cout), lambda i: (0, 0)),
            ],
            out_specs=pl.BlockSpec((tile, Cout), lambda i: (i, 0)),
        ),
        compiler_params=pltpu.CompilerParams(
            dimension_semantics=("parallel",)),
    )(x, w)


def _axial_attention(q, k, v):
    """q/k/v: [G, L, D] -> [G, L, D]; attention over L within each group."""
    G, L, D = q.shape
    tile = _row_tile(G)
    grid = (G // tile,)
    scale = 1.0 / float(np.sqrt(D))
    kern = functools.partial(_axial_attn_kernel, scale=scale)
    spec = pl.BlockSpec((tile, L, D), lambda i: (i, 0, 0))
    return pl.pallas_call(
        kern,
        out_shape=jax.ShapeDtypeStruct((G, L, D), q.dtype),
        grid_spec=pltpu.PrefetchScalarGridSpec(
            num_scalar_prefetch=0,
            grid=grid,
            in_specs=[spec, spec, spec],
            out_specs=pl.BlockSpec((tile, L, D), lambda i: (i, 0, 0)),
        ),
        compiler_params=pltpu.CompilerParams(
            dimension_semantics=("parallel",)),
    )(q, k, v)


def _out_proj_sum(aw, ah, at, ww, wh, wt, b_sum):
    """Fused output projection of the three branches plus bias sum."""
    N, C = aw.shape
    Cout = ww.shape[1]
    tile = _row_tile(N)
    grid = (N // tile,)
    b2d = b_sum.reshape(1, Cout)
    row_spec = pl.BlockSpec((tile, C), lambda i: (i, 0))
    w_spec = pl.BlockSpec((C, Cout), lambda i: (0, 0))
    return pl.pallas_call(
        _outproj_sum_kernel,
        out_shape=jax.ShapeDtypeStruct((N, Cout), aw.dtype),
        grid_spec=pltpu.PrefetchScalarGridSpec(
            num_scalar_prefetch=0,
            grid=grid,
            in_specs=[row_spec, row_spec, row_spec,
                      w_spec, w_spec, w_spec,
                      pl.BlockSpec((1, Cout), lambda i: (0, 0))],
            out_specs=pl.BlockSpec((tile, Cout), lambda i: (i, 0)),
        ),
        compiler_params=pltpu.CompilerParams(
            dimension_semantics=("parallel",)),
    )(aw, ah, at, ww, wh, wt, b2d)


# --------------------------- AxialBlock forward -----------------------------

# Routing permutation: [B, T, H, W, n_head, d] -> [B, n_head, s1, s2, L, d]
# where L is the attended axis (matches torch shift_dim composition).
_AXIS_PERM = {
    "w": (0, 4, 1, 2, 3, 5),   # attend over W
    "h": (0, 4, 1, 3, 2, 5),   # attend over H
    "t": (0, 4, 2, 3, 1, 5),   # attend over T
}


def axial_block_forward(x, params):
    """x: [B, C, T, H, W] -> [B, C, T, H, W]."""
    B, C, T, H, W = x.shape
    n_head = params["n_head"]
    d = C // n_head
    N = B * T * H * W

    xl = jnp.transpose(x, (0, 2, 3, 4, 1))            # [B, T, H, W, C]
    x2d = xl.reshape(N, C)

    # One fused projection for all three branches' q/k/v: [N, C] @ [C, 9C].
    qkv_all = _linear_nobias(x2d, params["w_qkv_all"])
    qkv_all = qkv_all.reshape(B, T, H, W, 3, 3, n_head, d)  # [.., branch, qkv, head, d]

    branch_outs = []
    for bi, axis in enumerate(("w", "h", "t")):
        perm = _AXIS_PERM[axis]
        inv = tuple(int(i) for i in np.argsort(perm))
        q = jnp.transpose(qkv_all[..., bi, 0, :, :], perm)   # [B, nh, s1, s2, L, d]
        k = jnp.transpose(qkv_all[..., bi, 1, :, :], perm)
        v = jnp.transpose(qkv_all[..., bi, 2, :, :], perm)
        pshape = q.shape
        G = pshape[0] * pshape[1] * pshape[2] * pshape[3]
        L = pshape[4]
        o = _axial_attention(q.reshape(G, L, d),
                             k.reshape(G, L, d),
                             v.reshape(G, L, d))
        o = jnp.transpose(o.reshape(pshape), inv)            # [B, T, H, W, nh, d]
        branch_outs.append(o.reshape(N, C))

    b_sum = params["b_fc_w"] + params["b_fc_h"] + params["b_fc_t"]
    out2d = _out_proj_sum(branch_outs[0], branch_outs[1], branch_outs[2],
                          params["w_fc_w"], params["w_fc_h"], params["w_fc_t"],
                          b_sum)
    out = out2d.reshape(B, T, H, W, C)
    return jnp.transpose(out, (0, 4, 1, 2, 3))               # [B, C, T, H, W]


# ------------------------------- params & ref -------------------------------

def init_params(key, n_hiddens, n_head, dtype=jnp.float32):
    """Weights stored as [in_features, out_features] (y = x @ W + b)."""
    C = n_hiddens
    keys = jax.random.split(key, 15)
    kidx = 0
    params = {"n_head": n_head}
    branch_blocks = []
    for _ in range(3):                                   # branches: w, h, t
        wq = jax.random.normal(keys[kidx], (C, C), dtype) / np.sqrt(C); kidx += 1
        wk = jax.random.normal(keys[kidx], (C, C), dtype) / np.sqrt(C); kidx += 1
        wv = jax.random.normal(keys[kidx], (C, C), dtype) / np.sqrt(C); kidx += 1
        branch_blocks.append(jnp.concatenate([wq, wk, wv], axis=1))
    params["w_qkv_all"] = jnp.concatenate(branch_blocks, axis=1)   # [C, 9C]
    for name in ("w", "h", "t"):
        params[f"w_fc_{name}"] = (
            jax.random.normal(keys[kidx], (C, C), dtype) / np.sqrt(C)); kidx += 1
        params[f"b_fc_{name}"] = (
            jax.random.normal(keys[kidx], (C,), dtype) * 0.02); kidx += 1
    return params


def _reference(x, params):
    """Pure-JAX reference mirroring the PyTorch AxialBlock math."""
    B, C, T, H, W = x.shape
    n_head = params["n_head"]
    d = C // n_head
    N = B * T * H * W
    xl = jnp.transpose(x, (0, 2, 3, 4, 1))
    x2d = xl.reshape(N, C)
    qkv = (x2d @ params["w_qkv_all"]).reshape(B, T, H, W, 3, 3, n_head, d)
    outs = []
    for bi, axis in enumerate(("w", "h", "t")):
        perm = _AXIS_PERM[axis]
        inv = tuple(int(i) for i in np.argsort(perm))
        q = jnp.transpose(qkv[..., bi, 0, :, :], perm)
        k = jnp.transpose(qkv[..., bi, 1, :, :], perm)
        v = jnp.transpose(qkv[..., bi, 2, :, :], perm)
        s = jnp.einsum("...ld,...md->...lm", q, k) / np.sqrt(d)
        p = jax.nn.softmax(s, axis=-1)
        o = jnp.einsum("...lm,...md->...ld", p, v)
        outs.append(jnp.transpose(o, inv).reshape(N, C))
    out2d = (outs[0] @ params["w_fc_w"] + params["b_fc_w"]
             + outs[1] @ params["w_fc_h"] + params["b_fc_h"]
             + outs[2] @ params["w_fc_t"] + params["b_fc_t"])
    return jnp.transpose(out2d.reshape(B, T, H, W, C), (0, 4, 1, 2, 3))


if __name__ == "__main__":
    B, C, T, H, W = 2, 32, 4, 8, 8
    n_head = 4

    key = jax.random.PRNGKey(0)
    kx, kp = jax.random.split(key)
    x = jax.random.normal(kx, (B, C, T, H, W), jnp.float32)
    params = init_params(kp, C, n_head)

    out = axial_block_forward(x, params)
    out = jax.block_until_ready(out)

    ref = _reference(x, params)
    assert out.shape == (B, C, T, H, W)
    max_err = float(jnp.max(jnp.abs(out - ref)))
    assert jnp.allclose(out, ref, atol=1e-3, rtol=1e-3), f"max abs err {max_err}"
    print("KERNEL_OK")
</pallas_src>

<mosaic_0001>
module attributes {stable_mosaic.version = 11 : i64} {
  func.func @_matmul_kernel(%arg0: i32, %arg1: memref<256x32xf32, #tpu.memory_space<vmem>>, %arg2: memref<32x288xf32, #tpu.memory_space<vmem>>, %arg3: memref<256x288xf32, #tpu.memory_space<vmem>>) attributes {dimension_semantics = [#tpu.dimension_semantics<parallel>], iteration_bounds = array<i64: 2>, scalar_prefetch = 0 : i64, scratch_operands = 0 : i64, tpu.core_type = #tpu.core_type<tc>, window_params = [{transform_indices = @transform_0, window_bounds = array<i64: 256, 32>}, {pipeline_mode = #tpu.pipeline_mode<synchronous>, transform_indices = @transform_1, window_bounds = array<i64: 32, 288>}, {transform_indices = @transform_2, window_bounds = array<i64: 256, 288>}]} {
    %c0 = arith.constant 0 : index
    %c0_0 = arith.constant 0 : index
    %0 = vector.load %arg1[%c0, %c0_0] : memref<256x32xf32, #tpu.memory_space<vmem>>, vector<256x32xf32>
    %c0_1 = arith.constant 0 : index
    %c0_2 = arith.constant 0 : index
    %1 = vector.load %arg2[%c0_1, %c0_2] : memref<32x288xf32, #tpu.memory_space<vmem>>, vector<32x288xf32>
    %cst = arith.constant dense<0.000000e+00> : vector<256x288xf32>
    %2 = tpu.matmul %0, %1, %cst {dimension_numbers = #tpu.dot_dimension_numbers<[1], [0], [0], [1], [0, 0, 1, 1], [], []>, precision = #tpu.contract_precision<fp32>} : vector<256x32xf32>, vector<32x288xf32>, vector<256x288xf32> -> vector<256x288xf32>
    %c0_3 = arith.constant 0 : index
    %c0_4 = arith.constant 0 : index
    %3 = vector.load %arg3[%c0_3, %c0_4] : memref<256x288xf32, #tpu.memory_space<vmem>>, vector<256x288xf32>
    tpu.vector_store %arg3[%c0_3, %c0_4], %2 {strides = array<i32>} : memref<256x288xf32, #tpu.memory_space<vmem>>, vector<256x288xf32>,
    return
  }
  func.func @transform_0(%arg0: i32) -> (i32, i32) {
    %c0_i32 = arith.constant 0 : i32
    %c0_i32_0 = arith.constant 0 : i32
    return %arg0, %c0_i32 : i32, i32
  }
  func.func @transform_1(%arg0: i32) -> (i32, i32) {
    %c0_i32 = arith.constant 0 : i32
    %c0_i32_0 = arith.constant 0 : i32
    %c0_i32_1 = arith.constant 0 : i32
    return %c0_i32, %c0_i32_0 : i32, i32
  }
  func.func @transform_2(%arg0: i32) -> (i32, i32) {
    %c0_i32 = arith.constant 0 : i32
    %c0_i32_0 = arith.constant 0 : i32
    return %arg0, %c0_i32 : i32, i32
  }
}

</mosaic_0001>

<llo_original>
// kernel: tpu_custom_call.1
$region0: #{tpu_custom_call.1}
  #allocation0 [shape = 'u32[]', space=smem, size = 0x4, offset = 0x4, fixed_abs, tag = 'smem constant byte address 0x4 - core index']
  #allocation1 [shape = 'u32[144,128]{1,0:T(1,128)}', space=vmem, size = 0x12000, scoped, tag = 'internal scratch']
  %s0 = inlined_call_operand.vmem [shape: f32[512,32], index: 0, kind: input, shape index: {}]
  %s1 = inlined_call_operand.vmem [shape: f32[32,288], index: 1, kind: input, shape index: {}]
  %s2 = inlined_call_operand.vmem [shape: f32[512,288], index: 2, kind: output, shape index: {}]
  %s3 = sld [smem:[#allocation0]]
  $region41: #{tpu_custom_call.1} parent=0
    _
  %s5 = ssub.s32 1, %s3
  %s6 = scalar_select 0, %s5, %s3
  loop: start=0, step=1, limit=4
  $region2: #{tpu_custom_call.1} parent=0 // loop_pre_header
    _
  $region3: #{tpu_custom_call.1} parent=0 // loop_header
    %s8 = sphi 0, %s12
    %p9 = scmp.ge.s32.totalorder %s8, 4
    %s18 = sphi 0, %s20
    %s21 = sphi 0, %s18
    %s22 = sphi 0, %s21
    %s38 = sphi 0, %s22
    %s42 = sphi 0, %s42
    %s44 = sphi 0, %s42
    %s45 = sphi 0, %s44
    %s59 = sphi 0, %s45
    %s65 = sphi 0, %s67
    %s68 = sphi 0, %s65
    %s69 = sphi 0, %s68
    %s85 = sphi 0, %s69
  $region4: #{tpu_custom_call.1} parent=0 // loop_header_branch
    %11 = sbr.rel (%p9) target = $region8
  $region5: #{tpu_custom_call.1} parent=0 // loop_body
    %s13 = ssub.s32 %s8, 1
    %s14 = ssub.s32 %s8, 2
    %s15 = sadd.s32 %s8, 1
    %s16 = ssub.s32 %s8, %s15
    %p17 = scmp.eq.s32.totalorder %s16, 0
    %s19 = sadd.s32 %s18, 1
    %s20 = scalar_select %p17, %s18, %s19
    %p23 = pneg %p17
    %p24 = scmp.eq.s32.totalorder %s8, 1
    %p25 = por %p23, %p24
    %p26 = scmp.ne.s32.totalorder %s18, %s21
    %p27 = scmp.eq.s32.totalorder %s8, 0
    %p28 = por %p26, %p27
    %p29 = scmp.ne.s32.totalorder %s18, %s21
    %p30 = scmp.eq.s32.totalorder %s13, 1
    %p31 = por %p29, %p30
    %p32 = scmp.ne.s32.totalorder %s21, %s22
    %p33 = scmp.eq.s32.totalorder %s13, 0
    %p34 = por %p32, %p33
    %p35 = scmp.ne.s32.totalorder %s21, %s22
    %p36 = scmp.eq.s32.totalorder %s14, 1
    %p37 = por %p35, %p36
    %p39 = scmp.ne.s32.totalorder %s22, %s38
    %p40 = scmp.eq.s32.totalorder %s14, 0
    %p41 = por %p39, %p40
    %s43 = sadd.s32 %s42, 1
    %p46 = scmp.eq.s32.totalorder %s8, 1
    %p47 = scmp.ne.s32.totalorder %s42, %s44
    %p48 = scmp.eq.s32.totalorder %s8, 0
    %p49 = por %p47, %p48
    %p50 = scmp.ne.s32.totalorder %s42, %s44
    %p51 = scmp.eq.s32.totalorder %s13, 1
    %p52 = por %p50, %p51
    %p53 = scmp.ne.s32.totalorder %s44, %s45
    %p54 = scmp.eq.s32.totalorder %s13, 0
    %p55 = por %p53, %p54
    %p56 = scmp.ne.s32.totalorder %s44, %s45
    %p57 = scmp.eq.s32.totalorder %s14, 1
    %p58 = por %p56, %p57
    %p60 = scmp.ne.s32.totalorder %s45, %s59
    %p61 = scmp.eq.s32.totalorder %s14, 0
    %p62 = por %p60, %p61
    %s63 = ssub.s32 %s8, %s15
    %p64 = scmp.eq.s32.totalorder %s63, 0
    %s66 = sadd.s32 %s65, 1
    %s67 = scalar_select %p64, %s65, %s66
    %p70 = pneg %p64
    %p71 = scmp.eq.s32.totalorder %s8, 1
    %p72 = por %p70, %p71
    %p73 = scmp.ne.s32.totalorder %s65, %s68
    %p74 = scmp.eq.s32.totalorder %s8, 0
    %p75 = por %p73, %p74
    %p76 = scmp.ne.s32.totalorder %s65, %s68
    %p77 = scmp.eq.s32.totalorder %s13, 1
    %p78 = por %p76, %p77
    %p79 = scmp.ne.s32.totalorder %s68, %s69
    %p80 = scmp.eq.s32.totalorder %s13, 0
    %p81 = por %p79, %p80
    %p82 = scmp.ne.s32.totalorder %s68, %s69
    %p83 = scmp.eq.s32.totalorder %s14, 1
    %p84 = por %p82, %p83
    %p86 = scmp.ne.s32.totalorder %s69, %s85
    %p87 = scmp.eq.s32.totalorder %s14, 0
    %p88 = por %p86, %p87
    %p89 = scmp.le.s32.totalorder 1, %s8
    %p90 = scmp.lt.s32.totalorder %s8, 3
    %p91 = pnand %p89, %p90
    %p92 = pneg %p91
    // Predicated region
    $region9: #{tpu_custom_call.1} parent=5 // pred_check
      _
    $region10: #{tpu_custom_call.1} parent=5 // pred_check_branch
      %94 = sbr.rel (%p91) target = $region12
    $region11: #{tpu_custom_call.1} parent=5 // pred_region
      %s95 = ssub.s32 %s8, 1
      // Predicated region
      $region13: #{tpu_custom_call.1} parent=11 // pred_check
        %p96 = pneg %p55
      $region14: #{tpu_custom_call.1} parent=11 // pred_check_branch
        %98 = sbr.rel (%p96) target = $region16
      $region15: #{tpu_custom_call.1} parent=11 // pred_region
        _
      $region16: #{tpu_custom_call.1} parent=11 // pred_fallthru
        _
    $region12: #{tpu_custom_call.1} parent=5 // pred_fallthru
      _
    %p99 = scmp.lt.s32.totalorder %s8, 2
    // Predicated region
    $region17: #{tpu_custom_call.1} parent=5 // pred_check
      %p100 = pneg %p99
    $region18: #{tpu_custom_call.1} parent=5 // pred_check_branch
      %102 = sbr.rel (%p100) target = $region20
    $region19: #{tpu_custom_call.1} parent=5 // pred_region
      // Predicated region
      $region21: #{tpu_custom_call.1} parent=19 // pred_check
        %p103 = pneg %p28
      $region22: #{tpu_custom_call.1} parent=19 // pred_check_branch
        %105 = sbr.rel (%p103) target = $region24
      $region23: #{tpu_custom_call.1} parent=19 // pred_region
        %s106 = smul.u32 32, %s8
        %p107 = scmp.lt.s32.totalorder %s106, 63
        %s108 = scalar_select %p107, %s106, 63
        %s109 = smul.addr %s108, 8
        %s110 = scalar_lea.vmem %s0, %s109
        %s111 = smul.u32 32, %s8
      $region24: #{tpu_custom_call.1} parent=19 // pred_fallthru
        _
    $region20: #{tpu_custom_call.1} parent=5 // pred_fallthru
      _
    %p112 = scmp.le.s32.totalorder 1, %s8
    %p113 = scmp.lt.s32.totalorder %s8, 3
    %p114 = pnand %p112, %p113
    %p115 = pneg %p114
    // Predicated region
    $region25: #{tpu_custom_call.1} parent=5 // pred_check
      _
    $region26: #{tpu_custom_call.1} parent=5 // pred_check_branch
      %117 = sbr.rel (%p114) target = $region28
    $region27: #{tpu_custom_call.1} parent=5 // pred_region
      %s118 = ssub.s32 %s8, 1
      %s119 = smul.u32 32, %s13
      %p120 = scmp.lt.s32.totalorder %s119, 63
      %s121 = scalar_select %p120, %s119, 63
      %s122 = smul.addr %s121, 8
      %s123 = scalar_lea.vmem %s0, %s122
      %p124 = pneg %p34
      %p125 = pneg %p31
      %p126 = pneg %p55
      %p127 = pneg %p52
      %p128 = pneg %p81
      %p129 = pneg %p78
      %s130 = smul.u32 32, %s13
      %p131 = scmp.lt.s32.totalorder %s130, 63
      %s132 = scalar_select %p131, %s130, 63
      %s133 = smul.addr %s132, 3
      %s134 = smul.addr %s133, 8
      %s135 = scalar_lea.vmem %s2, %s134
      %s136 = smul.u32 32, %s13
      %p137 = scmp.lt.s32.totalorder %s136, 63
      %s138 = scalar_select %p137, %s136, 63
      %s139 = smul.addr %s138, 8
      %s140 = scalar_lea.vmem %s0, %s139
      %s141 = smul.u32 32, %s13
      %s142 = smul.u32 32, %s13
      %p143 = scmp.lt.s32.totalorder %s142, 63
      %s144 = scalar_select %p143, %s142, 63
      %s145 = smul.addr %s144, 3
      %s146 = smul.addr %s145, 8
      %s147 = scalar_lea.vmem %s2, %s146
      %s148 = smul.u32 32, %s13
      %v149 = vld [vmem:[%s140] sm:$0xff]
      %v150 = vld [vmem:[%s140 + $0x8] sm:$0xff]
      %v151 = vld [vmem:[%s140 + $0x10] sm:$0xff]
      %v152 = vld [vmem:[%s140 + $0x18] sm:$0xff]
      %v153 = vld [vmem:[%s140 + $0x20] sm:$0xff]
      %v154 = vld [vmem:[%s140 + $0x28] sm:$0xff]
      %v155 = vld [vmem:[%s140 + $0x30] sm:$0xff]
      %v156 = vld [vmem:[%s140 + $0x38] sm:$0xff]
      %v157 = vld [vmem:[%s140 + $0x40] sm:$0xff]
      %v158 = vld [vmem:[%s140 + $0x48] sm:$0xff]
      %v159 = vld [vmem:[%s140 + $0x50] sm:$0xff]
      %v160 = vld [vmem:[%s140 + $0x58] sm:$0xff]
      %v161 = vld [vmem:[%s140 + $0x60] sm:$0xff]
      %v162 = vld [vmem:[%s140 + $0x68] sm:$0xff]
      %v163 = vld [vmem:[%s140 + $0x70] sm:$0xff]
      %v164 = vld [vmem:[%s140 + $0x78] sm:$0xff]
      %v165 = vld [vmem:[%s140 + $0x80] sm:$0xff]
      %v166 = vld [vmem:[%s140 + $0x88] sm:$0xff]
      %v167 = vld [vmem:[%s140 + $0x90] sm:$0xff]
      %v168 = vld [vmem:[%s140 + $0x98] sm:$0xff]
      %v169 = vld [vmem:[%s140 + $0xa0] sm:$0xff]
      %v170 = vld [vmem:[%s140 + $0xa8] sm:$0xff]
      %v171 = vld [vmem:[%s140 + $0xb0] sm:$0xff]
      %v172 = vld [vmem:[%s140 + $0xb8] sm:$0xff]
      %v173 = vld [vmem:[%s140 + $0xc0] sm:$0xff]
      %v174 = vld [vmem:[%s140 + $0xc8] sm:$0xff]
      %v175 = vld [vmem:[%s140 + $0xd0] sm:$0xff]
      %v176 = vld [vmem:[%s140 + $0xd8] sm:$0xff]
      %v177 = vld [vmem:[%s140 + $0xe0] sm:$0xff]
      %v178 = vld [vmem:[%s140 + $0xe8] sm:$0xff]
      %v179 = vld [vmem:[%s140 + $0xf0] sm:$0xff]
      %v180 = vld [vmem:[%s140 + $0xf8] sm:$0xff]
      %v181 = vld [vmem:[%s1] sm:$0xff]
      %v182 = vld [vmem:[%s1 + $0x8] sm:$0xff]
      %v183 = vld [vmem:[%s1 + $0x10] sm:$0xff]
      %v184 = vld [vmem:[%s1 + $0x18] sm:$0xff]
      %v185 = vld [vmem:[%s1 + $0x20] sm:$0xff]
      %v186 = vld [vmem:[%s1 + $0x28] sm:$0xff]
      %v187 = vld [vmem:[%s1 + $0x30] sm:$0xff]
      %v188 = vld [vmem:[%s1 + $0x38] sm:$0xff]
      %v189 = vld [vmem:[%s1 + $0x40] sm:$0xff]
      %v190 = vld [vmem:[%s1 + $0x48] sm:$0xff]
      %v191 = vld [vmem:[%s1 + $0x50] sm:$0xff]
      %v192 = vld [vmem:[%s1 + $0x58] sm:$0xff]
      %vm193 = vcmask 261120
      %v195 = vsel %vm193, %v149, 0
      %v198 = vsel %vm193, %v150, 0
      %v201 = vsel %vm193, %v151, 0
      %v204 = vsel %vm193, %v152, 0
      %v207 = vsel %vm193, %v153, 0
      %v210 = vsel %vm193, %v154, 0
      %v213 = vsel %vm193, %v155, 0
      %v216 = vsel %vm193, %v156, 0
      %v219 = vsel %vm193, %v157, 0
      %v222 = vsel %vm193, %v158, 0
      %v225 = vsel %vm193, %v159, 0
      %v228 = vsel %vm193, %v160, 0
      %v231 = vsel %vm193, %v161, 0
      %v234 = vsel %vm193, %v162, 0
      %v237 = vsel %vm193, %v163, 0
      %v240 = vsel %vm193, %v164, 0
      %v243 = vsel %vm193, %v165, 0
      %v246 = vsel %vm193, %v166, 0
      %v249 = vsel %vm193, %v167, 0
      %v252 = vsel %vm193, %v168, 0
      %v255 = vsel %vm193, %v169, 0
      %v258 = vsel %vm193, %v170, 0
      %v261 = vsel %vm193, %v171, 0
      %v264 = vsel %vm193, %v172, 0
      %v267 = vsel %vm193, %v173, 0
      %v270 = vsel %vm193, %v174, 0
      %v273 = vsel %vm193, %v175, 0
      %v276 = vsel %vm193, %v176, 0
      %v279 = vsel %vm193, %v177, 0
      %v282 = vsel %vm193, %v178, 0
      %v285 = vsel %vm193, %v179, 0
      %v288 = vsel %vm193, %v180, 0
      %v290 = vand.u32 %v182, 4294901760
      %291 = vmatprep.subr.mxu0 %v290
      %v292 = vand.u32 %v181, 4294901760
      %293 = vmatpush1.msra.mxu0 %v292
      %v294 = vand.u32 %v185, 4294901760
      %295 = vmatprep.subr.mxu0 %v294
      %v296 = vand.u32 %v184, 4294901760
      %297 = vmatpush1.msra.mxu0 %v296
      %v298 = vand.u32 %v188, 4294901760
      %299 = vmatprep.subr.mxu0 %v298
      %v300 = vand.u32 %v187, 4294901760
      %301 = vmatpush1.msra.mxu0 %v300
      %v302 = vand.u32 %v191, 4294901760
      %303 = vmatprep.subr.mxu0 %v302
      %v304 = vand.u32 %v190, 4294901760
      %305 = vmatpush1.msra.mxu0 %v304
      %306 = vmatprep.subr.mxu0 0.0
      %307 = vmatpush1.msra.mxu0 0.0
      %308 = vmatprep.subr.mxu0 0.0
      %309 = vmatpush1.msra.mxu0 0.0
      %310 = vmatprep.subr.mxu0 0.0
      %311 = vmatpush1.msra.mxu0 0.0
      %312 = vmatprep.subr.mxu0 0.0
      %313 = vmatpush1.msra.mxu0 0.0
      %314 = vmatprep.subr.mxu0 0.0
      %315 = vmatpush1.msra.mxu0 0.0
      %316 = vmatprep.subr.mxu0 0.0
      %317 = vmatpush1.msra.mxu0 0.0
      %318 = vmatprep.subr.mxu0 0.0
      %319 = vmatpush1.msra.mxu0 0.0
      %320 = vmatprep.subr.mxu0 0.0
      %321 = vmatpush1.msra.mxu0 0.0
      %322 = vmatprep.subr.mxu0 0.0
      %323 = vmatpush1.msra.mxu0 0.0
      %324 = vmatprep.subr.mxu0 0.0
      %325 = vmatpush1.msra.mxu0 0.0
      %326 = vmatprep.subr.mxu0 0.0
      %327 = vmatpush1.msra.mxu0 0.0
      %328 = vmatprep.subr.mxu0 0.0
      %329 = vmatpush1.msra.mxu0 0.0
      %330 = vmatprep.subr.mxu0 0.0
      %331 = vmatpush1.msra.mxu0 0.0
      %332 = vmatprep.subr.mxu0 0.0
      %333 = vmatpush1.msra.mxu0 0.0
      %334 = vmatprep.subr.mxu0 0.0
      %335 = vmatpush1.msra.mxu0 0.0
      %336 = vmatprep.subr.mxu0 0.0
      %337 = vmatpush1.msra.mxu0 0.0
      %338 = vmatprep.subr.mxu0 0.0
      %339 = vmatpush1.msra.mxu0 0.0
      %340 = vmatprep.subr.mxu0 0.0
      %341 = vmatpush1.msra.mxu0 0.0
      %342 = vmatprep.subr.mxu0 0.0
      %343 = vmatpush1.msra.mxu0 0.0
      %344 = vmatprep.subr.mxu0 0.0
      %345 = vmatpush1.msra.mxu0 0.0
      %346 = vmatprep.subr.mxu0 0.0
      %347 = vmatpush1.msra.mxu0 0.0
      %348 = vmatprep.subr.mxu0 0.0
      %349 = vmatpush1.msra.mxu0 0.0
      %350 = vmatprep.subr.mxu0 0.0
      %351 = vmatpush1.msra.mxu0 0.0
      %352 = vmatprep.subr.mxu0 0.0
      %353 = vmatpush1.msra.mxu0 0.0
      %354 = vmatprep.subr.mxu0 0.0
      %355 = vmatpush1.msra.mxu0 0.0
      %356 = vmatprep.subr.mxu0 0.0
      %357 = vmatpush1.msra.mxu0 0.0
      %358 = vmatprep.subr.mxu0 0.0
      %359 = vmatpush1.msra.mxu0 0.0
      %360 = vmatprep.subr.mxu0 0.0
      %361 = vmatpush1.msra.mxu0 0.0
      %362 = vmatprep.mubr.f32.mxu0 0.0
      %v363 = vand.u32 %v195, 4294901760
      %v364 = vsub.f32 %v195, %v363
      %v365 = vand.u32 %v364, 4294901760
      %v366 = vsub.f32 %v364, %v365
      %v367 = vand.u32 %v366, 4294901760
      %368 = vmatmul.mubr.f32.gmra.mrb[0].mxu0 %v367
      %v369 = vpop.f32.mrb[0].mxu0
      %v370 = vadd.f32 0.0, %v369
      %v371 = vpop.f32.mrb[0].mxu0
      %v372 = vadd.f32 0.0, %v371
      %373 = vmatprep.mubr.f32.mxu0 0.0
      %v374 = vand.u32 %v198, 4294901760
      %v375 = vsub.f32 %v198, %v374
      %v376 = vand.u32 %v375, 4294901760
      %v377 = vsub.f32 %v375, %v376
      %v378 = vand.u32 %v377, 4294901760
      %379 = vmatmul.mubr.f32.gmra.mrb[0].mxu0 %v378
      %v380 = vpop.f32.mrb[0].mxu0
      %v381 = vadd.f32 0.0, %v380
      %v382 = vpop.f32.mrb[0].mxu0
      %v383 = vadd.f32 0.0, %v382
      %384 = vmatprep.mubr.f32.mxu0 0.0
      %v385 = vand.u32 %v201, 4294901760
      %v386 = vsub.f32 %v201, %v385
      %v387 = vand.u32 %v386, 4294901760
      %v388 = vsub.f32 %v386, %v387
      %v389 = vand.u32 %v388, 4294901760
      %390 = vmatmul.mubr.f32.gmra.mrb[0].mxu0 %v389
      %v391 = vpop.f32.mrb[0].mxu0
      %v392 = vadd.f32 0.0, %v391
      %v393 = vpop.f32.mrb[0].mxu0
      %v394 = vadd.f32 0.0, %v393
      %395 = vmatprep.mubr.f32.mxu0 0.0
      %v396 = vand.u32 %v204, 4294901760
      %v397 = vsub.f32 %v204, %v396
      %v398 = vand.u32 %v397, 4294901760
      %v399 = vsub.f32 %v397, %v398
      %v400 = vand.u32 %v399, 4294901760
      %401 = vmatmul.mubr.f32.gmra.mrb[0].mxu0 %v400
      %v402 = vpop.f32.mrb[0].mxu0
      %v403 = vadd.f32 0.0, %v402
      %v404 = vpop.f32.mrb[0].mxu0
      %v405 = vadd.f32 0.0, %v404
      %406 = vmatprep.mubr.f32.mxu0 0.0
      %v407 = vand.u32 %v207, 4294901760
      %v408 = vsub.f32 %v207, %v407
      %v409 = vand.u32 %v408, 4294901760
      %v410 = vsub.f32 %v408, %v409
      %v411 = vand.u32 %v410, 4294901760
      %412 = vmatmul.mubr.f32.gmra.mrb[0].mxu0 %v411
      %v413 = vpop.f32.mrb[0].mxu0
      %v414 = vadd.f32 0.0, %v413
      %v415 = vpop.f32.mrb[0].mxu0
      %v416 = vadd.f32 0.0, %v415
      %417 = vmatprep.mubr.f32.mxu0 0.0
      %v418 = vand.u32 %v210, 4294901760
      %v419 = vsub.f32 %v210, %v418
      %v420 = vand.u32 %v419, 4294901760
      %v421 = vsub.f32 %v419, %v420
      %v422 = vand.u32 %v421, 4294901760
      %423 = vmatmul.mubr.f32.gmra.mrb[0].mxu0 %v422
      %v424 = vpop.f32.mrb[0].mxu0
      %v425 = vadd.f32 0.0, %v424
      %v426 = vpop.f32.mrb[0].mxu0
      %v427 = vadd.f32 0.0, %v426
      %428 = vmatprep.mubr.f32.mxu0 0.0
      %v429 = vand.u32 %v213, 4294901760
      %v430 = vsub.f32 %v213, %v429
      %v431 = vand.u32 %v430, 4294901760
      %v432 = vsub.f32 %v430, %v431
      %v433 = vand.u32 %v432, 4294901760
      %434 = vmatmul.mubr.f32.gmra.mrb[0].mxu0 %v433
      %v435 = vpop.f32.mrb[0].mxu0
      %v436 = vadd.f32 0.0, %v435
      %v437 = vpop.f32.mrb[0].mxu0
      %v438 = vadd.f32 0.0, %v437
      %439 = vmatprep.mubr.f32.mxu0 0.0
      %v440 = vand.u32 %v216, 4294901760
      %v441 = vsub.f32 %v216, %v440
      %v442 = vand.u32 %v441, 4294901760
      %v443 = vsub.f32 %v441, %v442
      %v444 = vand.u32 %v443, 4294901760
      %445 = vmatmul.mubr.f32.gmra.mrb[0].mxu0 %v444
      %v446 = vpop.f32.mrb[0].mxu0
      %v447 = vadd.f32 0.0, %v446
      %v448 = vpop.f32.mrb[0].mxu0
      %v449 = vadd.f32 0.0, %v448
      %450 = vmatprep.mubr.f32.mxu0 0.0
      %v451 = vand.u32 %v219, 4294901760
      %v452 = vsub.f32 %v219, %v451
      %v453 = vand.u32 %v452, 4294901760
      %v454 = vsub.f32 %v452, %v453
      %v455 = vand.u32 %v454, 4294901760
      %456 = vmatmul.mubr.f32.gmra.mrb[0].mxu0 %v455
      %v457 = vpop.f32.mrb[0].mxu0
      %v458 = vadd.f32 0.0, %v457
      %v459 = vpop.f32.mrb[0].mxu0
      %v460 = vadd.f32 0.0, %v459
      %461 = vmatprep.mubr.f32.mxu0 0.0
      %v462 = vand.u32 %v222, 4294901760
      %v463 = vsub.f32 %v222, %v462
      %v464 = vand.u32 %v463, 4294901760
      %v465 = vsub.f32 %v463, %v464
      %v466 = vand.u32 %v465, 4294901760
      %467 = vmatmul.mubr.f32.gmra.mrb[0].mxu0 %v466
      %v468 = vpop.f32.mrb[0].mxu0
      %v469 = vadd.f32 0.0, %v468
      %v470 = vpop.f32.mrb[0].mxu0
      %v471 = vadd.f32 0.0, %v470
      %472 = vmatprep.mubr.f32.mxu0 0.0
      %v473 = vand.u32 %v225, 4294901760
      %v474 = vsub.f32 %v225, %v473
      %v475 = vand.u32 %v474, 4294901760
      %v476 = vsub.f32 %v474, %v475
      %v477 = vand.u32 %v476, 4294901760
      %478 = vmatmul.mubr.f32.gmra.mrb[0].mxu0 %v477
      %v479 = vpop.f32.mrb[0].mxu0
      %v480 = vadd.f32 0.0, %v479
      %v481 = vpop.f32.mrb[0].mxu0
      %v482 = vadd.f32 0.0, %v481
      %483 = vmatprep.mubr.f32.mxu0 0.0
      %v484 = vand.u32 %v228, 4294901760
      %v485 = vsub.f32 %v228, %v484
      %v486 = vand.u32 %v485, 4294901760
      %v487 = vsub.f32 %v485, %v486
      %v488 = vand.u32 %v487, 4294901760
      %489 = vmatmul.mubr.f32.gmra.mrb[0].mxu0 %v488
      %v490 = vpop.f32.mrb[0].mxu0
      %v491 = vadd.f32 0.0, %v490
      %v492 = vpop.f32.mrb[0].mxu0
      %v493 = vadd.f32 0.0, %v492
      %494 = vmatprep.mubr.f32.mxu0 0.0
      %v495 = vand.u32 %v231, 4294901760
      %v496 = vsub.f32 %v231, %v495
      %v497 = vand.u32 %v496, 4294901760
      %v498 = vsub.f32 %v496, %v497
      %v499 = vand.u32 %v498, 4294901760
      %500 = vmatmul.mubr.f32.gmra.mrb[0].mxu0 %v499
      %v501 = vpop.f32.mrb[0].mxu0
      %v502 = vadd.f32 0.0, %v501
      %v503 = vpop.f32.mrb[0].mxu0
      %v504 = vadd.f32 0.0, %v503
      %505 = vmatprep.mubr.f32.mxu0 0.0
      %v506 = vand.u32 %v234, 4294901760
      %v507 = vsub.f32 %v234, %v506
      %v508 = vand.u32 %v507, 4294901760
      %v509 = vsub.f32 %v507, %v508
      %v510 = vand.u32 %v509, 4294901760
      %511 = vmatmul.mubr.f32.gmra.mrb[0].mxu0 %v510
      %v512 = vpop.f32.mrb[0].mxu0
      %v513 = vadd.f32 0.0, %v512
      %v514 = vpop.f32.mrb[0].mxu0
      %v515 = vadd.f32 0.0, %v514
      %516 = vmatprep.mubr.f32.mxu0 0.0
      %v517 = vand.u32 %v237, 4294901760
      %v518 = vsub.f32 %v237, %v517
      %v519 = vand.u32 %v518, 4294901760
      %v520 = vsub.f32 %v518, %v519
      %v521 = vand.u32 %v520, 4294901760
      %522 = vmatmul.mubr.f32.gmra.mrb[0].mxu0 %v521
      %v523 = vpop.f32.mrb[0].mxu0
      %v524 = vadd.f32 0.0, %v523
      %v525 = vpop.f32.mrb[0].mxu0
      %v526 = vadd.f32 0.0, %v525
      %527 = vmatprep.mubr.f32.mxu0 0.0
      %v528 = vand.u32 %v240, 4294901760
      %v529 = vsub.f32 %v240, %v528
      %v530 = vand.u32 %v529, 4294901760
      %v531 = vsub.f32 %v529, %v530
      %v532 = vand.u32 %v531, 4294901760
      %533 = vmatmul.mubr.f32.gmra.mrb[0].mxu0 %v532
      %v534 = vpop.f32.mrb[0].mxu0
      %v535 = vadd.f32 0.0, %v534
      %v536 = vpop.f32.mrb[0].mxu0
      %v537 = vadd.f32 0.0, %v536
      %538 = vmatprep.mubr.f32.mxu0 0.0
      %v539 = vand.u32 %v243, 4294901760
      %v540 = vsub.f32 %v243, %v539
      %v541 = vand.u32 %v540, 4294901760
      %v542 = vsub.f32 %v540, %v541
      %v543 = vand.u32 %v542, 4294901760
      %544 = vmatmul.mubr.f32.gmra.mrb[0].mxu0 %v543
      %v545 = vpop.f32.mrb[0].mxu0
      %v546 = vadd.f32 0.0, %v545
      %v547 = vpop.f32.mrb[0].mxu0
      %v548 = vadd.f32 0.0, %v547
      %549 = vmatprep.mubr.f32.mxu0 0.0
      %v550 = vand.u32 %v246, 4294901760
      %v551 = vsub.f32 %v246, %v550
      %v552 = vand.u32 %v551, 4294901760
      %v553 = vsub.f32 %v551, %v552
      %v554 = vand.u32 %v553, 4294901760
      %555 = vmatmul.mubr.f32.gmra.mrb[0].mxu0 %v554
      %v556 = vpop.f32.mrb[0].mxu0
      %v557 = vadd.f32 0.0, %v556
      %v558 = vpop.f32.mrb[0].mxu0
      %v559 = vadd.f32 0.0, %v558
      %560 = vmatprep.mubr.f32.mxu0 0.0
      %v561 = vand.u32 %v249, 4294901760
      %v562 = vsub.f32 %v249, %v561
      %v563 = vand.u32 %v562, 4294901760
      %v564 = vsub.f32 %v562, %v563
      %v565 = vand.u32 %v564, 4294901760
      %566 = vmatmul.mubr.f32.gmra.mrb[0].mxu0 %v565
      %v567 = vpop.f32.mrb[0].mxu0
      %v568 = vadd.f32 0.0, %v567
      %v569 = vpop.f32.mrb[0].mxu0
      %v570 = vadd.f32 0.0, %v569
      %571 = vmatprep.mubr.f32.mxu0 0.0
      %v572 = vand.u32 %v252, 4294901760
      %v573 = vsub.f32 %v252, %v572
      %v574 = vand.u32 %v573, 4294901760
      %v575 = vsub.f32 %v573, %v574
      %v576 = vand.u32 %v575, 4294901760
      %577 = vmatmul.mubr.f32.gmra.mrb[0].mxu0 %v576
      %v578 = vpop.f32.mrb[0].mxu0
      %v579 = vadd.f32 0.0, %v578
      %v580 = vpop.f32.mrb[0].mxu0
      %v581 = vadd.f32 0.0, %v580
      %582 = vmatprep.mubr.f32.mxu0 0.0
      %v583 = vand.u32 %v255, 4294901760
      %v584 = vsub.f32 %v255, %v583
      %v585 = vand.u32 %v584, 4294901760
      %v586 = vsub.f32 %v584, %v585
      %v587 = vand.u32 %v586, 4294901760
      %588 = vmatmul.mubr.f32.gmra.mrb[0].mxu0 %v587
      %v589 = vpop.f32.mrb[0].mxu0
      %v590 = vadd.f32 0.0, %v589
      %v591 = vpop.f32.mrb[0].mxu0
      %v592 = vadd.f32 0.0, %v591
      %593 = vmatprep.mubr.f32.mxu0 0.0
      %v594 = vand.u32 %v258, 4294901760
      %v595 = vsub.f32 %v258, %v594
      %v596 = vand.u32 %v595, 4294901760
      %v597 = vsub.f32 %v595, %v596
      %v598 = vand.u32 %v597, 4294901760
      %599 = vmatmul.mubr.f32.gmra.mrb[0].mxu0 %v598
      %v600 = vpop.f32.mrb[0].mxu0
      %v601 = vadd.f32 0.0, %v600
      %v602 = vpop.f32.mrb[0].mxu0
      %v603 = vadd.f32 0.0, %v602
      %604 = vmatprep.mubr.f32.mxu0 0.0
      %v605 = vand.u32 %v261, 4294901760
      %v606 = vsub.f32 %v261, %v605
      %v607 = vand.u32 %v606, 4294901760
      %v608 = vsub.f32 %v606, %v607
      %v609 = vand.u32 %v608, 4294901760
      %610 = vmatmul.mubr.f32.gmra.mrb[0].mxu0 %v609
      %v611 = vpop.f32.mrb[0].mxu0
      %v612 = vadd.f32 0.0, %v611
      %v613 = vpop.f32.mrb[0].mxu0
      %v614 = vadd.f32 0.0, %v613
      %615 = vmatprep.mubr.f32.mxu0 0.0
      %v616 = vand.u32 %v264, 4294901760
      %v617 = vsub.f32 %v264, %v616
      %v618 = vand.u32 %v617, 4294901760
      %v619 = vsub.f32 %v617, %v618
      %v620 = vand.u32 %v619, 4294901760
      %621 = vmatmul.mubr.f32.gmra.mrb[0].mxu0 %v620
      %v622 = vpop.f32.mrb[0].mxu0
      %v623 = vadd.f32 0.0, %v622
      %v624 = vpop.f32.mrb[0].mxu0
      %v625 = vadd.f32 0.0, %v624
      %626 = vmatprep.mubr.f32.mxu0 0.0
      %v627 = vand.u32 %v267, 4294901760
      %v628 = vsub.f32 %v267, %v627
      %v629 = vand.u32 %v628, 4294901760
      %v630 = vsub.f32 %v628, %v629
      %v631 = vand.u32 %v630, 4294901760
      %632 = vmatmul.mubr.f32.gmra.mrb[0].mxu0 %v631
      %v633 = vpop.f32.mrb[0].mxu0
      %v634 = vadd.f32 0.0, %v633
      %v635 = vpop.f32.mrb[0].mxu0
      %v636 = vadd.f32 0.0, %v635
      %637 = vmatprep.mubr.f32.mxu0 0.0
      %v638 = vand.u32 %v270, 4294901760
      %v639 = vsub.f32 %v270, %v638
      %v640 = vand.u32 %v639, 4294901760
      %v641 = vsub.f32 %v639, %v640
      %v642 = vand.u32 %v641, 4294901760
      %643 = vmatmul.mubr.f32.gmra.mrb[0].mxu0 %v642
      %v644 = vpop.f32.mrb[0].mxu0
      %v645 = vadd.f32 0.0, %v644
      %v646 = vpop.f32.mrb[0].mxu0
      %v647 = vadd.f32 0.0, %v646
      %648 = vmatprep.mubr.f32.mxu0 0.0
      %v649 = vand.u32 %v273, 4294901760
      %v650 = vsub.f32 %v273, %v649
      %v651 = vand.u32 %v650, 4294901760
      %v652 = vsub.f32 %v650, %v651
      %v653 = vand.u32 %v652, 4294901760
      %654 = vmatmul.mubr.f32.gmra.mrb[0].mxu0 %v653
      %v655 = vpop.f32.mrb[0].mxu0
      %v656 = vadd.f32 0.0, %v655
      %v657 = vpop.f32.mrb[0].mxu0
      %v658 = vadd.f32 0.0, %v657
      %659 = vmatprep.mubr.f32.mxu0 0.0
      %v660 = vand.u32 %v276, 4294901760
      %v661 = vsub.f32 %v276, %v660
      %v662 = vand.u32 %v661, 4294901760
      %v663 = vsub.f32 %v661, %v662
      %v664 = vand.u32 %v663, 4294901760
      %665 = vmatmul.mubr.f32.gmra.mrb[0].mxu0 %v664
      %v666 = vpop.f32.mrb[0].mxu0
      %v667 = vadd.f32 0.0, %v666
      %v668 = vpop.f32.mrb[0].mxu0
      %v669 = vadd.f32 0.0, %v668
      %670 = vmatprep.mubr.f32.mxu0 0.0
      %v671 = vand.u32 %v279, 4294901760
      %v672 = vsub.f32 %v279, %v671
      %v673 = vand.u32 %v672, 4294901760
      %v674 = vsub.f32 %v672, %v673
      %v675 = vand.u32 %v674, 4294901760
      %676 = vmatmul.mubr.f32.gmra.mrb[0].mxu0 %v675
      %v677 = vpop.f32.mrb[0].mxu0
      %v678 = vadd.f32 0.0, %v677
      %v679 = vpop.f32.mrb[0].mxu0
      %v680 = vadd.f32 0.0, %v679
      %681 = vmatprep.mubr.f32.mxu0 0.0
      %v682 = vand.u32 %v282, 4294901760
      %v683 = vsub.f32 %v282, %v682
      %v684 = vand.u32 %v683, 4294901760
      %v685 = vsub.f32 %v683, %v684
      %v686 = vand.u32 %v685, 4294901760
      %687 = vmatmul.mubr.f32.gmra.mrb[0].mxu0 %v686
      %v688 = vpop.f32.mrb[0].mxu0
      %v689 = vadd.f32 0.0, %v688
      %v690 = vpop.f32.mrb[0].mxu0
      %v691 = vadd.f32 0.0, %v690
      %692 = vmatprep.mubr.f32.mxu0 0.0
      %v693 = vand.u32 %v285, 4294901760
      %v694 = vsub.f32 %v285, %v693
      %v695 = vand.u32 %v694, 4294901760
      %v696 = vsub.f32 %v694, %v695
      %v697 = vand.u32 %v696, 4294901760
      %698 = vmatmul.mubr.f32.gmra.mrb[0].mxu0 %v697
      %v699 = vpop.f32.mrb[0].mxu0
      %v700 = vadd.f32 0.0, %v699
      %v701 = vpop.f32.mrb[0].mxu0
      %v702 = vadd.f32 0.0, %v701
      %703 = vmatprep.mubr.f32.mxu0 0.0
      %v704 = vand.u32 %v288, 4294901760
      %v705 = vsub.f32 %v288, %v704
      %v706 = vand.u32 %v705, 4294901760
      %v707 = vsub.f32 %v705, %v706
      %v708 = vand.u32 %v707, 4294901760
      %709 = vmatmul.mubr.f32.gmra.mrb[0].mxu0 %v708
      %v710 = vpop.f32.mrb[0].mxu0
      %v711 = vadd.f32 0.0, %v710
      %v712 = vpop.f32.mrb[0].mxu0
      %v713 = vadd.f32 0.0, %v712
      %714 = vdwg.mxu0
      %v715 = vand.u32 %v182, 4294901760
      %v716 = vsub.f32 %v182, %v715
      %v717 = vand.u32 %v716, 4294901760
      %v718 = vsub.f32 %v716, %v717
      %v719 = vand.u32 %v718, 4294901760
      %720 = vmatprep.subr.mxu0 %v719
      %v721 = vand.u32 %v181, 4294901760
      %v722 = vsub.f32 %v181, %v721
      %v723 = vand.u32 %v722, 4294901760
      %v724 = vsub.f32 %v722, %v723
      %v725 = vand.u32 %v724, 4294901760
      %726 = vmatpush1.msra.mxu0 %v725
      %v727 = vand.u32 %v185, 4294901760
      %v728 = vsub.f32 %v185, %v727
      %v729 = vand.u32 %v728, 4294901760
      %v730 = vsub.f32 %v728, %v729
      %v731 = vand.u32 %v730, 4294901760
      %732 = vmatprep.subr.mxu0 %v731
      %v733 = vand.u32 %v184, 4294901760
      %v734 = vsub.f32 %v184, %v733
      %v735 = vand.u32 %v734, 4294901760
      %v736 = vsub.f32 %v734, %v735
      %v737 = vand.u32 %v736, 4294901760
      %738 = vmatpush1.msra.mxu0 %v737
      %v739 = vand.u32 %v188, 4294901760
      %v740 = vsub.f32 %v188, %v739
      %v741 = vand.u32 %v740, 4294901760
      %v742 = vsub.f32 %v740, %v741
      %v743 = vand.u32 %v742, 4294901760
      %744 = vmatprep.subr.mxu0 %v743
      %v745 = vand.u32 %v187, 4294901760
      %v746 = vsub.f32 %v187, %v745
      %v747 = vand.u32 %v746, 4294901760
      %v748 = vsub.f32 %v746, %v747
      %v749 = vand.u32 %v748, 4294901760
      %750 = vmatpush1.msra.mxu0 %v749
      %v751 = vand.u32 %v191, 4294901760
      %v752 = vsub.f32 %v191, %v751
      %v753 = vand.u32 %v752, 4294901760
      %v754 = vsub.f32 %v752, %v753
      %v755 = vand.u32 %v754, 4294901760
      %756 = vmatprep.subr.mxu0 %v755
      %v757 = vand.u32 %v190, 4294901760
      %v758 = vsub.f32 %v190, %v757
      %v759 = vand.u32 %v758, 4294901760
      %v760 = vsub.f32 %v758, %v759
      %v761 = vand.u32 %v760, 4294901760
      %762 = vmatpush1.msra.mxu0 %v761
      %763 = vmatprep.subr.mxu0 0.0
      %764 = vmatpush1.msra.mxu0 0.0
      %765 = vmatprep.subr.mxu0 0.0
      %766 = vmatpush1.msra.mxu0 0.0
      %767 = vmatprep.subr.mxu0 0.0
      %768 = vmatpush1.msra.mxu0 0.0
      %769 = vmatprep.subr.mxu0 0.0
      %770 = vmatpush1.msra.mxu0 0.0
      %771 = vmatprep.subr.mxu0 0.0
      %772 = vmatpush1.msra.mxu0 0.0
      %773 = vmatprep.subr.mxu0 0.0
      %774 = vmatpush1.msra.mxu0 0.0
      %775 = vmatprep.subr.mxu0 0.0
      %776 = vmatpush1.msra.mxu0 0.0
      %777 = vmatprep.subr.mxu0 0.0
      %778 = vmatpush1.msra.mxu0 0.0
      %779 = vmatprep.subr.mxu0 0.0
      %780 = vmatpush1.msra.mxu0 0.0
      %781 = vmatprep.subr.mxu0 0.0
      %782 = vmatpush1.msra.mxu0 0.0
      %783 = vmatprep.subr.mxu0 0.0
      %784 = vmatpush1.msra.mxu0 0.0
      %785 = vmatprep.subr.mxu0 0.0
      %786 = vmatpush1.msra.mxu0 0.0
      %787 = vmatprep.subr.mxu0 0.0
      %788 = vmatpush1.msra.mxu0 0.0
      %789 = vmatprep.subr.mxu0 0.0
      %790 = vmatpush1.msra.mxu0 0.0
      %791 = vmatprep.subr.mxu0 0.0
      %792 = vmatpush1.msra.mxu0 0.0
      %793 = vmatprep.subr.mxu0 0.0
      %794 = vmatpush1.msra.mxu0 0.0
      %795 = vmatprep.subr.mxu0 0.0
      %796 = vmatpush1.msra.mxu0 0.0
      %797 = vmatprep.subr.mxu0 0.0
      %798 = vmatpush1.msra.mxu0 0.0
      %799 = vmatprep.subr.mxu0 0.0
      %800 = vmatpush1.msra.mxu0 0.0
      %801 = vmatprep.subr.mxu0 0.0
      %802 = vmatpush1.msra.mxu0 0.0
      %803 = vmatprep.subr.mxu0 0.0
      %804 = vmatpush1.msra.mxu0 0.0
      %805 = vmatprep.subr.mxu0 0.0
      %806 = vmatpush1.msra.mxu0 0.0
      %807 = vmatprep.subr.mxu0 0.0
      %808 = vmatpush1.msra.mxu0 0.0
      %809 = vmatprep.subr.mxu0 0.0
      %810 = vmatpush1.msra.mxu0 0.0
      %811 = vmatprep.subr.mxu0 0.0
      %812 = vmatpush1.msra.mxu0 0.0
      %813 = vmatprep.subr.mxu0 0.0
      %814 = vmatpush1.msra.mxu0 0.0
      %815 = vmatprep.subr.mxu0 0.0
      %816 = vmatpush1.msra.mxu0 0.0
      %817 = vmatprep.subr.mxu0 0.0
      %818 = vmatpush1.msra.mxu0 0.0
      %819 = vmatprep.mubr.f32.mxu0 0.0
      %v820 = vand.u32 %v195, 4294901760
      %821 = vmatmul.mubr.f32.gmra.mrb[0].mxu0 %v820
      %v822 = vpop.f32.mrb[0].mxu0
      %v823 = vadd.f32 %v370, %v822
      %v824 = vpop.f32.mrb[0].mxu0
      %v825 = vadd.f32 %v372, %v824
      %826 = vmatprep.mubr.f32.mxu0 0.0
      %v827 = vand.u32 %v198, 4294901760
      %828 = vmatmul.mubr.f32.gmra.mrb[0].mxu0 %v827
      %v829 = vpop.f32.mrb[0].mxu0
      %v830 = vadd.f32 %v381, %v829
      %v831 = vpop.f32.mrb[0].mxu0
      %v832 = vadd.f32 %v383, %v831
      %833 = vmatprep.mubr.f32.mxu0 0.0
      %v834 = vand.u32 %v201, 4294901760
      %835 = vmatmul.mubr.f32.gmra.mrb[0].mxu0 %v834
      %v836 = vpop.f32.mrb[0].mxu0
      %v837 = vadd.f32 %v392, %v836
      %v838 = vpop.f32.mrb[0].mxu0
      %v839 = vadd.f32 %v394, %v838
      %840 = vmatprep.mubr.f32.mxu0 0.0
      %v841 = vand.u32 %v204, 4294901760
      %842 = vmatmul.mubr.f32.gmra.mrb[0].mxu0 %v841
      %v843 = vpop.f32.mrb[0].mxu0
      %v844 = vadd.f32 %v403, %v843
      %v845 = vpop.f32.mrb[0].mxu0
      %v846 = vadd.f32 %v405, %v845
      %847 = vmatprep.mubr.f32.mxu0 0.0
      %v848 = vand.u32 %v207, 4294901760
      %849 = vmatmul.mubr.f32.gmra.mrb[0].mxu0 %v848
      %v850 = vpop.f32.mrb[0].mxu0
      %v851 = vadd.f32 %v414, %v850
      %v852 = vpop.f32.mrb[0].mxu0
      %v853 = vadd.f32 %v416, %v852
      %854 = vmatprep.mubr.f32.mxu0 0.0
      %v855 = vand.u32 %v210, 4294901760
      %856 = vmatmul.mubr.f32.gmra.mrb[0].mxu0 %v855
      %v857 = vpop.f32.mrb[0].mxu0
      %v858 = vadd.f32 %v425, %v857
      %v859 = vpop.f32.mrb[0].mxu0
      %v860 = vadd.f32 %v427, %v859
      %861 = vmatprep.mubr.f32.mxu0 0.0
      %v862 = vand.u32 %v213, 4294901760
      %863 = vmatmul.mubr.f32.gmra.mrb[0].mxu0 %v862
      %v864 = vpop.f32.mrb[0].mxu0
      %v865 = vadd.f32 %v436, %v864
      %v866 = vpop.f32.mrb[0].mxu0
      %v867 = vadd.f32 %v438, %v866
      %868 = vmatprep.mubr.f32.mxu0 0.0
      %v869 = vand.u32 %v216, 4294901760
      %870 = vmatmul.mubr.f32.gmra.mrb[0].mxu0 %v869
      %v871 = vpop.f32.mrb[0].mxu0
      %v872 = vadd.f32 %v447, %v871
      %v873 = vpop.f32.mrb[0].mxu0
      %v874 = vadd.f32 %v449, %v873
      %875 = vmatprep.mubr.f32.mxu0 0.0
      %v876 = vand.u32 %v219, 4294901760
      %877 = vmatmul.mubr.f32.gmra.mrb[0].mxu0 %v876
      %v878 = vpop.f32.mrb[0].mxu0
      %v879 = vadd.f32 %v458, %v878
      %v880 = vpop.f32.mrb[0].mxu0
      %v881 = vadd.f32 %v460, %v880
      %882 = vmatprep.mubr.f32.mxu0 0.0
      %v883 = vand.u32 %v222, 4294901760
      %884 = vmatmul.mubr.f32.gmra.mrb[0].mxu0 %v883
      %v885 = vpop.f32.mrb[0].mxu0
      %v886 = vadd.f32 %v469, %v885
      %v887 = vpop.f32.mrb[0].mxu0
      %v888 = vadd.f32 %v471, %v887
      %889 = vmatprep.mubr.f32.mxu0 0.0
      %v890 = vand.u32 %v225, 4294901760
      %891 = vmatmul.mubr.f32.gmra.mrb[0].mxu0 %v890
      %v892 = vpop.f32.mrb[0].mxu0
      %v893 = vadd.f32 %v480, %v892
      %v894 = vpop.f32.mrb[0].mxu0
      %v895 = vadd.f32 %v482, %v894
      %896 = vmatprep.mubr.f32.mxu0 0.0
      %v897 = vand.u32 %v228, 4294901760
      %898 = vmatmul.mubr.f32.gmra.mrb[0].mxu0 %v897
      %v899 = vpop.f32.mrb[0].mxu0
      %v900 = vadd.f32 %v491, %v899
      %v901 = vpop.f32.mrb[0].mxu0
      %v902 = vadd.f32 %v493, %v901
      %903 = vmatprep.mubr.f32.mxu0 0.0
      %v904 = vand.u32 %v231, 4294901760
      %905 = vmatmul.mubr.f32.gmra.mrb[0].mxu0 %v904
      %v906 = vpop.f32.mrb[0].mxu0
      %v907 = vadd.f32 %v502, %v906
      %v908 = vpop.f32.mrb[0].mxu0
      %v909 = vadd.f32 %v504, %v908
      %910 = vmatprep.mubr.f32.mxu0 0.0
      %v911 = vand.u32 %v234, 4294901760
      %912 = vmatmul.mubr.f32.gmra.mrb[0].mxu0 %v911
      %v913 = vpop.f32.mrb[0].mxu0
      %v914 = vadd.f32 %v513, %v913
      %v915 = vpop.f32.mrb[0].mxu0
      %v916 = vadd.f32 %v515, %v915
      %917 = vmatprep.mubr.f32.mxu0 0.0
      %v918 = vand.u32 %v237, 4294901760
      %919 = vmatmul.mubr.f32.gmra.mrb[0].mxu0 %v918
      %v920 = vpop.f32.mrb[0].mxu0
      %v921 = vadd.f32 %v524, %v920
      %v922 = vpop.f32.mrb[0].mxu0
      %v923 = vadd.f32 %v526, %v922
      %924 = vmatprep.mubr.f32.mxu0 0.0
      %v925 = vand.u32 %v240, 4294901760
      %926 = vmatmul.mubr.f32.gmra.mrb[0].mxu0 %v925
      %v927 = vpop.f32.mrb[0].mxu0
      %v928 = vadd.f32 %v535, %v927
      %v929 = vpop.f32.mrb[0].mxu0
      %v930 = vadd.f32 %v537, %v929
      %931 = vmatprep.mubr.f32.mxu0 0.0
      %v932 = vand.u32 %v243, 4294901760
      %933 = vmatmul.mubr.f32.gmra.mrb[0].mxu0 %v932
      %v934 = vpop.f32.mrb[0].mxu0
      %v935 = vadd.f32 %v546, %v934
      %v936 = vpop.f32.mrb[0].mxu0
      %v937 = vadd.f32 %v548, %v936
      %938 = vmatprep.mubr.f32.mxu0 0.0
      %v939 = vand.u32 %v246, 4294901760
      %940 = vmatmul.mubr.f32.gmra.mrb[0].mxu0 %v939
      %v941 = vpop.f32.mrb[0].mxu0
      %v942 = vadd.f32 %v557, %v941
      %v943 = vpop.f32.mrb[0].mxu0
      %v944 = vadd.f32 %v559, %v943
      %945 = vmatprep.mubr.f32.mxu0 0.0
      %v946 = vand.u32 %v249, 4294901760
      %947 = vmatmul.mubr.f32.gmra.mrb[0].mxu0 %v946
      %v948 = vpop.f32.mrb[0].mxu0
      %v949 = vadd.f32 %v568, %v948
      %v950 = vpop.f32.mrb[0].mxu0
      %v951 = vadd.f32 %v570, %v950
      %952 = vmatprep.mubr.f32.mxu0 0.0
      %v953 = vand.u32 %v252, 4294901760
      %954 = vmatmul.mubr.f32.gmra.mrb[0].mxu0 %v953
      %v955 = vpop.f32.mrb[0].mxu0
      %v956 = vadd.f32 %v579, %v955
      %v957 = vpop.f32.mrb[0].mxu0
      %v958 = vadd.f32 %v581, %v957
      %959 = vmatprep.mubr.f32.mxu0 0.0
      %v960 = vand.u32 %v255, 4294901760
      %961 = vmatmul.mubr.f32.gmra.mrb[0].mxu0 %v960
      %v962 = vpop.f32.mrb[0].mxu0
      %v963 = vadd.f32 %v590, %v962
      %v964 = vpop.f32.mrb[0].mxu0
      %v965 = vadd.f32 %v592, %v964
      %966 = vmatprep.mubr.f32.mxu0 0.0
      %v967 = vand.u32 %v258, 4294901760
      %968 = vmatmul.mubr.f32.gmra.mrb[0].mxu0 %v967
      %v969 = vpop.f32.mrb[0].mxu0
      %v970 = vadd.f32 %v601, %v969
      %v971 = vpop.f32.mrb[0].mxu0
      %v972 = vadd.f32 %v603, %v971
      %973 = vmatprep.mubr.f32.mxu0 0.0
      %v974 = vand.u32 %v261, 4294901760
      %975 = vmatmul.mubr.f32.gmra.mrb[0].mxu0 %v974
      %v976 = vpop.f32.mrb[0].mxu0
      %v977 = vadd.f32 %v612, %v976
      %v978 = vpop.f32.mrb[0].mxu0
      %v979 = vadd.f32 %v614, %v978
      %980 = vmatprep.mubr.f32.mxu0 0.0
      %v981 = vand.u32 %v264, 4294901760
      %982 = vmatmul.mubr.f32.gmra.mrb[0].mxu0 %v981
      %v983 = vpop.f32.mrb[0].mxu0
      %v984 = vadd.f32 %v623, %v983
      %v985 = vpop.f32.mrb[0].mxu0
      %v986 = vadd.f32 %v625, %v985
      %987 = vmatprep.mubr.f32.mxu0 0.0
      %v988 = vand.u32 %v267, 4294901760
      %989 = vmatmul.mubr.f32.gmra.mrb[0].mxu0 %v988
      %v990 = vpop.f32.mrb[0].mxu0
      %v991 = vadd.f32 %v634, %v990
      %v992 = vpop.f32.mrb[0].mxu0
      %v993 = vadd.f32 %v636, %v992
      %994 = vmatprep.mubr.f32.mxu0 0.0
      %v995 = vand.u32 %v270, 4294901760
      %996 = vmatmul.mubr.f32.gmra.mrb[0].mxu0 %v995
      %v997 = vpop.f32.mrb[0].mxu0
      %v998 = vadd.f32 %v645, %v997
      %v999 = vpop.f32.mrb[0].mxu0
      %v1000 = vadd.f32 %v647, %v999
      %1001 = vmatprep.mubr.f32.mxu0 0.0
      %v1002 = vand.u32 %v273, 4294901760
      %1003 = vmatmul.mubr.f32.gmra.mrb[0].mxu0 %v1002
      %v1004 = vpop.f32.mrb[0].mxu0
      %v1005 = vadd.f32 %v656, %v1004
      %v1006 = vpop.f32.mrb[0].mxu0
      %v1007 = vadd.f32 %v658, %v1006
      %1008 = vmatprep.mubr.f32.mxu0 0.0
      %v1009 = vand.u32 %v276, 4294901760
      %1010 = vmatmul.mubr.f32.gmra.mrb[0].mxu0 %v1009
      %v1011 = vpop.f32.mrb[0].mxu0
      %v1012 = vadd.f32 %v667, %v1011
      %v1013 = vpop.f32.mrb[0].mxu0
      %v1014 = vadd.f32 %v669, %v1013
      %1015 = vmatprep.mubr.f32.mxu0 0.0
      %v1016 = vand.u32 %v279, 4294901760
      %1017 = vmatmul.mubr.f32.gmra.mrb[0].mxu0 %v1016
      %v1018 = vpop.f32.mrb[0].mxu0
      %v1019 = vadd.f32 %v678, %v1018
      %v1020 = vpop.f32.mrb[0].mxu0
      %v1021 = vadd.f32 %v680, %v1020
      %1022 = vmatprep.mubr.f32.mxu0 0.0
      %v1023 = vand.u32 %v282, 4294901760
      %1024 = vmatmul.mubr.f32.gmra.mrb[0].mxu0 %v1023
      %v1025 = vpop.f32.mrb[0].mxu0
      %v1026 = vadd.f32 %v689, %v1025
      %v1027 = vpop.f32.mrb[0].mxu0
      %v1028 = vadd.f32 %v691, %v1027
      %1029 = vmatprep.mubr.f32.mxu0 0.0
      %v1030 = vand.u32 %v285, 4294901760
      %1031 = vmatmul.mubr.f32.gmra.mrb[0].mxu0 %v1030
      %v1032 = vpop.f32.mrb[0].mxu0
      %v1033 = vadd.f32 %v700, %v1032
      %v1034 = vpop.f32.mrb[0].mxu0
      %v1035 = vadd.f32 %v702, %v1034
      %1036 = vmatprep.mubr.f32.mxu0 0.0
      %v1037 = vand.u32 %v288, 4294901760
      %1038 = vmatmul.mubr.f32.gmra.mrb[0].mxu0 %v1037
      %v1039 = vpop.f32.mrb[0].mxu0
      %v1040 = vadd.f32 %v711, %v1039
      %v1041 = vpop.f32.mrb[0].mxu0
      %v1042 = vadd.f32 %v713, %v1041
      %1043 = vdwg.mxu0
      %v1044 = vand.u32 %v182, 4294901760
      %v1045 = vsub.f32 %v182, %v1044
      %1046 = vmatprep.subr.mxu0 %v1045
      %v1047 = vand.u32 %v181, 4294901760
      %v1048 = vsub.f32 %v181, %v1047
      %1049 = vmatpush1.msra.mxu0 %v1048
      %v1050 = vand.u32 %v185, 4294901760
      %v1051 = vsub.f32 %v185, %v1050
      %1052 = vmatprep.subr.mxu0 %v1051
      %v1053 = vand.u32 %v184, 4294901760
      %v1054 = vsub.f32 %v184, %v1053
      %1055 = vmatpush1.msra.mxu0 %v1054
      %v1056 = vand.u32 %v188, 4294901760
      %v1057 = vsub.f32 %v188, %v1056
      %1058 = vmatprep.subr.mxu0 %v1057
      %v1059 = vand.u32 %v187, 4294901760
      %v1060 = vsub.f32 %v187, %v1059
      %1061 = vmatpush1.msra.mxu0 %v1060
      %v1062 = vand.u32 %v191, 4294901760
      %v1063 = vsub.f32 %v191, %v1062
      %1064 = vmatprep.subr.mxu0 %v1063
      %v1065 = vand.u32 %v190, 4294901760
      %v1066 = vsub.f32 %v190, %v1065
      %1067 = vmatpush1.msra.mxu0 %v1066
      %1068 = vmatprep.subr.mxu0 0.0
      %1069 = vmatpush1.msra.mxu0 0.0
      %1070 = vmatprep.subr.mxu0 0.0
      %1071 = vmatpush1.msra.mxu0 0.0
      %1072 = vmatprep.subr.mxu0 0.0
      %1073 = vmatpush1.msra.mxu0 0.0
      %1074 = vmatprep.subr.mxu0 0.0
      %1075 = vmatpush1.msra.mxu0 0.0
      %1076 = vmatprep.subr.mxu0 0.0
      %1077 = vmatpush1.msra.mxu0 0.0
      %1078 = vmatprep.subr.mxu0 0.0
      %1079 = vmatpush1.msra.mxu0 0.0
      %1080 = vmatprep.subr.mxu0 0.0
      %1081 = vmatpush1.msra.mxu0 0.0
      %1082 = vmatprep.subr.mxu0 0.0
      %1083 = vmatpush1.msra.mxu0 0.0
      %1084 = vmatprep.subr.mxu0 0.0
      %1085 = vmatpush1.msra.mxu0 0.0
      %1086 = vmatprep.subr.mxu0 0.0
      %1087 = vmatpush1.msra.mxu0 0.0
      %1088 = vmatprep.subr.mxu0 0.0
      %1089 = vmatpush1.msra.mxu0 0.0
      %1090 = vmatprep.subr.mxu0 0.0
      %1091 = vmatpush1.msra.mxu0 0.0
      %1092 = vmatprep.subr.mxu0 0.0
      %1093 = vmatpush1.msra.mxu0 0.0
      %1094 = vmatprep.subr.mxu0 0.0
      %1095 = vmatpush1.msra.mxu0 0.0
      %1096 = vmatprep.subr.mxu0 0.0
      %1097 = vmatpush1.msra.mxu0 0.0
      %1098 = vmatprep.subr.mxu0 0.0
      %1099 = vmatpush1.msra.mxu0 0.0
      %1100 = vmatprep.subr.mxu0 0.0
      %1101 = vmatpush1.msra.mxu0 0.0
      %1102 = vmatprep.subr.mxu0 0.0
      %1103 = vmatpush1.msra.mxu0 0.0
      %1104 = vmatprep.subr.mxu0 0.0
      %1105 = vmatpush1.msra.mxu0 0.0
      %1106 = vmatprep.subr.mxu0 0.0
      %1107 = vmatpush1.msra.mxu0 0.0
      %1108 = vmatprep.subr.mxu0 0.0
      %1109 = vmatpush1.msra.mxu0 0.0
      %1110 = vmatprep.subr.mxu0 0.0
      %1111 = vmatpush1.msra.mxu0 0.0
      %1112 = vmatprep.subr.mxu0 0.0
      %1113 = vmatpush1.msra.mxu0 0.0
      %1114 = vmatprep.subr.mxu0 0.0
      %1115 = vmatpush1.msra.mxu0 0.0
      %1116 = vmatprep.subr.mxu0 0.0
      %1117 = vmatpush1.msra.mxu0 0.0
      %1118 = vmatprep.subr.mxu0 0.0
      %1119 = vmatpush1.msra.mxu0 0.0
      %1120 = vmatprep.subr.mxu0 0.0
      %1121 = vmatpush1.msra.mxu0 0.0
      %1122 = vmatprep.subr.mxu0 0.0
      %1123 = vmatpush1.msra.mxu0 0.0
      %1124 = vmatprep.mubr.f32.mxu0 0.0
      %v1125 = vand.u32 %v195, 4294901760
      %v1126 = vsub.f32 %v195, %v1125
      %1127 = vmatmul.mubr.f32.gmra.mrb[0].mxu0 %v1126
      %v1128 = vpop.f32.mrb[0].mxu0
      %v1129 = vadd.f32 %v823, %v1128
      %v1130 = vpop.f32.mrb[0].mxu0
      %v1131 = vadd.f32 %v825, %v1130
      %1132 = vmatprep.mubr.f32.mxu0 0.0
      %v1133 = vand.u32 %v198, 4294901760
      %v1134 = vsub.f32 %v198, %v1133
      %1135 = vmatmul.mubr.f32.gmra.mrb[0].mxu0 %v1134
      %v1136 = vpop.f32.mrb[0].mxu0
      %v1137 = vadd.f32 %v830, %v1136
      %v1138 = vpop.f32.mrb[0].mxu0
      %v1139 = vadd.f32 %v832, %v1138
      %1140 = vmatprep.mubr.f32.mxu0 0.0
      %v1141 = vand.u32 %v201, 4294901760
      %v1142 = vsub.f32 %v201, %v1141
      %1143 = vmatmul.mubr.f32.gmra.mrb[0].mxu0 %v1142
      %v1144 = vpop.f32.mrb[0].mxu0
      %v1145 = vadd.f32 %v837, %v1144
      %v1146 = vpop.f32.mrb[0].mxu0
      %v1147 = vadd.f32 %v839, %v1146
      %1148 = vmatprep.mubr.f32.mxu0 0.0
      %v1149 = vand.u32 %v204, 4294901760
      %v1150 = vsub.f32 %v204, %v1149
      %1151 = vmatmul.mubr.f32.gmra.mrb[0].mxu0 %v1150
      %v1152 = vpop.f32.mrb[0].mxu0
      %v1153 = vadd.f32 %v844, %v1152
      %v1154 = vpop.f32.mrb[0].mxu0
      %v1155 = vadd.f32 %v846, %v1154
      %1156 = vmatprep.mubr.f32.mxu0 0.0
      %v1157 = vand.u32 %v207, 4294901760
      %v1158 = vsub.f32 %v207, %v1157
      %1159 = vmatmul.mubr.f32.gmra.mrb[0].mxu0 %v1158
      %v1160 = vpop.f32.mrb[0].mxu0
      %v1161 = vadd.f32 %v851, %v1160
      %v1162 = vpop.f32.mrb[0].mxu0
      %v1163 = vadd.f32 %v853, %v1162
      %1164 = vmatprep.mubr.f32.mxu0 0.0
      %v1165 = vand.u32 %v210, 4294901760
      %v1166 = vsub.f32 %v210, %v1165
      %1167 = vmatmul.mubr.f32.gmra.mrb[0].mxu0 %v1166
      %v1168 = vpop.f32.mrb[0].mxu0
      %v1169 = vadd.f32 %v858, %v1168
      %v1170 = vpop.f32.mrb[0].mxu0
      %v1171 = vadd.f32 %v860, %v1170
      %1172 = vmatprep.mubr.f32.mxu0 0.0
      %v1173 = vand.u32 %v213, 4294901760
      %v1174 = vsub.f32 %v213, %v1173
      %1175 = vmatmul.mubr.f32.gmra.mrb[0].mxu0 %v1174
      %v1176 = vpop.f32.mrb[0].mxu0
      %v1177 = vadd.f32 %v865, %v1176
      %v1178 = vpop.f32.mrb[0].mxu0
      %v1179 = vadd.f32 %v867, %v1178
      %1180 = vmatprep.mubr.f32.mxu0 0.0
      %v1181 = vand.u32 %v216, 4294901760
      %v1182 = vsub.f32 %v216, %v1181
      %1183 = vmatmul.mubr.f32.gmra.mrb[0].mxu0 %v1182
      %v1184 = vpop.f32.mrb[0].mxu0
      %v1185 = vadd.f32 %v872, %v1184
      %v1186 = vpop.f32.mrb[0].mxu0
      %v1187 = vadd.f32 %v874, %v1186
      %1188 = vmatprep.mubr.f32.mxu0 0.0
      %v1189 = vand.u32 %v219, 4294901760
      %v1190 = vsub.f32 %v219, %v1189
      %1191 = vmatmul.mubr.f32.gmra.mrb[0].mxu0 %v1190
      %v1192 = vpop.f32.mrb[0].mxu0
      %v1193 = vadd.f32 %v879, %v1192
      %v1194 = vpop.f32.mrb[0].mxu0
      %v1195 = vadd.f32 %v881, %v1194
      %1196 = vmatprep.mubr.f32.mxu0 0.0
      %v1197 = vand.u32 %v222, 4294901760
      %v1198 = vsub.f32 %v222, %v1197
      %1199 = vmatmul.mubr.f32.gmra.mrb[0].mxu0 %v1198
      %v1200 = vpop.f32.mrb[0].mxu0
      %v1201 = vadd.f32 %v886, %v1200
      %v1202 = vpop.f32.mrb[0].mxu0
      %v1203 = vadd.f32 %v888, %v1202
      %1204 = vmatprep.mubr.f32.mxu0 0.0
      %v1205 = vand.u32 %v225, 4294901760
      %v1206 = vsub.f32 %v225, %v1205
      %1207 = vmatmul.mubr.f32.gmra.mrb[0].mxu0 %v1206
      %v1208 = vpop.f32.mrb[0].mxu0
      %v1209 = vadd.f32 %v893, %v1208
      %v1210 = vpop.f32.mrb[0].mxu0
      %v1211 = vadd.f32 %v895, %v1210
      %1212 = vmatprep.mubr.f32.mxu0 0.0
      %v1213 = vand.u32 %v228, 4294901760
      %v1214 = vsub.f32 %v228, %v1213
      %1215 = vmatmul.mubr.f32.gmra.mrb[0].mxu0 %v1214
      %v1216 = vpop.f32.mrb[0].mxu0
      %v1217 = vadd.f32 %v900, %v1216
      %v1218 = vpop.f32.mrb[0].mxu0
      %v1219 = vadd.f32 %v902, %v1218
      %1220 = vmatprep.mubr.f32.mxu0 0.0
      %v1221 = vand.u32 %v231, 4294901760
      %v1222 = vsub.f32 %v231, %v1221
      %1223 = vmatmul.mubr.f32.gmra.mrb[0].mxu0 %v1222
      %v1224 = vpop.f32.mrb[0].mxu0
      %v1225 = vadd.f32 %v907, %v1224
      %v1226 = vpop.f32.mrb[0].mxu0
      %v1227 = vadd.f32 %v909, %v1226
      %1228 = vmatprep.mubr.f32.mxu0 0.0
      %v1229 = vand.u32 %v234, 4294901760
      %v1230 = vsub.f32 %v234, %v1229
      %1231 = vmatmul.mubr.f32.gmra.mrb[0].mxu0 %v1230
      %v1232 = vpop.f32.mrb[0].mxu0
      %v1233 = vadd.f32 %v914, %v1232
      %v1234 = vpop.f32.mrb[0].mxu0
      %v1235 = vadd.f32 %v916, %v1234
      %1236 = vmatprep.mubr.f32.mxu0 0.0
      %v1237 = vand.u32 %v237, 4294901760
      %v1238 = vsub.f32 %v237, %v1237
      %1239 = vmatmul.mubr.f32.gmra.mrb[0].mxu0 %v1238
      %v1240 = vpop.f32.mrb[0].mxu0
      %v1241 = vadd.f32 %v921, %v1240
      %v1242 = vpop.f32.mrb[0].mxu0
      %v1243 = vadd.f32 %v923, %v1242
      %1244 = vmatprep.mubr.f32.mxu0 0.0
      %v1245 = vand.u32 %v240, 4294901760
      %v1246 = vsub.f32 %v240, %v1245
      %1247 = vmatmul.mubr.f32.gmra.mrb[0].mxu0 %v1246
      %v1248 = vpop.f32.mrb[0].mxu0
      %v1249 = vadd.f32 %v928, %v1248
      %v1250 = vpop.f32.mrb[0].mxu0
      %v1251 = vadd.f32 %v930, %v1250
      %1252 = vmatprep.mubr.f32.mxu0 0.0
      %v1253 = vand.u32 %v243, 4294901760
      %v1254 = vsub.f32 %v243, %v1253
      %1255 = vmatmul.mubr.f32.gmra.mrb[0].mxu0 %v1254
      %v1256 = vpop.f32.mrb[0].mxu0
      %v1257 = vadd.f32 %v935, %v1256
      %v1258 = vpop.f32.mrb[0].mxu0
      %v1259 = vadd.f32 %v937, %v1258
      %1260 = vmatprep.mubr.f32.mxu0 0.0
      %v1261 = vand.u32 %v246, 4294901760
      %v1262 = vsub.f32 %v246, %v1261
      %1263 = vmatmul.mubr.f32.gmra.mrb[0].mxu0 %v1262
      %v1264 = vpop.f32.mrb[0].mxu0
      %v1265 = vadd.f32 %v942, %v1264
      %v1266 = vpop.f32.mrb[0].mxu0
      %v1267 = vadd.f32 %v944, %v1266
      %1268 = vmatprep.mubr.f32.mxu0 0.0
      %v1269 = vand.u32 %v249, 4294901760
      %v1270 = vsub.f32 %v249, %v1269
      %1271 = vmatmul.mubr.f32.gmra.mrb[0].mxu0 %v1270
      %v1272 = vpop.f32.mrb[0].mxu0
      %v1273 = vadd.f32 %v949, %v1272
      %v1274 = vpop.f32.mrb[0].mxu0
      %v1275 = vadd.f32 %v951, %v1274
      %1276 = vmatprep.mubr.f32.mxu0 0.0
      %v1277 = vand.u32 %v252, 4294901760
      %v1278 = vsub.f32 %v252, %v1277
      %1279 = vmatmul.mubr.f32.gmra.mrb[0].mxu0 %v1278
      %v1280 = vpop.f32.mrb[0].mxu0
      %v1281 = vadd.f32 %v956, %v1280
      %v1282 = vpop.f32.mrb[0].mxu0
      %v1283 = vadd.f32 %v958, %v1282
      %1284 = vmatprep.mubr.f32.mxu0 0.0
      %v1285 = vand.u32 %v255, 4294901760
      %v1286 = vsub.f32 %v255, %v1285
      %1287 = vmatmul.mubr.f32.gmra.mrb[0].mxu0 %v1286
      %v1288 = vpop.f32.mrb[0].mxu0
      %v1289 = vadd.f32 %v963, %v1288
      %v1290 = vpop.f32.mrb[0].mxu0
      %v1291 = vadd.f32 %v965, %v1290
      %1292 = vmatprep.mubr.f32.mxu0 0.0
      %v1293 = vand.u32 %v258, 4294901760
      %v1294 = vsub.f32 %v258, %v1293
      %1295 = vmatmul.mubr.f32.gmra.mrb[0].mxu0 %v1294
      %v1296 = vpop.f32.mrb[0].mxu0
      %v1297 = vadd.f32 %v970, %v1296
      %v1298 = vpop.f32.mrb[0].mxu0
      %v1299 = vadd.f32 %v972, %v1298
      %1300 = vmatprep.mubr.f32.mxu0 0.0
      %v1301 = vand.u32 %v261, 4294901760
      %v1302 = vsub.f32 %v261, %v1301
      %1303 = vmatmul.mubr.f32.gmra.mrb[0].mxu0 %v1302
      %v1304 = vpop.f32.mrb[0].mxu0
      %v1305 = vadd.f32 %v977, %v1304
      %v1306 = vpop.f32.mrb[0].mxu0
      %v1307 = vadd.f32 %v979, %v1306
      %1308 = vmatprep.mubr.f32.mxu0 0.0
      %v1309 = vand.u32 %v264, 4294901760
      %v1310 = vsub.f32 %v264, %v1309
      %1311 = vmatmul.mubr.f32.gmra.mrb[0].mxu0 %v1310
      %v1312 = vpop.f32.mrb[0].mxu0
      %v1313 = vadd.f32 %v984, %v1312
      %v1314 = vpop.f32.mrb[0].mxu0
      %v1315 = vadd.f32 %v986, %v1314
      %1316 = vmatprep.mubr.f32.mxu0 0.0
      %v1317 = vand.u32 %v267, 4294901760
      %v1318 = vsub.f32 %v267, %v1317
      %1319 = vmatmul.mubr.f32.gmra.mrb[0].mxu0 %v1318
      %v1320 = vpop.f32.mrb[0].mxu0
      %v1321 = vadd.f32 %v991, %v1320
      %v1322 = vpop.f32.mrb[0].mxu0
      %v1323 = vadd.f32 %v993, %v1322
      %1324 = vmatprep.mubr.f32.mxu0 0.0
      %v1325 = vand.u32 %v270, 4294901760
      %v1326 = vsub.f32 %v270, %v1325
      %1327 = vmatmul.mubr.f32.gmra.mrb[0].mxu0 %v1326
      %v1328 = vpop.f32.mrb[0].mxu0
      %v1329 = vadd.f32 %v998, %v1328
      %v1330 = vpop.f32.mrb[0].mxu0
      %v1331 = vadd.f32 %v1000, %v1330
      %1332 = vmatprep.mubr.f32.mxu0 0.0
      %v1333 = vand.u32 %v273, 4294901760
      %v1334 = vsub.f32 %v273, %v1333
      %1335 = vmatmul.mubr.f32.gmra.mrb[0].mxu0 %v1334
      %v1336 = vpop.f32.mrb[0].mxu0
      %v1337 = vadd.f32 %v1005, %v1336
      %v1338 = vpop.f32.mrb[0].mxu0
      %v1339 = vadd.f32 %v1007, %v1338
      %1340 = vmatprep.mubr.f32.mxu0 0.0
      %v1341 = vand.u32 %v276, 4294901760
      %v1342 = vsub.f32 %v276, %v1341
      %1343 = vmatmul.mubr.f32.gmra.mrb[0].mxu0 %v1342
      %v1344 = vpop.f32.mrb[0].mxu0
      %v1345 = vadd.f32 %v1012, %v1344
      %v1346 = vpop.f32.mrb[0].mxu0
      %v1347 = vadd.f32 %v1014, %v1346
      %1348 = vmatprep.mubr.f32.mxu0 0.0
      %v1349 = vand.u32 %v279, 4294901760
      %v1350 = vsub.f32 %v279, %v1349
      %1351 = vmatmul.mubr.f32.gmra.mrb[0].mxu0 %v1350
      %v1352 = vpop.f32.mrb[0].mxu0
      %v1353 = vadd.f32 %v1019, %v1352
      %v1354 = vpop.f32.mrb[0].mxu0
      %v1355 = vadd.f32 %v1021, %v1354
      %1356 = vmatprep.mubr.f32.mxu0 0.0
      %v1357 = vand.u32 %v282, 4294901760
      %v1358 = vsub.f32 %v282, %v1357
      %1359 = vmatmul.mubr.f32.gmra.mrb[0].mxu0 %v1358
      %v1360 = vpop.f32.mrb[0].mxu0
      %v1361 = vadd.f32 %v1026, %v1360
      %v1362 = vpop.f32.mrb[0].mxu0
      %v1363 = vadd.f32 %v1028, %v1362
      %1364 = vmatprep.mubr.f32.mxu0 0.0
      %v1365 = vand.u32 %v285, 4294901760
      %v1366 = vsub.f32 %v285, %v1365
      %1367 = vmatmul.mubr.f32.gmra.mrb[0].mxu0 %v1366
      %v1368 = vpop.f32.mrb[0].mxu0
      %v1369 = vadd.f32 %v1033, %v1368
      %v1370 = vpop.f32.mrb[0].mxu0
      %v1371 = vadd.f32 %v1035, %v1370
      %1372 = vmatprep.mubr.f32.mxu0 0.0
      %v1373 = vand.u32 %v288, 4294901760
      %v1374 = vsub.f32 %v288, %v1373
      %1375 = vmatmul.mubr.f32.gmra.mrb[0].mxu0 %v1374
      %v1376 = vpop.f32.mrb[0].mxu0
      %v1377 = vadd.f32 %v1040, %v1376
      %v1378 = vpop.f32.mrb[0].mxu0
      %v1379 = vadd.f32 %v1042, %v1378
      %1380 = vdwg.mxu0
      %v1381 = vand.u32 %v182, 4294901760
      %1382 = vmatprep.subr.mxu0 %v1381
      %v1383 = vand.u32 %v181, 4294901760
      %1384 = vmatpush1.msra.mxu0 %v1383
      %v1385 = vand.u32 %v185, 4294901760
      %1386 = vmatprep.subr.mxu0 %v1385
      %v1387 = vand.u32 %v184, 4294901760
      %1388 = vmatpush1.msra.mxu0 %v1387
      %v1389 = vand.u32 %v188, 4294901760
      %1390 = vmatprep.subr.mxu0 %v1389
      %v1391 = vand.u32 %v187, 4294901760
      %1392 = vmatpush1.msra.mxu0 %v1391
      %v1393 = vand.u32 %v191, 4294901760
      %1394 = vmatprep.subr.mxu0 %v1393
      %v1395 = vand.u32 %v190, 4294901760
      %1396 = vmatpush1.msra.mxu0 %v1395
      %1397 = vmatprep.subr.mxu0 0.0
      %1398 = vmatpush1.msra.mxu0 0.0
      %1399 = vmatprep.subr.mxu0 0.0
      %1400 = vmatpush1.msra.mxu0 0.0
      %1401 = vmatprep.subr.mxu0 0.0
      %1402 = vmatpush1.msra.mxu0 0.0
      %1403 = vmatprep.subr.mxu0 0.0
      %1404 = vmatpush1.msra.mxu0 0.0
      %1405 = vmatprep.subr.mxu0 0.0
      %1406 = vmatpush1.msra.mxu0 0.0
      %1407 = vmatprep.subr.mxu0 0.0
      %1408 = vmatpush1.msra.mxu0 0.0
      %1409 = vmatprep.subr.mxu0 0.0
      %1410 = vmatpush1.msra.mxu0 0.0
      %1411 = vmatprep.subr.mxu0 0.0
      %1412 = vmatpush1.msra.mxu0 0.0
      %1413 = vmatprep.subr.mxu0 0.0
      %1414 = vmatpush1.msra.mxu0 0.0
      %1415 = vmatprep.subr.mxu0 0.0
      %1416 = vmatpush1.msra.mxu0 0.0
      %1417 = vmatprep.subr.mxu0 0.0
      %1418 = vmatpush1.msra.mxu0 0.0
      %1419 = vmatprep.subr.mxu0 0.0
      %1420 = vmatpush1.msra.mxu0 0.0
      %1421 = vmatprep.subr.mxu0 0.0
      %1422 = vmatpush1.msra.mxu0 0.0
      %1423 = vmatprep.subr.mxu0 0.0
      %1424 = vmatpush1.msra.mxu0 0.0
      %1425 = vmatprep.subr.mxu0 0.0
      %1426 = vmatpush1.msra.mxu0 0.0
      %1427 = vmatprep.subr.mxu0 0.0
      %1428 = vmatpush1.msra.mxu0 0.0
      %1429 = vmatprep.subr.mxu0 0.0
      %1430 = vmatpush1.msra.mxu0 0.0
      %1431 = vmatprep.subr.mxu0 0.0
      %1432 = vmatpush1.msra.mxu0 0.0
      %1433 = vmatprep.subr.mxu0 0.0
      %1434 = vmatpush1.msra.mxu0 0.0
      %1435 = vmatprep.subr.mxu0 0.0
      %1436 = vmatpush1.msra.mxu0 0.0
      %1437 = vmatprep.subr.mxu0 0.0
      %1438 = vmatpush1.msra.mxu0 0.0
      %1439 = vmatprep.subr.mxu0 0.0
      %1440 = vmatpush1.msra.mxu0 0.0
      %1441 = vmatprep.subr.mxu0 0.0
      %1442 = vmatpush1.msra.mxu0 0.0
      %1443 = vmatprep.subr.mxu0 0.0
      %1444 = vmatpush1.msra.mxu0 0.0
      %1445 = vmatprep.subr.mxu0 0.0
      %1446 = vmatpush1.msra.mxu0 0.0
      %1447 = vmatprep.subr.mxu0 0.0
      %1448 = vmatpush1.msra.mxu0 0.0
      %1449 = vmatprep.subr.mxu0 0.0
      %1450 = vmatpush1.msra.mxu0 0.0
      %1451 = vmatprep.subr.mxu0 0.0
      %1452 = vmatpush1.msra.mxu0 0.0
      %1453 = vmatprep.mubr.f32.mxu0 0.0
      %v1454 = vand.u32 %v195, 4294901760
      %v1455 = vsub.f32 %v195, %v1454
      %v1456 = vand.u32 %v1455, 4294901760
      %1457 = vmatmul.mubr.f32.gmra.mrb[0].mxu0 %v1456
      %v1458 = vpop.f32.mrb[0].mxu0
      %v1459 = vadd.f32 %v1129, %v1458
      %v1460 = vpop.f32.mrb[0].mxu0
      %v1461 = vadd.f32 %v1131, %v1460
      %1462 = vmatprep.mubr.f32.mxu0 0.0
      %v1463 = vand.u32 %v198, 4294901760
      %v1464 = vsub.f32 %v198, %v1463
      %v1465 = vand.u32 %v1464, 4294901760
      %1466 = vmatmul.mubr.f32.gmra.mrb[0].mxu0 %v1465
      %v1467 = vpop.f32.mrb[0].mxu0
      %v1468 = vadd.f32 %v1137, %v1467
      %v1469 = vpop.f32.mrb[0].mxu0
      %v1470 = vadd.f32 %v1139, %v1469
      %1471 = vmatprep.mubr.f32.mxu0 0.0
      %v1472 = vand.u32 %v201, 4294901760
      %v1473 = vsub.f32 %v201, %v1472
      %v1474 = vand.u32 %v1473, 4294901760
      %1475 = vmatmul.mubr.f32.gmra.mrb[0].mxu0 %v1474
      %v1476 = vpop.f32.mrb[0].mxu0
      %v1477 = vadd.f32 %v1145, %v1476
      %v1478 = vpop.f32.mrb[0].mxu0
      %v1479 = vadd.f32 %v1147, %v1478
      %1480 = vmatprep.mubr.f32.mxu0 0.0
      %v1481 = vand.u32 %v204, 4294901760
      %v1482 = vsub.f32 %v204, %v1481
      %v1483 = vand.u32 %v1482, 4294901760
      %1484 = vmatmul.mubr.f32.gmra.mrb[0].mxu0 %v1483
      %v1485 = vpop.f32.mrb[0].mxu0
      %v1486 = vadd.f32 %v1153, %v1485
      %v1487 = vpop.f32.mrb[0].mxu0
      %v1488 = vadd.f32 %v1155, %v1487
      %1489 = vmatprep.mubr.f32.mxu0 0.0
      %v1490 = vand.u32 %v207, 4294901760
      %v1491 = vsub.f32 %v207, %v1490
      %v1492 = vand.u32 %v1491, 4294901760
      %1493 = vmatmul.mubr.f32.gmra.mrb[0].mxu0 %v1492
      %v1494 = vpop.f32.mrb[0].mxu0
      %v1495 = vadd.f32 %v1161, %v1494
      %v1496 = vpop.f32.mrb[0].mxu0
      %v1497 = vadd.f32 %v1163, %v1496
      %1498 = vmatprep.mubr.f32.mxu0 0.0
      %v1499 = vand.u32 %v210, 4294901760
      %v1500 = vsub.f32 %v210, %v1499
      %v1501 = vand.u32 %v1500, 4294901760
      %1502 = vmatmul.mubr.f32.gmra.mrb[0].mxu0 %v1501
      %v1503 = vpop.f32.mrb[0].mxu0
      %v1504 = vadd.f32 %v1169, %v1503
      %v1505 = vpop.f32.mrb[0].mxu0
      %v1506 = vadd.f32 %v1171, %v1505
      %1507 = vmatprep.mubr.f32.mxu0 0.0
      %v1508 = vand.u32 %v213, 4294901760
      %v1509 = vsub.f32 %v213, %v1508
      %v1510 = vand.u32 %v1509, 4294901760
      %1511 = vmatmul.mubr.f32.gmra.mrb[0].mxu0 %v1510
      %v1512 = vpop.f32.mrb[0].mxu0
      %v1513 = vadd.f32 %v1177, %v1512
      %v1514 = vpop.f32.mrb[0].mxu0
      %v1515 = vadd.f32 %v1179, %v1514
      %1516 = vmatprep.mubr.f32.mxu0 0.0
      %v1517 = vand.u32 %v216, 4294901760
      %v1518 = vsub.f32 %v216, %v1517
      %v1519 = vand.u32 %v1518, 4294901760
      %1520 = vmatmul.mubr.f32.gmra.mrb[0].mxu0 %v1519
      %v1521 = vpop.f32.mrb[0].mxu0
      %v1522 = vadd.f32 %v1185, %v1521
      %v1523 = vpop.f32.mrb[0].mxu0
      %v1524 = vadd.f32 %v1187, %v1523
      %1525 = vmatprep.mubr.f32.mxu0 0.0
      %v1526 = vand.u32 %v219, 4294901760
      %v1527 = vsub.f32 %v219, %v1526
      %v1528 = vand.u32 %v1527, 4294901760
      %1529 = vmatmul.mubr.f32.gmra.mrb[0].mxu0 %v1528
      %v1530 = vpop.f32.mrb[0].mxu0
      %v1531 = vadd.f32 %v1193, %v1530
      %v1532 = vpop.f32.mrb[0].mxu0
      %v1533 = vadd.f32 %v1195, %v1532
      %1534 = vmatprep.mubr.f32.mxu0 0.0
      %v1535 = vand.u32 %v222, 4294901760
      %v1536 = vsub.f32 %v222, %v1535
      %v1537 = vand.u32 %v1536, 4294901760
      %1538 = vmatmul.mubr.f32.gmra.mrb[0].mxu0 %v1537
      %v1539 = vpop.f32.mrb[0].mxu0
      %v1540 = vadd.f32 %v1201, %v1539
      %v1541 = vpop.f32.mrb[0].mxu0
      %v1542 = vadd.f32 %v1203, %v1541
      %1543 = vmatprep.mubr.f32.mxu0 0.0
      %v1544 = vand.u32 %v225, 4294901760
      %v1545 = vsub.f32 %v225, %v1544
      %v1546 = vand.u32 %v1545, 4294901760
      %1547 = vmatmul.mubr.f32.gmra.mrb[0].mxu0 %v1546
      %v1548 = vpop.f32.mrb[0].mxu0
      %v1549 = vadd.f32 %v1209, %v1548
      %v1550 = vpop.f32.mrb[0].mxu0
      %v1551 = vadd.f32 %v1211, %v1550
      %1552 = vmatprep.mubr.f32.mxu0 0.0
      %v1553 = vand.u32 %v228, 4294901760
      %v1554 = vsub.f32 %v228, %v1553
      %v1555 = vand.u32 %v1554, 4294901760
      %1556 = vmatmul.mubr.f32.gmra.mrb[0].mxu0 %v1555
      %v1557 = vpop.f32.mrb[0].mxu0
      %v1558 = vadd.f32 %v1217, %v1557
      %v1559 = vpop.f32.mrb[0].mxu0
      %v1560 = vadd.f32 %v1219, %v1559
      %1561 = vmatprep.mubr.f32.mxu0 0.0
      %v1562 = vand.u32 %v231, 4294901760
      %v1563 = vsub.f32 %v231, %v1562
      %v1564 = vand.u32 %v1563, 4294901760
      %1565 = vmatmul.mubr.f32.gmra.mrb[0].mxu0 %v1564
      %v1566 = vpop.f32.mrb[0].mxu0
      %v1567 = vadd.f32 %v1225, %v1566
      %v1568 = vpop.f32.mrb[0].mxu0
      %v1569 = vadd.f32 %v1227, %v1568
      %1570 = vmatprep.mubr.f32.mxu0 0.0
      %v1571 = vand.u32 %v234, 4294901760
      %v1572 = vsub.f32 %v234, %v1571
      %v1573 = vand.u32 %v1572, 4294901760
      %1574 = vmatmul.mubr.f32.gmra.mrb[0].mxu0 %v1573
      %v1575 = vpop.f32.mrb[0].mxu0
      %v1576 = vadd.f32 %v1233, %v1575
      %v1577 = vpop.f32.mrb[0].mxu0
      %v1578 = vadd.f32 %v1235, %v1577
      %1579 = vmatprep.mubr.f32.mxu0 0.0
      %v1580 = vand.u32 %v237, 4294901760
      %v1581 = vsub.f32 %v237, %v1580
      %v1582 = vand.u32 %v1581, 4294901760
      %1583 = vmatmul.mubr.f32.gmra.mrb[0].mxu0 %v1582
      %v1584 = vpop.f32.mrb[0].mxu0
      %v1585 = vadd.f32 %v1241, %v1584
      %v1586 = vpop.f32.mrb[0].mxu0
      %v1587 = vadd.f32 %v1243, %v1586
      %1588 = vmatprep.mubr.f32.mxu0 0.0
      %v1589 = vand.u32 %v240, 4294901760
      %v1590 = vsub.f32 %v240, %v1589
      %v1591 = vand.u32 %v1590, 4294901760
      %1592 = vmatmul.mubr.f32.gmra.mrb[0].mxu0 %v1591
      %v1593 = vpop.f32.mrb[0].mxu0
      %v1594 = vadd.f32 %v1249, %v1593
      %v1595 = vpop.f32.mrb[0].mxu0
      %v1596 = vadd.f32 %v1251, %v1595
      %1597 = vmatprep.mubr.f32.mxu0 0.0
      %v1598 = vand.u32 %v243, 4294901760
      %v1599 = vsub.f32 %v243, %v1598
      %v1600 = vand.u32 %v1599, 4294901760
      %1601 = vmatmul.mubr.f32.gmra.mrb[0].mxu0 %v1600
      %v1602 = vpop.f32.mrb[0].mxu0
      %v1603 = vadd.f32 %v1257, %v1602
      %v1604 = vpop.f32.mrb[0].mxu0
      %v1605 = vadd.f32 %v1259, %v1604
      %1606 = vmatprep.mubr.f32.mxu0 0.0
      %v1607 = vand.u32 %v246, 4294901760
      %v1608 = vsub.f32 %v246, %v1607
      %v1609 = vand.u32 %v1608, 4294901760
      %1610 = vmatmul.mubr.f32.gmra.mrb[0].mxu0 %v1609
      %v1611 = vpop.f32.mrb[0].mxu0
      %v1612 = vadd.f32 %v1265, %v1611
      %v1613 = vpop.f32.mrb[0].mxu0
      %v1614 = vadd.f32 %v1267, %v1613
      %1615 = vmatprep.mubr.f32.mxu0 0.0
      %v1616 = vand.u32 %v249, 4294901760
      %v1617 = vsub.f32 %v249, %v1616
      %v1618 = vand.u32 %v1617, 4294901760
      %1619 = vmatmul.mubr.f32.gmra.mrb[0].mxu0 %v1618
      %v1620 = vpop.f32.mrb[0].mxu0
      %v1621 = vadd.f32 %v1273, %v1620
      %v1622 = vpop.f32.mrb[0].mxu0
      %v1623 = vadd.f32 %v1275, %v1622
      %1624 = vmatprep.mubr.f32.mxu0 0.0
      %v1625 = vand.u32 %v252, 4294901760
      %v1626 = vsub.f32 %v252, %v1625
      %v1627 = vand.u32 %v1626, 4294901760
      %1628 = vmatmul.mubr.f32.gmra.mrb[0].mxu0 %v1627
      %v1629 = vpop.f32.mrb[0].mxu0
      %v1630 = vadd.f32 %v1281, %v1629
      %v1631 = vpop.f32.mrb[0].mxu0
      %v1632 = vadd.f32 %v1283, %v1631
      %1633 = vmatprep.mubr.f32.mxu0 0.0
      %v1634 = vand.u32 %v255, 4294901760
      %v1635 = vsub.f32 %v255, %v1634
      %v1636 = vand.u32 %v1635, 4294901760
      %1637 = vmatmul.mubr.f32.gmra.mrb[0].mxu0 %v1636
      %v1638 = vpop.f32.mrb[0].mxu0
      %v1639 = vadd.f32 %v1289, %v1638
      %v1640 = vpop.f32.mrb[0].mxu0
      %v1641 = vadd.f32 %v1291, %v1640
      %1642 = vmatprep.mubr.f32.mxu0 0.0
      %v1643 = vand.u32 %v258, 4294901760
      %v1644 = vsub.f32 %v258, %v1643
      %v1645 = vand.u32 %v1644, 4294901760
      %1646 = vmatmul.mubr.f32.gmra.mrb[0].mxu0 %v1645
      %v1647 = vpop.f32.mrb[0].mxu0
      %v1648 = vadd.f32 %v1297, %v1647
      %v1649 = vpop.f32.mrb[0].mxu0
      %v1650 = vadd.f32 %v1299, %v1649
      %1651 = vmatprep.mubr.f32.mxu0 0.0
      %v1652 = vand.u32 %v261, 4294901760
      %v1653 = vsub.f32 %v261, %v1652
      %v1654 = vand.u32 %v1653, 4294901760
      %1655 = vmatmul.mubr.f32.gmra.mrb[0].mxu0 %v1654
      %v1656 = vpop.f32.mrb[0].mxu0
      %v1657 = vadd.f32 %v1305, %v1656
      %v1658 = vpop.f32.mrb[0].mxu0
      %v1659 = vadd.f32 %v1307, %v1658
      %1660 = vmatprep.mubr.f32.mxu0 0.0
      %v1661 = vand.u32 %v264, 4294901760
      %v1662 = vsub.f32 %v264, %v1661
      %v1663 = vand.u32 %v1662, 4294901760
      %1664 = vmatmul.mubr.f32.gmra.mrb[0].mxu0 %v1663
      %v1665 = vpop.f32.mrb[0].mxu0
      %v1666 = vadd.f32 %v1313, %v1665
      %v1667 = vpop.f32.mrb[0].mxu0
      %v1668 = vadd.f32 %v1315, %v1667
      %1669 = vmatprep.mubr.f32.mxu0 0.0
      %v1670 = vand.u32 %v267, 4294901760
      %v1671 = vsub.f32 %v267, %v1670
      %v1672 = vand.u32 %v1671, 4294901760
      %1673 = vmatmul.mubr.f32.gmra.mrb[0].mxu0 %v1672
      %v1674 = vpop.f32.mrb[0].mxu0
      %v1675 = vadd.f32 %v1321, %v1674
      %v1676 = vpop.f32.mrb[0].mxu0
      %v1677 = vadd.f32 %v1323, %v1676
      %1678 = vmatprep.mubr.f32.mxu0 0.0
      %v1679 = vand.u32 %v270, 4294901760
      %v1680 = vsub.f32 %v270, %v1679
      %v1681 = vand.u32 %v1680, 4294901760
      %1682 = vmatmul.mubr.f32.gmra.mrb[0].mxu0 %v1681
      %v1683 = vpop.f32.mrb[0].mxu0
      %v1684 = vadd.f32 %v1329, %v1683
      %v1685 = vpop.f32.mrb[0].mxu0
      %v1686 = vadd.f32 %v1331, %v1685
      %1687 = vmatprep.mubr.f32.mxu0 0.0
      %v1688 = vand.u32 %v273, 4294901760
      %v1689 = vsub.f32 %v273, %v1688
      %v1690 = vand.u32 %v1689, 4294901760
      %1691 = vmatmul.mubr.f32.gmra.mrb[0].mxu0 %v1690
      %v1692 = vpop.f32.mrb[0].mxu0
      %v1693 = vadd.f32 %v1337, %v1692
      %v1694 = vpop.f32.mrb[0].mxu0
      %v1695 = vadd.f32 %v1339, %v1694
      %1696 = vmatprep.mubr.f32.mxu0 0.0
      %v1697 = vand.u32 %v276, 4294901760
      %v1698 = vsub.f32 %v276, %v1697
      %v1699 = vand.u32 %v1698, 4294901760
      %1700 = vmatmul.mubr.f32.gmra.mrb[0].mxu0 %v1699
      %v1701 = vpop.f32.mrb[0].mxu0
      %v1702 = vadd.f32 %v1345, %v1701
      %v1703 = vpop.f32.mrb[0].mxu0
      %v1704 = vadd.f32 %v1347, %v1703
      %1705 = vmatprep.mubr.f32.mxu0 0.0
      %v1706 = vand.u32 %v279, 4294901760
      %v1707 = vsub.f32 %v279, %v1706
      %v1708 = vand.u32 %v1707, 4294901760
      %1709 = vmatmul.mubr.f32.gmra.mrb[0].mxu0 %v1708
      %v1710 = vpop.f32.mrb[0].mxu0
      %v1711 = vadd.f32 %v1353, %v1710
      %v1712 = vpop.f32.mrb[0].mxu0
      %v1713 = vadd.f32 %v1355, %v1712
      %1714 = vmatprep.mubr.f32.mxu0 0.0
      %v1715 = vand.u32 %v282, 4294901760
      %v1716 = vsub.f32 %v282, %v1715
      %v1717 = vand.u32 %v1716, 4294901760
      %1718 = vmatmul.mubr.f32.gmra.mrb[0].mxu0 %v1717
      %v1719 = vpop.f32.mrb[0].mxu0
      %v1720 = vadd.f32 %v1361, %v1719
      %v1721 = vpop.f32.mrb[0].mxu0
      %v1722 = vadd.f32 %v1363, %v1721
      %1723 = vmatprep.mubr.f32.mxu0 0.0
      %v1724 = vand.u32 %v285, 4294901760
      %v1725 = vsub.f32 %v285, %v1724
      %v1726 = vand.u32 %v1725, 4294901760
      %1727 = vmatmul.mubr.f32.gmra.mrb[0].mxu0 %v1726
      %v1728 = vpop.f32.mrb[0].mxu0
      %v1729 = vadd.f32 %v1369, %v1728
      %v1730 = vpop.f32.mrb[0].mxu0
      %v1731 = vadd.f32 %v1371, %v1730
      %1732 = vmatprep.mubr.f32.mxu0 0.0
      %v1733 = vand.u32 %v288, 4294901760
      %v1734 = vsub.f32 %v288, %v1733
      %v1735 = vand.u32 %v1734, 4294901760
      %1736 = vmatmul.mubr.f32.gmra.mrb[0].mxu0 %v1735
      %v1737 = vpop.f32.mrb[0].mxu0
      %v1738 = vadd.f32 %v1377, %v1737
      %v1739 = vpop.f32.mrb[0].mxu0
      %v1740 = vadd.f32 %v1379, %v1739
      %1741 = vdwg.mxu0
      %v1742 = vand.u32 %v182, 4294901760
      %v1743 = vsub.f32 %v182, %v1742
      %v1744 = vand.u32 %v1743, 4294901760
      %1745 = vmatprep.subr.mxu0 %v1744
      %v1746 = vand.u32 %v181, 4294901760
      %v1747 = vsub.f32 %v181, %v1746
      %v1748 = vand.u32 %v1747, 4294901760
      %1749 = vmatpush1.msra.mxu0 %v1748
      %v1750 = vand.u32 %v185, 4294901760
      %v1751 = vsub.f32 %v185, %v1750
      %v1752 = vand.u32 %v1751, 4294901760
      %1753 = vmatprep.subr.mxu0 %v1752
      %v1754 = vand.u32 %v184, 4294901760
      %v1755 = vsub.f32 %v184, %v1754
      %v1756 = vand.u32 %v1755, 4294901760
      %1757 = vmatpush1.msra.mxu0 %v1756
      %v1758 = vand.u32 %v188, 4294901760
      %v1759 = vsub.f32 %v188, %v1758
      %v1760 = vand.u32 %v1759, 4294901760
      %1761 = vmatprep.subr.mxu0 %v1760
      %v1762 = vand.u32 %v187, 4294901760
      %v1763 = vsub.f32 %v187, %v1762
      %v1764 = vand.u32 %v1763, 4294901760
      %1765 = vmatpush1.msra.mxu0 %v1764
      %v1766 = vand.u32 %v191, 4294901760
      %v1767 = vsub.f32 %v191, %v1766
      %v1768 = vand.u32 %v1767, 4294901760
      %1769 = vmatprep.subr.mxu0 %v1768
      %v1770 = vand.u32 %v190, 4294901760
      %v1771 = vsub.f32 %v190, %v1770
      %v1772 = vand.u32 %v1771, 4294901760
      %1773 = vmatpush1.msra.mxu0 %v1772
      %1774 = vmatprep.subr.mxu0 0.0
      %1775 = vmatpush1.msra.mxu0 0.0
      %1776 = vmatprep.subr.mxu0 0.0
      %1777 = vmatpush1.msra.mxu0 0.0
      %1778 = vmatprep.subr.mxu0 0.0
      %1779 = vmatpush1.msra.mxu0 0.0
      %1780 = vmatprep.subr.mxu0 0.0
      %1781 = vmatpush1.msra.mxu0 0.0
      %1782 = vmatprep.subr.mxu0 0.0
      %1783 = vmatpush1.msra.mxu0 0.0
      %1784 = vmatprep.subr.mxu0 0.0
      %1785 = vmatpush1.msra.mxu0 0.0
      %1786 = vmatprep.subr.mxu0 0.0
      %1787 = vmatpush1.msra.mxu0 0.0
      %1788 = vmatprep.subr.mxu0 0.0
      %1789 = vmatpush1.msra.mxu0 0.0
      %1790 = vmatprep.subr.mxu0 0.0
      %1791 = vmatpush1.msra.mxu0 0.0
      %1792 = vmatprep.subr.mxu0 0.0
      %1793 = vmatpush1.msra.mxu0 0.0
      %1794 = vmatprep.subr.mxu0 0.0
      %1795 = vmatpush1.msra.mxu0 0.0
      %1796 = vmatprep.subr.mxu0 0.0
      %1797 = vmatpush1.msra.mxu0 0.0
      %1798 = vmatprep.subr.mxu0 0.0
      %1799 = vmatpush1.msra.mxu0 0.0
      %1800 = vmatprep.subr.mxu0 0.0
      %1801 = vmatpush1.msra.mxu0 0.0
      %1802 = vmatprep.subr.mxu0 0.0
      %1803 = vmatpush1.msra.mxu0 0.0
      %1804 = vmatprep.subr.mxu0 0.0
      %1805 = vmatpush1.msra.mxu0 0.0
      %1806 = vmatprep.subr.mxu0 0.0
      %1807 = vmatpush1.msra.mxu0 0.0
      %1808 = vmatprep.subr.mxu0 0.0
      %1809 = vmatpush1.msra.mxu0 0.0
      %1810 = vmatprep.subr.mxu0 0.0
      %1811 = vmatpush1.msra.mxu0 0.0
      %1812 = vmatprep.subr.mxu0 0.0
      %1813 = vmatpush1.msra.mxu0 0.0
      %1814 = vmatprep.subr.mxu0 0.0
      %1815 = vmatpush1.msra.mxu0 0.0
      %1816 = vmatprep.subr.mxu0 0.0
      %1817 = vmatpush1.msra.mxu0 0.0
      %1818 = vmatprep.subr.mxu0 0.0
      %1819 = vmatpush1.msra.mxu0 0.0
      %1820 = vmatprep.subr.mxu0 0.0
      %1821 = vmatpush1.msra.mxu0 0.0
      %1822 = vmatprep.subr.mxu0 0.0
      %1823 = vmatpush1.msra.mxu0 0.0
      %1824 = vmatprep.subr.mxu0 0.0
      %1825 = vmatpush1.msra.mxu0 0.0
      %1826 = vmatprep.subr.mxu0 0.0
      %1827 = vmatpush1.msra.mxu0 0.0
      %1828 = vmatprep.subr.mxu0 0.0
      %1829 = vmatpush1.msra.mxu0 0.0
      %1830 = vmatprep.mubr.f32.mxu0 0.0
      %v1831 = vand.u32 %v195, 4294901760
      %1832 = vmatmul.mubr.f32.gmra.mrb[0].mxu0 %v1831
      %v1833 = vpop.f32.mrb[0].mxu0
      %v1834 = vadd.f32 %v1459, %v1833
      %v1835 = vpop.f32.mrb[0].mxu0
      %v1836 = vadd.f32 %v1461, %v1835
      %1837 = vmatprep.mubr.f32.mxu0 0.0
      %v1838 = vand.u32 %v198, 4294901760
      %1839 = vmatmul.mubr.f32.gmra.mrb[0].mxu0 %v1838
      %v1840 = vpop.f32.mrb[0].mxu0
      %v1841 = vadd.f32 %v1468, %v1840
      %v1842 = vpop.f32.mrb[0].mxu0
      %v1843 = vadd.f32 %v1470, %v1842
      %1844 = vmatprep.mubr.f32.mxu0 0.0
      %v1845 = vand.u32 %v201, 4294901760
      %1846 = vmatmul.mubr.f32.gmra.mrb[0].mxu0 %v1845
      %v1847 = vpop.f32.mrb[0].mxu0
      %v1848 = vadd.f32 %v1477, %v1847
      %v1849 = vpop.f32.mrb[0].mxu0
      %v1850 = vadd.f32 %v1479, %v1849
      %1851 = vmatprep.mubr.f32.mxu0 0.0
      %v1852 = vand.u32 %v204, 4294901760
      %1853 = vmatmul.mubr.f32.gmra.mrb[0].mxu0 %v1852
      %v1854 = vpop.f32.mrb[0].mxu0
      %v1855 = vadd.f32 %v1486, %v1854
      %v1856 = vpop.f32.mrb[0].mxu0
      %v1857 = vadd.f32 %v1488, %v1856
      %1858 = vmatprep.mubr.f32.mxu0 0.0
      %v1859 = vand.u32 %v207, 4294901760
      %1860 = vmatmul.mubr.f32.gmra.mrb[0].mxu0 %v1859
      %v1861 = vpop.f32.mrb[0].mxu0
      %v1862 = vadd.f32 %v1495, %v1861
      %v1863 = vpop.f32.mrb[0].mxu0
      %v1864 = vadd.f32 %v1497, %v1863
      %1865 = vmatprep.mubr.f32.mxu0 0.0
      %v1866 = vand.u32 %v210, 4294901760
      %1867 = vmatmul.mubr.f32.gmra.mrb[0].mxu0 %v1866
      %v1868 = vpop.f32.mrb[0].mxu0
      %v1869 = vadd.f32 %v1504, %v1868
      %v1870 = vpop.f32.mrb[0].mxu0
      %v1871 = vadd.f32 %v1506, %v1870
      %1872 = vmatprep.mubr.f32.mxu0 0.0
      %v1873 = vand.u32 %v213, 4294901760
      %1874 = vmatmul.mubr.f32.gmra.mrb[0].mxu0 %v1873
      %v1875 = vpop.f32.mrb[0].mxu0
      %v1876 = vadd.f32 %v1513, %v1875
      %v1877 = vpop.f32.mrb[0].mxu0
      %v1878 = vadd.f32 %v1515, %v1877
      %1879 = vmatprep.mubr.f32.mxu0 0.0
      %v1880 = vand.u32 %v216, 4294901760
      %1881 = vmatmul.mubr.f32.gmra.mrb[0].mxu0 %v1880
      %v1882 = vpop.f32.mrb[0].mxu0
      %v1883 = vadd.f32 %v1522, %v1882
      %v1884 = vpop.f32.mrb[0].mxu0
      %v1885 = vadd.f32 %v1524, %v1884
      %1886 = vmatprep.mubr.f32.mxu0 0.0
      %v1887 = vand.u32 %v219, 4294901760
      %1888 = vmatmul.mubr.f32.gmra.mrb[0].mxu0 %v1887
      %v1889 = vpop.f32.mrb[0].mxu0
      %v1890 = vadd.f32 %v1531, %v1889
      %v1891 = vpop.f32.mrb[0].mxu0
      %v1892 = vadd.f32 %v1533, %v1891
      %1893 = vmatprep.mubr.f32.mxu0 0.0
      %v1894 = vand.u32 %v222, 4294901760
      %1895 = vmatmul.mubr.f32.gmra.mrb[0].mxu0 %v1894
      %v1896 = vpop.f32.mrb[0].mxu0
      %v1897 = vadd.f32 %v1540, %v1896
      %v1898 = vpop.f32.mrb[0].mxu0
      %v1899 = vadd.f32 %v1542, %v1898
      %1900 = vmatprep.mubr.f32.mxu0 0.0
      %v1901 = vand.u32 %v225, 4294901760
      %1902 = vmatmul.mubr.f32.gmra.mrb[0].mxu0 %v1901
      %v1903 = vpop.f32.mrb[0].mxu0
      %v1904 = vadd.f32 %v1549, %v1903
      %v1905 = vpop.f32.mrb[0].mxu0
      %v1906 = vadd.f32 %v1551, %v1905
      %1907 = vmatprep.mubr.f32.mxu0 0.0
      %v1908 = vand.u32 %v228, 4294901760
      %1909 = vmatmul.mubr.f32.gmra.mrb[0].mxu0 %v1908
      %v1910 = vpop.f32.mrb[0].mxu0
      %v1911 = vadd.f32 %v1558, %v1910
      %v1912 = vpop.f32.mrb[0].mxu0
      %v1913 = vadd.f32 %v1560, %v1912
      %1914 = vmatprep.mubr.f32.mxu0 0.0
      %v1915 = vand.u32 %v231, 4294901760
      %1916 = vmatmul.mubr.f32.gmra.mrb[0].mxu0 %v1915
      %v1917 = vpop.f32.mrb[0].mxu0
      %v1918 = vadd.f32 %v1567, %v1917
      %v1919 = vpop.f32.mrb[0].mxu0
      %v1920 = vadd.f32 %v1569, %v1919
      %1921 = vmatprep.mubr.f32.mxu0 0.0
      %v1922 = vand.u32 %v234, 4294901760
      %1923 = vmatmul.mubr.f32.gmra.mrb[0].mxu0 %v1922
      %v1924 = vpop.f32.mrb[0].mxu0
      %v1925 = vadd.f32 %v1576, %v1924
      %v1926 = vpop.f32.mrb[0].mxu0
      %v1927 = vadd.f32 %v1578, %v1926
      %1928 = vmatprep.mubr.f32.mxu0 0.0
      %v1929 = vand.u32 %v237, 4294901760
      %1930 = vmatmul.mubr.f32.gmra.mrb[0].mxu0 %v1929
      %v1931 = vpop.f32.mrb[0].mxu0
      %v1932 = vadd.f32 %v1585, %v1931
      %v1933 = vpop.f32.mrb[0].mxu0
      %v1934 = vadd.f32 %v1587, %v1933
      %1935 = vmatprep.mubr.f32.mxu0 0.0
      %v1936 = vand.u32 %v240, 4294901760
      %1937 = vmatmul.mubr.f32.gmra.mrb[0].mxu0 %v1936
      %v1938 = vpop.f32.mrb[0].mxu0
      %v1939 = vadd.f32 %v1594, %v1938
      %v1940 = vpop.f32.mrb[0].mxu0
      %v1941 = vadd.f32 %v1596, %v1940
      %1942 = vmatprep.mubr.f32.mxu0 0.0
      %v1943 = vand.u32 %v243, 4294901760
      %1944 = vmatmul.mubr.f32.gmra.mrb[0].mxu0 %v1943
      %v1945 = vpop.f32.mrb[0].mxu0
      %v1946 = vadd.f32 %v1603, %v1945
      %v1947 = vpop.f32.mrb[0].mxu0
      %v1948 = vadd.f32 %v1605, %v1947
      %1949 = vmatprep.mubr.f32.mxu0 0.0
      %v1950 = vand.u32 %v246, 4294901760
      %1951 = vmatmul.mubr.f32.gmra.mrb[0].mxu0 %v1950
      %v1952 = vpop.f32.mrb[0].mxu0
      %v1953 = vadd.f32 %v1612, %v1952
      %v1954 = vpop.f32.mrb[0].mxu0
      %v1955 = vadd.f32 %v1614, %v1954
      %1956 = vmatprep.mubr.f32.mxu0 0.0
      %v1957 = vand.u32 %v249, 4294901760
      %1958 = vmatmul.mubr.f32.gmra.mrb[0].mxu0 %v1957
      %v1959 = vpop.f32.mrb[0].mxu0
      %v1960 = vadd.f32 %v1621, %v1959
      %v1961 = vpop.f32.mrb[0].mxu0
      %v1962 = vadd.f32 %v1623, %v1961
      %1963 = vmatprep.mubr.f32.mxu0 0.0
      %v1964 = vand.u32 %v252, 4294901760
      %1965 = vmatmul.mubr.f32.gmra.mrb[0].mxu0 %v1964
      %v1966 = vpop.f32.mrb[0].mxu0
      %v1967 = vadd.f32 %v1630, %v1966
      %v1968 = vpop.f32.mrb[0].mxu0
      %v1969 = vadd.f32 %v1632, %v1968
      %1970 = vmatprep.mubr.f32.mxu0 0.0
      %v1971 = vand.u32 %v255, 4294901760
      %1972 = vmatmul.mubr.f32.gmra.mrb[0].mxu0 %v1971
      %v1973 = vpop.f32.mrb[0].mxu0
      %v1974 = vadd.f32 %v1639, %v1973
      %v1975 = vpop.f32.mrb[0].mxu0
      %v1976 = vadd.f32 %v1641, %v1975
      %1977 = vmatprep.mubr.f32.mxu0 0.0
      %v1978 = vand.u32 %v258, 4294901760
      %1979 = vmatmul.mubr.f32.gmra.mrb[0].mxu0 %v1978
      %v1980 = vpop.f32.mrb[0].mxu0
      %v1981 = vadd.f32 %v1648, %v1980
      %v1982 = vpop.f32.mrb[0].mxu0
      %v1983 = vadd.f32 %v1650, %v1982
      %1984 = vmatprep.mubr.f32.mxu0 0.0
      %v1985 = vand.u32 %v261, 4294901760
      %1986 = vmatmul.mubr.f32.gmra.mrb[0].mxu0 %v1985
      %v1987 = vpop.f32.mrb[0].mxu0
      %v1988 = vadd.f32 %v1657, %v1987
      %v1989 = vpop.f32.mrb[0].mxu0
      %v1990 = vadd.f32 %v1659, %v1989
      %1991 = vmatprep.mubr.f32.mxu0 0.0
      %v1992 = vand.u32 %v264, 4294901760
      %1993 = vmatmul.mubr.f32.gmra.mrb[0].mxu0 %v1992
      %v1994 = vpop.f32.mrb[0].mxu0
      %v1995 = vadd.f32 %v1666, %v1994
      %v1996 = vpop.f32.mrb[0].mxu0
      %v1997 = vadd.f32 %v1668, %v1996
      %1998 = vmatprep.mubr.f32.mxu0 0.0
      %v1999 = vand.u32 %v267, 4294901760
      %2000 = vmatmul.mubr.f32.gmra.mrb[0].mxu0 %v1999
      %v2001 = vpop.f32.mrb[0].mxu0
      %v2002 = vadd.f32 %v1675, %v2001
      %v2003 = vpop.f32.mrb[0].mxu0
      %v2004 = vadd.f32 %v1677, %v2003
      %2005 = vmatprep.mubr.f32.mxu0 0.0
      %v2006 = vand.u32 %v270, 4294901760
      %2007 = vmatmul.mubr.f32.gmra.mrb[0].mxu0 %v2006
      %v2008 = vpop.f32.mrb[0].mxu0
      %v2009 = vadd.f32 %v1684, %v2008
      %v2010 = vpop.f32.mrb[0].mxu0
      %v2011 = vadd.f32 %v1686, %v2010
      %2012 = vmatprep.mubr.f32.mxu0 0.0
      %v2013 = vand.u32 %v273, 4294901760
      %2014 = vmatmul.mubr.f32.gmra.mrb[0].mxu0 %v2013
      %v2015 = vpop.f32.mrb[0].mxu0
      %v2016 = vadd.f32 %v1693, %v2015
      %v2017 = vpop.f32.mrb[0].mxu0
      %v2018 = vadd.f32 %v1695, %v2017
      %2019 = vmatprep.mubr.f32.mxu0 0.0
      %v2020 = vand.u32 %v276, 4294901760
      %2021 = vmatmul.mubr.f32.gmra.mrb[0].mxu0 %v2020
      %v2022 = vpop.f32.mrb[0].mxu0
      %v2023 = vadd.f32 %v1702, %v2022
      %v2024 = vpop.f32.mrb[0].mxu0
      %v2025 = vadd.f32 %v1704, %v2024
      %2026 = vmatprep.mubr.f32.mxu0 0.0
      %v2027 = vand.u32 %v279, 4294901760
      %2028 = vmatmul.mubr.f32.gmra.mrb[0].mxu0 %v2027
      %v2029 = vpop.f32.mrb[0].mxu0
      %v2030 = vadd.f32 %v1711, %v2029
      %v2031 = vpop.f32.mrb[0].mxu0
      %v2032 = vadd.f32 %v1713, %v2031
      %2033 = vmatprep.mubr.f32.mxu0 0.0
      %v2034 = vand.u32 %v282, 4294901760
      %2035 = vmatmul.mubr.f32.gmra.mrb[0].mxu0 %v2034
      %v2036 = vpop.f32.mrb[0].mxu0
      %v2037 = vadd.f32 %v1720, %v2036
      %v2038 = vpop.f32.mrb[0].mxu0
      %v2039 = vadd.f32 %v1722, %v2038
      %2040 = vmatprep.mubr.f32.mxu0 0.0
      %v2041 = vand.u32 %v285, 4294901760
      %2042 = vmatmul.mubr.f32.gmra.mrb[0].mxu0 %v2041
      %v2043 = vpop.f32.mrb[0].mxu0
      %v2044 = vadd.f32 %v1729, %v2043
      %v2045 = vpop.f32.mrb[0].mxu0
      %v2046 = vadd.f32 %v1731, %v2045
      %2047 = vmatprep.mubr.f32.mxu0 0.0
      %v2048 = vand.u32 %v288, 4294901760
      %2049 = vmatmul.mubr.f32.gmra.mrb[0].mxu0 %v2048
      %v2050 = vpop.f32.mrb[0].mxu0
      %v2051 = vadd.f32 %v1738, %v2050
      %v2052 = vpop.f32.mrb[0].mxu0
      %v2053 = vadd.f32 %v1740, %v2052
      %2054 = vdwg.mxu0
      %v2055 = vand.u32 %v182, 4294901760
      %2056 = vmatprep.subr.mxu0 %v2055
      %v2057 = vand.u32 %v181, 4294901760
      %2058 = vmatpush1.msra.mxu0 %v2057
      %v2059 = vand.u32 %v185, 4294901760
      %2060 = vmatprep.subr.mxu0 %v2059
      %v2061 = vand.u32 %v184, 4294901760
      %2062 = vmatpush1.msra.mxu0 %v2061
      %v2063 = vand.u32 %v188, 4294901760
      %2064 = vmatprep.subr.mxu0 %v2063
      %v2065 = vand.u32 %v187, 4294901760
      %2066 = vmatpush1.msra.mxu0 %v2065
      %v2067 = vand.u32 %v191, 4294901760
      %2068 = vmatprep.subr.mxu0 %v2067
      %v2069 = vand.u32 %v190, 4294901760
      %2070 = vmatpush1.msra.mxu0 %v2069
      %2071 = vmatprep.subr.mxu0 0.0
      %2072 = vmatpush1.msra.mxu0 0.0
      %2073 = vmatprep.subr.mxu0 0.0
      %2074 = vmatpush1.msra.mxu0 0.0
      %2075 = vmatprep.subr.mxu0 0.0
      %2076 = vmatpush1.msra.mxu0 0.0
      %2077 = vmatprep.subr.mxu0 0.0
      %2078 = vmatpush1.msra.mxu0 0.0
      %2079 = vmatprep.subr.mxu0 0.0
      %2080 = vmatpush1.msra.mxu0 0.0
      %2081 = vmatprep.subr.mxu0 0.0
      %2082 = vmatpush1.msra.mxu0 0.0
      %2083 = vmatprep.subr.mxu0 0.0
      %2084 = vmatpush1.msra.mxu0 0.0
      %2085 = vmatprep.subr.mxu0 0.0
      %2086 = vmatpush1.msra.mxu0 0.0
      %2087 = vmatprep.subr.mxu0 0.0
      %2088 = vmatpush1.msra.mxu0 0.0
      %2089 = vmatprep.subr.mxu0 0.0
      %2090 = vmatpush1.msra.mxu0 0.0
      %2091 = vmatprep.subr.mxu0 0.0
      %2092 = vmatpush1.msra.mxu0 0.0
      %2093 = vmatprep.subr.mxu0 0.0
      %2094 = vmatpush1.msra.mxu0 0.0
      %2095 = vmatprep.subr.mxu0 0.0
      %2096 = vmatpush1.msra.mxu0 0.0
      %2097 = vmatprep.subr.mxu0 0.0
      %2098 = vmatpush1.msra.mxu0 0.0
      %2099 = vmatprep.subr.mxu0 0.0
      %2100 = vmatpush1.msra.mxu0 0.0
      %2101 = vmatprep.subr.mxu0 0.0
      %2102 = vmatpush1.msra.mxu0 0.0
      %2103 = vmatprep.subr.mxu0 0.0
      %2104 = vmatpush1.msra.mxu0 0.0
      %2105 = vmatprep.subr.mxu0 0.0
      %2106 = vmatpush1.msra.mxu0 0.0
      %2107 = vmatprep.subr.mxu0 0.0
      %2108 = vmatpush1.msra.mxu0 0.0
      %2109 = vmatprep.subr.mxu0 0.0
      %2110 = vmatpush1.msra.mxu0 0.0
      %2111 = vmatprep.subr.mxu0 0.0
      %2112 = vmatpush1.msra.mxu0 0.0
      %2113 = vmatprep.subr.mxu0 0.0
      %2114 = vmatpush1.msra.mxu0 0.0
      %2115 = vmatprep.subr.mxu0 0.0
      %2116 = vmatpush1.msra.mxu0 0.0
      %2117 = vmatprep.subr.mxu0 0.0
      %2118 = vmatpush1.msra.mxu0 0.0
      %2119 = vmatprep.subr.mxu0 0.0
      %2120 = vmatpush1.msra.mxu0 0.0
      %2121 = vmatprep.subr.mxu0 0.0
      %2122 = vmatpush1.msra.mxu0 0.0
      %2123 = vmatprep.subr.mxu0 0.0
      %2124 = vmatpush1.msra.mxu0 0.0
      %2125 = vmatprep.subr.mxu0 0.0
      %2126 = vmatpush1.msra.mxu0 0.0
      %2127 = vmatprep.mubr.f32.mxu0 0.0
      %v2128 = vand.u32 %v195, 4294901760
      %2129 = vmatmul.mubr.f32.gmra.mrb[0].mxu0 %v2128
      %v2130 = vpop.f32.mrb[0].mxu0
      %v2131 = vadd.f32 %v1834, %v2130
      %v2132 = vpop.f32.mrb[0].mxu0
      %v2133 = vadd.f32 %v1836, %v2132
      %2134 = vmatprep.mubr.f32.mxu0 0.0
      %v2135 = vand.u32 %v198, 4294901760
      %2136 = vmatmul.mubr.f32.gmra.mrb[0].mxu0 %v2135
      %v2137 = vpop.f32.mrb[0].mxu0
      %v2138 = vadd.f32 %v1841, %v2137
      %v2139 = vpop.f32.mrb[0].mxu0
      %v2140 = vadd.f32 %v1843, %v2139
      %2141 = vmatprep.mubr.f32.mxu0 0.0
      %v2142 = vand.u32 %v201, 4294901760
      %2143 = vmatmul.mubr.f32.gmra.mrb[0].mxu0 %v2142
      %v2144 = vpop.f32.mrb[0].mxu0
      %v2145 = vadd.f32 %v1848, %v2144
      %v2146 = vpop.f32.mrb[0].mxu0
      %v2147 = vadd.f32 %v1850, %v2146
      %2148 = vmatprep.mubr.f32.mxu0 0.0
      %v2149 = vand.u32 %v204, 4294901760
      %2150 = vmatmul.mubr.f32.gmra.mrb[0].mxu0 %v2149
      %v2151 = vpop.f32.mrb[0].mxu0
      %v2152 = vadd.f32 %v1855, %v2151
      %v2153 = vpop.f32.mrb[0].mxu0
      %v2154 = vadd.f32 %v1857, %v2153
      %2155 = vmatprep.mubr.f32.mxu0 0.0
      %v2156 = vand.u32 %v207, 4294901760
      %2157 = vmatmul.mubr.f32.gmra.mrb[0].mxu0 %v2156
      %v2158 = vpop.f32.mrb[0].mxu0
      %v2159 = vadd.f32 %v1862, %v2158
      %v2160 = vpop.f32.mrb[0].mxu0
      %v2161 = vadd.f32 %v1864, %v2160
      %2162 = vmatprep.mubr.f32.mxu0 0.0
      %v2163 = vand.u32 %v210, 4294901760
      %2164 = vmatmul.mubr.f32.gmra.mrb[0].mxu0 %v2163
      %v2165 = vpop.f32.mrb[0].mxu0
      %v2166 = vadd.f32 %v1869, %v2165
      %v2167 = vpop.f32.mrb[0].mxu0
      %v2168 = vadd.f32 %v1871, %v2167
      %2169 = vmatprep.mubr.f32.mxu0 0.0
      %v2170 = vand.u32 %v213, 4294901760
      %2171 = vmatmul.mubr.f32.gmra.mrb[0].mxu0 %v2170
      %v2172 = vpop.f32.mrb[0].mxu0
      %v2173 = vadd.f32 %v1876, %v2172
      %v2174 = vpop.f32.mrb[0].mxu0
      %v2175 = vadd.f32 %v1878, %v2174
      %2176 = vmatprep.mubr.f32.mxu0 0.0
      %v2177 = vand.u32 %v216, 4294901760
      %2178 = vmatmul.mubr.f32.gmra.mrb[0].mxu0 %v2177
      %v2179 = vpop.f32.mrb[0].mxu0
      %v2180 = vadd.f32 %v1883, %v2179
      %v2181 = vpop.f32.mrb[0].mxu0
      %v2182 = vadd.f32 %v1885, %v2181
      %2183 = vmatprep.mubr.f32.mxu0 0.0
      %v2184 = vand.u32 %v219, 4294901760
      %2185 = vmatmul.mubr.f32.gmra.mrb[0].mxu0 %v2184
      %v2186 = vpop.f32.mrb[0].mxu0
      %v2187 = vadd.f32 %v1890, %v2186
      %v2188 = vpop.f32.mrb[0].mxu0
      %v2189 = vadd.f32 %v1892, %v2188
      %2190 = vmatprep.mubr.f32.mxu0 0.0
      %v2191 = vand.u32 %v222, 4294901760
      %2192 = vmatmul.mubr.f32.gmra.mrb[0].mxu0 %v2191
      %v2193 = vpop.f32.mrb[0].mxu0
      %v2194 = vadd.f32 %v1897, %v2193
      %v2195 = vpop.f32.mrb[0].mxu0
      %v2196 = vadd.f32 %v1899, %v2195
      %2197 = vmatprep.mubr.f32.mxu0 0.0
      %v2198 = vand.u32 %v225, 4294901760
      %2199 = vmatmul.mubr.f32.gmra.mrb[0].mxu0 %v2198
      %v2200 = vpop.f32.mrb[0].mxu0
      %v2201 = vadd.f32 %v1904, %v2200
      %v2202 = vpop.f32.mrb[0].mxu0
      %v2203 = vadd.f32 %v1906, %v2202
      %2204 = vmatprep.mubr.f32.mxu0 0.0
      %v2205 = vand.u32 %v228, 4294901760
      %2206 = vmatmul.mubr.f32.gmra.mrb[0].mxu0 %v2205
      %v2207 = vpop.f32.mrb[0].mxu0
      %v2208 = vadd.f32 %v1911, %v2207
      %v2209 = vpop.f32.mrb[0].mxu0
      %v2210 = vadd.f32 %v1913, %v2209
      %2211 = vmatprep.mubr.f32.mxu0 0.0
      %v2212 = vand.u32 %v231, 4294901760
      %2213 = vmatmul.mubr.f32.gmra.mrb[0].mxu0 %v2212
      %v2214 = vpop.f32.mrb[0].mxu0
      %v2215 = vadd.f32 %v1918, %v2214
      %v2216 = vpop.f32.mrb[0].mxu0
      %v2217 = vadd.f32 %v1920, %v2216
      %2218 = vmatprep.mubr.f32.mxu0 0.0
      %v2219 = vand.u32 %v234, 4294901760
      %2220 = vmatmul.mubr.f32.gmra.mrb[0].mxu0 %v2219
      %v2221 = vpop.f32.mrb[0].mxu0
      %v2222 = vadd.f32 %v1925, %v2221
      %v2223 = vpop.f32.mrb[0].mxu0
      %v2224 = vadd.f32 %v1927, %v2223
      %2225 = vmatprep.mubr.f32.mxu0 0.0
      %v2226 = vand.u32 %v237, 4294901760
      %2227 = vmatmul.mubr.f32.gmra.mrb[0].mxu0 %v2226
      %v2228 = vpop.f32.mrb[0].mxu0
      %v2229 = vadd.f32 %v1932, %v2228
      %v2230 = vpop.f32.mrb[0].mxu0
      %v2231 = vadd.f32 %v1934, %v2230
      %2232 = vmatprep.mubr.f32.mxu0 0.0
      %v2233 = vand.u32 %v240, 4294901760
      %2234 = vmatmul.mubr.f32.gmra.mrb[0].mxu0 %v2233
      %v2235 = vpop.f32.mrb[0].mxu0
      %v2236 = vadd.f32 %v1939, %v2235
      %v2237 = vpop.f32.mrb[0].mxu0
      %v2238 = vadd.f32 %v1941, %v2237
      %2239 = vmatprep.mubr.f32.mxu0 0.0
      %v2240 = vand.u32 %v243, 4294901760
      %2241 = vmatmul.mubr.f32.gmra.mrb[0].mxu0 %v2240
      %v2242 = vpop.f32.mrb[0].mxu0
      %v2243 = vadd.f32 %v1946, %v2242
      %v2244 = vpop.f32.mrb[0].mxu0
      %v2245 = vadd.f32 %v1948, %v2244
      %2246 = vmatprep.mubr.f32.mxu0 0.0
      %v2247 = vand.u32 %v246, 4294901760
      %2248 = vmatmul.mubr.f32.gmra.mrb[0].mxu0 %v2247
      %v2249 = vpop.f32.mrb[0].mxu0
      %v2250 = vadd.f32 %v1953, %v2249
      %v2251 = vpop.f32.mrb[0].mxu0
      %v2252 = vadd.f32 %v1955, %v2251
      %2253 = vmatprep.mubr.f32.mxu0 0.0
      %v2254 = vand.u32 %v249, 4294901760
      %2255 = vmatmul.mubr.f32.gmra.mrb[0].mxu0 %v2254
      %v2256 = vpop.f32.mrb[0].mxu0
      %v2257 = vadd.f32 %v1960, %v2256
      %v2258 = vpop.f32.mrb[0].mxu0
      %v2259 = vadd.f32 %v1962, %v2258
      %2260 = vmatprep.mubr.f32.mxu0 0.0
      %v2261 = vand.u32 %v252, 4294901760
      %2262 = vmatmul.mubr.f32.gmra.mrb[0].mxu0 %v2261
      %v2263 = vpop.f32.mrb[0].mxu0
      %v2264 = vadd.f32 %v1967, %v2263
      %v2265 = vpop.f32.mrb[0].mxu0
      %v2266 = vadd.f32 %v1969, %v2265
      %2267 = vmatprep.mubr.f32.mxu0 0.0
      %v2268 = vand.u32 %v255, 4294901760
      %2269 = vmatmul.mubr.f32.gmra.mrb[0].mxu0 %v2268
      %v2270 = vpop.f32.mrb[0].mxu0
      %v2271 = vadd.f32 %v1974, %v2270
      %v2272 = vpop.f32.mrb[0].mxu0
      %v2273 = vadd.f32 %v1976, %v2272
      %2274 = vmatprep.mubr.f32.mxu0 0.0
      %v2275 = vand.u32 %v258, 4294901760
      %2276 = vmatmul.mubr.f32.gmra.mrb[0].mxu0 %v2275
      %v2277 = vpop.f32.mrb[0].mxu0
      %v2278 = vadd.f32 %v1981, %v2277
      %v2279 = vpop.f32.mrb[0].mxu0
      %v2280 = vadd.f32 %v1983, %v2279
      %2281 = vmatprep.mubr.f32.mxu0 0.0
      %v2282 = vand.u32 %v261, 4294901760
      %2283 = vmatmul.mubr.f32.gmra.mrb[0].mxu0 %v2282
      %v2284 = vpop.f32.mrb[0].mxu0
      %v2285 = vadd.f32 %v1988, %v2284
      %v2286 = vpop.f32.mrb[0].mxu0
      %v2287 = vadd.f32 %v1990, %v2286
      %2288 = vmatprep.mubr.f32.mxu0 0.0
      %v2289 = vand.u32 %v264, 4294901760
      %2290 = vmatmul.mubr.f32.gmra.mrb[0].mxu0 %v2289
      %v2291 = vpop.f32.mrb[0].mxu0
      %v2292 = vadd.f32 %v1995, %v2291
      %v2293 = vpop.f32.mrb[0].mxu0
      %v2294 = vadd.f32 %v1997, %v2293
      %2295 = vmatprep.mubr.f32.mxu0 0.0
      %v2296 = vand.u32 %v267, 4294901760
      %2297 = vmatmul.mubr.f32.gmra.mrb[0].mxu0 %v2296
      %v2298 = vpop.f32.mrb[0].mxu0
      %v2299 = vadd.f32 %v2002, %v2298
      %v2300 = vpop.f32.mrb[0].mxu0
      %v2301 = vadd.f32 %v2004, %v2300
      %2302 = vmatprep.mubr.f32.mxu0 0.0
      %v2303 = vand.u32 %v270, 4294901760
      %2304 = vmatmul.mubr.f32.gmra.mrb[0].mxu0 %v2303
      %v2305 = vpop.f32.mrb[0].mxu0
      %v2306 = vadd.f32 %v2009, %v2305
      %v2307 = vpop.f32.mrb[0].mxu0
      %v2308 = vadd.f32 %v2011, %v2307
      %2309 = vmatprep.mubr.f32.mxu0 0.0
      %v2310 = vand.u32 %v273, 4294901760
      %2311 = vmatmul.mubr.f32.gmra.mrb[0].mxu0 %v2310
      %v2312 = vpop.f32.mrb[0].mxu0
      %v2313 = vadd.f32 %v2016, %v2312
      %v2314 = vpop.f32.mrb[0].mxu0
      %v2315 = vadd.f32 %v2018, %v2314
      %2316 = vmatprep.mubr.f32.mxu0 0.0
      %v2317 = vand.u32 %v276, 4294901760
      %2318 = vmatmul.mubr.f32.gmra.mrb[0].mxu0 %v2317
      %v2319 = vpop.f32.mrb[0].mxu0
      %v2320 = vadd.f32 %v2023, %v2319
      %v2321 = vpop.f32.mrb[0].mxu0
      %v2322 = vadd.f32 %v2025, %v2321
      %2323 = vmatprep.mubr.f32.mxu0 0.0
      %v2324 = vand.u32 %v279, 4294901760
      %2325 = vmatmul.mubr.f32.gmra.mrb[0].mxu0 %v2324
      %v2326 = vpop.f32.mrb[0].mxu0
      %v2327 = vadd.f32 %v2030, %v2326
      %v2328 = vpop.f32.mrb[0].mxu0
      %v2329 = vadd.f32 %v2032, %v2328
      %2330 = vmatprep.mubr.f32.mxu0 0.0
      %v2331 = vand.u32 %v282, 4294901760
      %2332 = vmatmul.mubr.f32.gmra.mrb[0].mxu0 %v2331
      %v2333 = vpop.f32.mrb[0].mxu0
      %v2334 = vadd.f32 %v2037, %v2333
      %v2335 = vpop.f32.mrb[0].mxu0
      %v2336 = vadd.f32 %v2039, %v2335
      %2337 = vmatprep.mubr.f32.mxu0 0.0
      %v2338 = vand.u32 %v285, 4294901760
      %2339 = vmatmul.mubr.f32.gmra.mrb[0].mxu0 %v2338
      %v2340 = vpop.f32.mrb[0].mxu0
      %v2341 = vadd.f32 %v2044, %v2340
      %v2342 = vpop.f32.mrb[0].mxu0
      %v2343 = vadd.f32 %v2046, %v2342
      %2344 = vmatprep.mubr.f32.mxu0 0.0
      %v2345 = vand.u32 %v288, 4294901760
      %2346 = vmatmul.mubr.f32.gmra.mrb[0].mxu0 %v2345
      %v2347 = vpop.f32.mrb[0].mxu0
      %v2348 = vadd.f32 %v2051, %v2347
      %v2349 = vpop.f32.mrb[0].mxu0
      %v2350 = vadd.f32 %v2053, %v2349
      %2351 = vdwg.mxu0
      %2352 = vmatprep.subr.mxu0 0.0
      %v2353 = vand.u32 %v183, 4294901760
      %2354 = vmatpush1.msra.mxu0 %v2353
      %2355 = vmatprep.subr.mxu0 0.0
      %v2356 = vand.u32 %v186, 4294901760
      %2357 = vmatpush1.msra.mxu0 %v2356
      %2358 = vmatprep.subr.mxu0 0.0
      %v2359 = vand.u32 %v189, 4294901760
      %2360 = vmatpush1.msra.mxu0 %v2359
      %2361 = vmatprep.subr.mxu0 0.0
      %v2362 = vand.u32 %v192, 4294901760
      %2363 = vmatpush1.msra.mxu0 %v2362
      %2364 = vmatprep.subr.mxu0 0.0
      %2365 = vmatpush1.msra.mxu0 0.0
      %2366 = vmatprep.subr.mxu0 0.0
      %2367 = vmatpush1.msra.mxu0 0.0
      %2368 = vmatprep.subr.mxu0 0.0
      %2369 = vmatpush1.msra.mxu0 0.0
      %2370 = vmatprep.subr.mxu0 0.0
      %2371 = vmatpush1.msra.mxu0 0.0
      %2372 = vmatprep.subr.mxu0 0.0
      %2373 = vmatpush1.msra.mxu0 0.0
      %2374 = vmatprep.subr.mxu0 0.0
      %2375 = vmatpush1.msra.mxu0 0.0
      %2376 = vmatprep.subr.mxu0 0.0
      %2377 = vmatpush1.msra.mxu0 0.0
      %2378 = vmatprep.subr.mxu0 0.0
      %2379 = vmatpush1.msra.mxu0 0.0
      %2380 = vmatprep.subr.mxu0 0.0
      %2381 = vmatpush1.msra.mxu0 0.0
      %2382 = vmatprep.subr.mxu0 0.0
      %2383 = vmatpush1.msra.mxu0 0.0
      %2384 = vmatprep.subr.mxu0 0.0
      %2385 = vmatpush1.msra.mxu0 0.0
      %2386 = vmatprep.subr.mxu0 0.0
      %2387 = vmatpush1.msra.mxu0 0.0
      %2388 = vmatprep.subr.mxu0 0.0
      %2389 = vmatpush1.msra.mxu0 0.0
      %2390 = vmatprep.subr.mxu0 0.0
      %2391 = vmatpush1.msra.mxu0 0.0
      %2392 = vmatprep.subr.mxu0 0.0
      %2393 = vmatpush1.msra.mxu0 0.0
      %2394 = vmatprep.subr.mxu0 0.0
      %2395 = vmatpush1.msra.mxu0 0.0
      %2396 = vmatprep.subr.mxu0 0.0
      %2397 = vmatpush1.msra.mxu0 0.0
      %2398 = vmatprep.subr.mxu0 0.0
      %2399 = vmatpush1.msra.mxu0 0.0
      %2400 = vmatprep.subr.mxu0 0.0
      %2401 = vmatpush1.msra.mxu0 0.0
      %2402 = vmatprep.subr.mxu0 0.0
      %2403 = vmatpush1.msra.mxu0 0.0
      %2404 = vmatprep.subr.mxu0 0.0
      %2405 = vmatpush1.msra.mxu0 0.0
      %2406 = vmatprep.subr.mxu0 0.0
      %2407 = vmatpush1.msra.mxu0 0.0
      %2408 = vmatprep.subr.mxu0 0.0
      %2409 = vmatpush1.msra.mxu0 0.0
      %2410 = vmatprep.subr.mxu0 0.0
      %2411 = vmatpush1.msra.mxu0 0.0
      %2412 = vmatprep.subr.mxu0 0.0
      %2413 = vmatpush1.msra.mxu0 0.0
      %2414 = vmatprep.subr.mxu0 0.0
      %2415 = vmatpush1.msra.mxu0 0.0
      %2416 = vmatprep.subr.mxu0 0.0
      %2417 = vmatpush1.msra.mxu0 0.0
      %2418 = vmatprep.subr.mxu0 0.0
      %2419 = vmatpush1.msra.mxu0 0.0
      %2420 = vmatprep.mubr.f32.mxu0 0.0
      %v2421 = vand.u32 %v195, 4294901760
      %v2422 = vsub.f32 %v195, %v2421
      %v2423 = vand.u32 %v2422, 4294901760
      %v2424 = vsub.f32 %v2422, %v2423
      %v2425 = vand.u32 %v2424, 4294901760
      %2426 = vmatmul.mubr.f32.gmra.mrb[0].mxu0 %v2425
      %v2427 = vpop.f32.mrb[0].mxu0
      %v2428 = vadd.f32 0.0, %v2427
      %v2429 = vpop.f32.mrb[0].mxu0
      %2430 = vmatprep.mubr.f32.mxu0 0.0
      %v2431 = vand.u32 %v198, 4294901760
      %v2432 = vsub.f32 %v198, %v2431
      %v2433 = vand.u32 %v2432, 4294901760
      %v2434 = vsub.f32 %v2432, %v2433
      %v2435 = vand.u32 %v2434, 4294901760
      %2436 = vmatmul.mubr.f32.gmra.mrb[0].mxu0 %v2435
      %v2437 = vpop.f32.mrb[0].mxu0
      %v2438 = vadd.f32 0.0, %v2437
      %v2439 = vpop.f32.mrb[0].mxu0
      %2440 = vmatprep.mubr.f32.mxu0 0.0
      %v2441 = vand.u32 %v201, 4294901760
      %v2442 = vsub.f32 %v201, %v2441
      %v2443 = vand.u32 %v2442, 4294901760
      %v2444 = vsub.f32 %v2442, %v2443
      %v2445 = vand.u32 %v2444, 4294901760
      %2446 = vmatmul.mubr.f32.gmra.mrb[0].mxu0 %v2445
      %v2447 = vpop.f32.mrb[0].mxu0
      %v2448 = vadd.f32 0.0, %v2447
      %v2449 = vpop.f32.mrb[0].mxu0
      %2450 = vmatprep.mubr.f32.mxu0 0.0
      %v2451 = vand.u32 %v204, 4294901760
      %v2452 = vsub.f32 %v204, %v2451
      %v2453 = vand.u32 %v2452, 4294901760
      %v2454 = vsub.f32 %v2452, %v2453
      %v2455 = vand.u32 %v2454, 4294901760
      %2456 = vmatmul.mubr.f32.gmra.mrb[0].mxu0 %v2455
      %v2457 = vpop.f32.mrb[0].mxu0
      %v2458 = vadd.f32 0.0, %v2457
      %v2459 = vpop.f32.mrb[0].mxu0
      %2460 = vmatprep.mubr.f32.mxu0 0.0
      %v2461 = vand.u32 %v207, 4294901760
      %v2462 = vsub.f32 %v207, %v2461
      %v2463 = vand.u32 %v2462, 4294901760
      %v2464 = vsub.f32 %v2462, %v2463
      %v2465 = vand.u32 %v2464, 4294901760
      %2466 = vmatmul.mubr.f32.gmra.mrb[0].mxu0 %v2465
      %v2467 = vpop.f32.mrb[0].mxu0
      %v2468 = vadd.f32 0.0, %v2467
      %v2469 = vpop.f32.mrb[0].mxu0
      %2470 = vmatprep.mubr.f32.mxu0 0.0
      %v2471 = vand.u32 %v210, 4294901760
      %v2472 = vsub.f32 %v210, %v2471
      %v2473 = vand.u32 %v2472, 4294901760
      %v2474 = vsub.f32 %v2472, %v2473
      %v2475 = vand.u32 %v2474, 4294901760
      %2476 = vmatmul.mubr.f32.gmra.mrb[0].mxu0 %v2475
      %v2477 = vpop.f32.mrb[0].mxu0
      %v2478 = vadd.f32 0.0, %v2477
      %v2479 = vpop.f32.mrb[0].mxu0
      %2480 = vmatprep.mubr.f32.mxu0 0.0
      %v2481 = vand.u32 %v213, 4294901760
      %v2482 = vsub.f32 %v213, %v2481
      %v2483 = vand.u32 %v2482, 4294901760
      %v2484 = vsub.f32 %v2482, %v2483
      %v2485 = vand.u32 %v2484, 4294901760
      %2486 = vmatmul.mubr.f32.gmra.mrb[0].mxu0 %v2485
      %v2487 = vpop.f32.mrb[0].mxu0
      %v2488 = vadd.f32 0.0, %v2487
      %v2489 = vpop.f32.mrb[0].mxu0
      %2490 = vmatprep.mubr.f32.mxu0 0.0
      %v2491 = vand.u32 %v216, 4294901760
      %v2492 = vsub.f32 %v216, %v2491
      %v2493 = vand.u32 %v2492, 4294901760
      %v2494 = vsub.f32 %v2492, %v2493
      %v2495 = vand.u32 %v2494, 4294901760
      %2496 = vmatmul.mubr.f32.gmra.mrb[0].mxu0 %v2495
      %v2497 = vpop.f32.mrb[0].mxu0
      %v2498 = vadd.f32 0.0, %v2497
      %v2499 = vpop.f32.mrb[0].mxu0
      %2500 = vmatprep.mubr.f32.mxu0 0.0
      %v2501 = vand.u32 %v219, 4294901760
      %v2502 = vsub.f32 %v219, %v2501
      %v2503 = vand.u32 %v2502, 4294901760
      %v2504 = vsub.f32 %v2502, %v2503
      %v2505 = vand.u32 %v2504, 4294901760
      %2506 = vmatmul.mubr.f32.gmra.mrb[0].mxu0 %v2505
      %v2507 = vpop.f32.mrb[0].mxu0
      %v2508 = vadd.f32 0.0, %v2507
      %v2509 = vpop.f32.mrb[0].mxu0
      %2510 = vmatprep.mubr.f32.mxu0 0.0
      %v2511 = vand.u32 %v222, 4294901760
      %v2512 = vsub.f32 %v222, %v2511
      %v2513 = vand.u32 %v2512, 4294901760
      %v2514 = vsub.f32 %v2512, %v2513
      %v2515 = vand.u32 %v2514, 4294901760
      %2516 = vmatmul.mubr.f32.gmra.mrb[0].mxu0 %v2515
      %v2517 = vpop.f32.mrb[0].mxu0
      %v2518 = vadd.f32 0.0, %v2517
      %v2519 = vpop.f32.mrb[0].mxu0
      %2520 = vmatprep.mubr.f32.mxu0 0.0
      %v2521 = vand.u32 %v225, 4294901760
      %v2522 = vsub.f32 %v225, %v2521
      %v2523 = vand.u32 %v2522, 4294901760
      %v2524 = vsub.f32 %v2522, %v2523
      %v2525 = vand.u32 %v2524, 4294901760
      %2526 = vmatmul.mubr.f32.gmra.mrb[0].mxu0 %v2525
      %v2527 = vpop.f32.mrb[0].mxu0
      %v2528 = vadd.f32 0.0, %v2527
      %v2529 = vpop.f32.mrb[0].mxu0
      %2530 = vmatprep.mubr.f32.mxu0 0.0
      %v2531 = vand.u32 %v228, 4294901760
      %v2532 = vsub.f32 %v228, %v2531
      %v2533 = vand.u32 %v2532, 4294901760
      %v2534 = vsub.f32 %v2532, %v2533
      %v2535 = vand.u32 %v2534, 4294901760
      %2536 = vmatmul.mubr.f32.gmra.mrb[0].mxu0 %v2535
      %v2537 = vpop.f32.mrb[0].mxu0
      %v2538 = vadd.f32 0.0, %v2537
      %v2539 = vpop.f32.mrb[0].mxu0
      %2540 = vmatprep.mubr.f32.mxu0 0.0
      %v2541 = vand.u32 %v231, 4294901760
      %v2542 = vsub.f32 %v231, %v2541
      %v2543 = vand.u32 %v2542, 4294901760
      %v2544 = vsub.f32 %v2542, %v2543
      %v2545 = vand.u32 %v2544, 4294901760
      %2546 = vmatmul.mubr.f32.gmra.mrb[0].mxu0 %v2545
      %v2547 = vpop.f32.mrb[0].mxu0
      %v2548 = vadd.f32 0.0, %v2547
      %v2549 = vpop.f32.mrb[0].mxu0
      %2550 = vmatprep.mubr.f32.mxu0 0.0
      %v2551 = vand.u32 %v234, 4294901760
      %v2552 = vsub.f32 %v234, %v2551
      %v2553 = vand.u32 %v2552, 4294901760
      %v2554 = vsub.f32 %v2552, %v2553
      %v2555 = vand.u32 %v2554, 4294901760
      %2556 = vmatmul.mubr.f32.gmra.mrb[0].mxu0 %v2555
      %v2557 = vpop.f32.mrb[0].mxu0
      %v2558 = vadd.f32 0.0, %v2557
      %v2559 = vpop.f32.mrb[0].mxu0
      %2560 = vmatprep.mubr.f32.mxu0 0.0
      %v2561 = vand.u32 %v237, 4294901760
      %v2562 = vsub.f32 %v237, %v2561
      %v2563 = vand.u32 %v2562, 4294901760
      %v2564 = vsub.f32 %v2562, %v2563
      %v2565 = vand.u32 %v2564, 4294901760
      %2566 = vmatmul.mubr.f32.gmra.mrb[0].mxu0 %v2565
      %v2567 = vpop.f32.mrb[0].mxu0
      %v2568 = vadd.f32 0.0, %v2567
      %v2569 = vpop.f32.mrb[0].mxu0
      %2570 = vmatprep.mubr.f32.mxu0 0.0
      %v2571 = vand.u32 %v240, 4294901760
      %v2572 = vsub.f32 %v240, %v2571
      %v2573 = vand.u32 %v2572, 4294901760
      %v2574 = vsub.f32 %v2572, %v2573
      %v2575 = vand.u32 %v2574, 4294901760
      %2576 = vmatmul.mubr.f32.gmra.mrb[0].mxu0 %v2575
      %v2577 = vpop.f32.mrb[0].mxu0
      %v2578 = vadd.f32 0.0, %v2577
      %v2579 = vpop.f32.mrb[0].mxu0
      %2580 = vmatprep.mubr.f32.mxu0 0.0
      %v2581 = vand.u32 %v243, 4294901760
      %v2582 = vsub.f32 %v243, %v2581
      %v2583 = vand.u32 %v2582, 4294901760
      %v2584 = vsub.f32 %v2582, %v2583
      %v2585 = vand.u32 %v2584, 4294901760
      %2586 = vmatmul.mubr.f32.gmra.mrb[0].mxu0 %v2585
      %v2587 = vpop.f32.mrb[0].mxu0
      %v2588 = vadd.f32 0.0, %v2587
      %v2589 = vpop.f32.mrb[0].mxu0
      %2590 = vmatprep.mubr.f32.mxu0 0.0
      %v2591 = vand.u32 %v246, 4294901760
      %v2592 = vsub.f32 %v246, %v2591
      %v2593 = vand.u32 %v2592, 4294901760
      %v2594 = vsub.f32 %v2592, %v2593
      %v2595 = vand.u32 %v2594, 4294901760
      %2596 = vmatmul.mubr.f32.gmra.mrb[0].mxu0 %v2595
      %v2597 = vpop.f32.mrb[0].mxu0
      %v2598 = vadd.f32 0.0, %v2597
      %v2599 = vpop.f32.mrb[0].mxu0
      %2600 = vmatprep.mubr.f32.mxu0 0.0
      %v2601 = vand.u32 %v249, 4294901760
      %v2602 = vsub.f32 %v249, %v2601
      %v2603 = vand.u32 %v2602, 4294901760
      %v2604 = vsub.f32 %v2602, %v2603
      %v2605 = vand.u32 %v2604, 4294901760
      %2606 = vmatmul.mubr.f32.gmra.mrb[0].mxu0 %v2605
      %v2607 = vpop.f32.mrb[0].mxu0
      %v2608 = vadd.f32 0.0, %v2607
      %v2609 = vpop.f32.mrb[0].mxu0
      %2610 = vmatprep.mubr.f32.mxu0 0.0
      %v2611 = vand.u32 %v252, 4294901760
      %v2612 = vsub.f32 %v252, %v2611
      %v2613 = vand.u32 %v2612, 4294901760
      %v2614 = vsub.f32 %v2612, %v2613
      %v2615 = vand.u32 %v2614, 4294901760
      %2616 = vmatmul.mubr.f32.gmra.mrb[0].mxu0 %v2615
      %v2617 = vpop.f32.mrb[0].mxu0
      %v2618 = vadd.f32 0.0, %v2617
      %v2619 = vpop.f32.mrb[0].mxu0
      %2620 = vmatprep.mubr.f32.mxu0 0.0
      %v2621 = vand.u32 %v255, 4294901760
      %v2622 = vsub.f32 %v255, %v2621
      %v2623 = vand.u32 %v2622, 4294901760
      %v2624 = vsub.f32 %v2622, %v2623
      %v2625 = vand.u32 %v2624, 4294901760
      %2626 = vmatmul.mubr.f32.gmra.mrb[0].mxu0 %v2625
      %v2627 = vpop.f32.mrb[0].mxu0
      %v2628 = vadd.f32 0.0, %v2627
      %v2629 = vpop.f32.mrb[0].mxu0
      %2630 = vmatprep.mubr.f32.mxu0 0.0
      %v2631 = vand.u32 %v258, 4294901760
      %v2632 = vsub.f32 %v258, %v2631
      %v2633 = vand.u32 %v2632, 4294901760
      %v2634 = vsub.f32 %v2632, %v2633
      %v2635 = vand.u32 %v2634, 4294901760
      %2636 = vmatmul.mubr.f32.gmra.mrb[0].mxu0 %v2635
      %v2637 = vpop.f32.mrb[0].mxu0
      %v2638 = vadd.f32 0.0, %v2637
      %v2639 = vpop.f32.mrb[0].mxu0
      %2640 = vmatprep.mubr.f32.mxu0 0.0
      %v2641 = vand.u32 %v261, 4294901760
      %v2642 = vsub.f32 %v261, %v2641
      %v2643 = vand.u32 %v2642, 4294901760
      %v2644 = vsub.f32 %v2642, %v2643
      %v2645 = vand.u32 %v2644, 4294901760
      %2646 = vmatmul.mubr.f32.gmra.mrb[0].mxu0 %v2645
      %v2647 = vpop.f32.mrb[0].mxu0
      %v2648 = vadd.f32 0.0, %v2647
      %v2649 = vpop.f32.mrb[0].mxu0
      %2650 = vmatprep.mubr.f32.mxu0 0.0
      %v2651 = vand.u32 %v264, 4294901760
      %v2652 = vsub.f32 %v264, %v2651
      %v2653 = vand.u32 %v2652, 4294901760
      %v2654 = vsub.f32 %v2652, %v2653
      %v2655 = vand.u32 %v2654, 4294901760
      %2656 = vmatmul.mubr.f32.gmra.mrb[0].mxu0 %v2655
      %v2657 = vpop.f32.mrb[0].mxu0
      %v2658 = vadd.f32 0.0, %v2657
      %v2659 = vpop.f32.mrb[0].mxu0
      %2660 = vmatprep.mubr.f32.mxu0 0.0
      %v2661 = vand.u32 %v267, 4294901760
      %v2662 = vsub.f32 %v267, %v2661
      %v2663 = vand.u32 %v2662, 4294901760
      %v2664 = vsub.f32 %v2662, %v2663
      %v2665 = vand.u32 %v2664, 4294901760
      %2666 = vmatmul.mubr.f32.gmra.mrb[0].mxu0 %v2665
      %v2667 = vpop.f32.mrb[0].mxu0
      %v2668 = vadd.f32 0.0, %v2667
      %v2669 = vpop.f32.mrb[0].mxu0
      %2670 = vmatprep.mubr.f32.mxu0 0.0
      %v2671 = vand.u32 %v270, 4294901760
      %v2672 = vsub.f32 %v270, %v2671
      %v2673 = vand.u32 %v2672, 4294901760
      %v2674 = vsub.f32 %v2672, %v2673
      %v2675 = vand.u32 %v2674, 4294901760
      %2676 = vmatmul.mubr.f32.gmra.mrb[0].mxu0 %v2675
      %v2677 = vpop.f32.mrb[0].mxu0
      %v2678 = vadd.f32 0.0, %v2677
      %v2679 = vpop.f32.mrb[0].mxu0
      %2680 = vmatprep.mubr.f32.mxu0 0.0
      %v2681 = vand.u32 %v273, 4294901760
      %v2682 = vsub.f32 %v273, %v2681
      %v2683 = vand.u32 %v2682, 4294901760
      %v2684 = vsub.f32 %v2682, %v2683
      %v2685 = vand.u32 %v2684, 4294901760
      %2686 = vmatmul.mubr.f32.gmra.mrb[0].mxu0 %v2685
      %v2687 = vpop.f32.mrb[0].mxu0
      %v2688 = vadd.f32 0.0, %v2687
      %v2689 = vpop.f32.mrb[0].mxu0
      %2690 = vmatprep.mubr.f32.mxu0 0.0
      %v2691 = vand.u32 %v276, 4294901760
      %v2692 = vsub.f32 %v276, %v2691
      %v2693 = vand.u32 %v2692, 4294901760
      %v2694 = vsub.f32 %v2692, %v2693
      %v2695 = vand.u32 %v2694, 4294901760
      %2696 = vmatmul.mubr.f32.gmra.mrb[0].mxu0 %v2695
      %v2697 = vpop.f32.mrb[0].mxu0
      %v2698 = vadd.f32 0.0, %v2697
      %v2699 = vpop.f32.mrb[0].mxu0
      %2700 = vmatprep.mubr.f32.mxu0 0.0
      %v2701 = vand.u32 %v279, 4294901760
      %v2702 = vsub.f32 %v279, %v2701
      %v2703 = vand.u32 %v2702, 4294901760
      %v2704 = vsub.f32 %v2702, %v2703
      %v2705 = vand.u32 %v2704, 4294901760
      %2706 = vmatmul.mubr.f32.gmra.mrb[0].mxu0 %v2705
      %v2707 = vpop.f32.mrb[0].mxu0
      %v2708 = vadd.f32 0.0, %v2707
      %v2709 = vpop.f32.mrb[0].mxu0
      %2710 = vmatprep.mubr.f32.mxu0 0.0
      %v2711 = vand.u32 %v282, 4294901760
      %v2712 = vsub.f32 %v282, %v2711
      %v2713 = vand.u32 %v2712, 4294901760
      %v2714 = vsub.f32 %v2712, %v2713
      %v2715 = vand.u32 %v2714, 4294901760
      %2716 = vmatmul.mubr.f32.gmra.mrb[0].mxu0 %v2715
      %v2717 = vpop.f32.mrb[0].mxu0
      %v2718 = vadd.f32 0.0, %v2717
      %v2719 = vpop.f32.mrb[0].mxu0
      %2720 = vmatprep.mubr.f32.mxu0 0.0
      %v2721 = vand.u32 %v285, 4294901760
      %v2722 = vsub.f32 %v285, %v2721
      %v2723 = vand.u32 %v2722, 4294901760
      %v2724 = vsub.f32 %v2722, %v2723
      %v2725 = vand.u32 %v2724, 4294901760
      %2726 = vmatmul.mubr.f32.gmra.mrb[0].mxu0 %v2725
      %v2727 = vpop.f32.mrb[0].mxu0
      %v2728 = vadd.f32 0.0, %v2727
      %v2729 = vpop.f32.mrb[0].mxu0
      %2730 = vmatprep.mubr.f32.mxu0 0.0
      %v2731 = vand.u32 %v288, 4294901760
      %v2732 = vsub.f32 %v288, %v2731
      %v2733 = vand.u32 %v2732, 4294901760
      %v2734 = vsub.f32 %v2732, %v2733
      %v2735 = vand.u32 %v2734, 4294901760
      %2736 = vmatmul.mubr.f32.gmra.mrb[0].mxu0 %v2735
      %v2737 = vpop.f32.mrb[0].mxu0
      %v2738 = vadd.f32 0.0, %v2737
      %v2739 = vpop.f32.mrb[0].mxu0
      %2740 = vdwg.mxu0
      %2741 = vmatprep.subr.mxu0 0.0
      %v2742 = vand.u32 %v183, 4294901760
      %v2743 = vsub.f32 %v183, %v2742
      %v2744 = vand.u32 %v2743, 4294901760
      %v2745 = vsub.f32 %v2743, %v2744
      %v2746 = vand.u32 %v2745, 4294901760
      %2747 = vmatpush1.msra.mxu0 %v2746
      %2748 = vmatprep.subr.mxu0 0.0
      %v2749 = vand.u32 %v186, 4294901760
      %v2750 = vsub.f32 %v186, %v2749
      %v2751 = vand.u32 %v2750, 4294901760
      %v2752 = vsub.f32 %v2750, %v2751
      %v2753 = vand.u32 %v2752, 4294901760
      %2754 = vmatpush1.msra.mxu0 %v2753
      %2755 = vmatprep.subr.mxu0 0.0
      %v2756 = vand.u32 %v189, 4294901760
      %v2757 = vsub.f32 %v189, %v2756
      %v2758 = vand.u32 %v2757, 4294901760
      %v2759 = vsub.f32 %v2757, %v2758
      %v2760 = vand.u32 %v2759, 4294901760
      %2761 = vmatpush1.msra.mxu0 %v2760
      %2762 = vmatprep.subr.mxu0 0.0
      %v2763 = vand.u32 %v192, 4294901760
      %v2764 = vsub.f32 %v192, %v2763
      %v2765 = vand.u32 %v2764, 4294901760
      %v2766 = vsub.f32 %v2764, %v2765
      %v2767 = vand.u32 %v2766, 4294901760
      %2768 = vmatpush1.msra.mxu0 %v2767
      %2769 = vmatprep.subr.mxu0 0.0
      %2770 = vmatpush1.msra.mxu0 0.0
      %2771 = vmatprep.subr.mxu0 0.0
      %2772 = vmatpush1.msra.mxu0 0.0
      %2773 = vmatprep.subr.mxu0 0.0
      %2774 = vmatpush1.msra.mxu0 0.0
      %2775 = vmatprep.subr.mxu0 0.0
      %2776 = vmatpush1.msra.mxu0 0.0
      %2777 = vmatprep.subr.mxu0 0.0
      %2778 = vmatpush1.msra.mxu0 0.0
      %2779 = vmatprep.subr.mxu0 0.0
      %2780 = vmatpush1.msra.mxu0 0.0
      %2781 = vmatprep.subr.mxu0 0.0
      %2782 = vmatpush1.msra.mxu0 0.0
      %2783 = vmatprep.subr.mxu0 0.0
      %2784 = vmatpush1.msra.mxu0 0.0
      %2785 = vmatprep.subr.mxu0 0.0
      %2786 = vmatpush1.msra.mxu0 0.0
      %2787 = vmatprep.subr.mxu0 0.0
      %2788 = vmatpush1.msra.mxu0 0.0
      %2789 = vmatprep.subr.mxu0 0.0
      %2790 = vmatpush1.msra.mxu0 0.0
      %2791 = vmatprep.subr.mxu0 0.0
      %2792 = vmatpush1.msra.mxu0 0.0
      %2793 = vmatprep.subr.mxu0 0.0
      %2794 = vmatpush1.msra.mxu0 0.0
      %2795 = vmatprep.subr.mxu0 0.0
      %2796 = vmatpush1.msra.mxu0 0.0
      %2797 = vmatprep.subr.mxu0 0.0
      %2798 = vmatpush1.msra.mxu0 0.0
      %2799 = vmatprep.subr.mxu0 0.0
      %2800 = vmatpush1.msra.mxu0 0.0
      %2801 = vmatprep.subr.mxu0 0.0
      %2802 = vmatpush1.msra.mxu0 0.0
      %2803 = vmatprep.subr.mxu0 0.0
      %2804 = vmatpush1.msra.mxu0 0.0
      %2805 = vmatprep.subr.mxu0 0.0
      %2806 = vmatpush1.msra.mxu0 0.0
      %2807 = vmatprep.subr.mxu0 0.0
      %2808 = vmatpush1.msra.mxu0 0.0
      %2809 = vmatprep.subr.mxu0 0.0
      %2810 = vmatpush1.msra.mxu0 0.0
      %2811 = vmatprep.subr.mxu0 0.0
      %2812 = vmatpush1.msra.mxu0 0.0
      %2813 = vmatprep.subr.mxu0 0.0
      %2814 = vmatpush1.msra.mxu0 0.0
      %2815 = vmatprep.subr.mxu0 0.0
      %2816 = vmatpush1.msra.mxu0 0.0
      %2817 = vmatprep.subr.mxu0 0.0
      %2818 = vmatpush1.msra.mxu0 0.0
      %2819 = vmatprep.subr.mxu0 0.0
      %2820 = vmatpush1.msra.mxu0 0.0
      %2821 = vmatprep.subr.mxu0 0.0
      %2822 = vmatpush1.msra.mxu0 0.0
      %2823 = vmatprep.subr.mxu0 0.0
      %2824 = vmatpush1.msra.mxu0 0.0
      %2825 = vmatprep.mubr.f32.mxu0 0.0
      %v2826 = vand.u32 %v195, 4294901760
      %2827 = vmatmul.mubr.f32.gmra.mrb[0].mxu0 %v2826
      %v2828 = vpop.f32.mrb[0].mxu0
      %v2829 = vadd.f32 %v2428, %v2828
      %v2830 = vpop.f32.mrb[0].mxu0
      %2831 = vmatprep.mubr.f32.mxu0 0.0
      %v2832 = vand.u32 %v198, 4294901760
      %2833 = vmatmul.mubr.f32.gmra.mrb[0].mxu0 %v2832
      %v2834 = vpop.f32.mrb[0].mxu0
      %v2835 = vadd.f32 %v2438, %v2834
      %v2836 = vpop.f32.mrb[0].mxu0
      %2837 = vmatprep.mubr.f32.mxu0 0.0
      %v2838 = vand.u32 %v201, 4294901760
      %2839 = vmatmul.mubr.f32.gmra.mrb[0].mxu0 %v2838
      %v2840 = vpop.f32.mrb[0].mxu0
      %v2841 = vadd.f32 %v2448, %v2840
      %v2842 = vpop.f32.mrb[0].mxu0
      %2843 = vmatprep.mubr.f32.mxu0 0.0
      %v2844 = vand.u32 %v204, 4294901760
      %2845 = vmatmul.mubr.f32.gmra.mrb[0].mxu0 %v2844
      %v2846 = vpop.f32.mrb[0].mxu0
      %v2847 = vadd.f32 %v2458, %v2846
      %v2848 = vpop.f32.mrb[0].mxu0
      %2849 = vmatprep.mubr.f32.mxu0 0.0
      %v2850 = vand.u32 %v207, 4294901760
      %2851 = vmatmul.mubr.f32.gmra.mrb[0].mxu0 %v2850
      %v2852 = vpop.f32.mrb[0].mxu0
      %v2853 = vadd.f32 %v2468, %v2852
      %v2854 = vpop.f32.mrb[0].mxu0
      %2855 = vmatprep.mubr.f32.mxu0 0.0
      %v2856 = vand.u32 %v210, 4294901760
      %2857 = vmatmul.mubr.f32.gmra.mrb[0].mxu0 %v2856
      %v2858 = vpop.f32.mrb[0].mxu0
      %v2859 = vadd.f32 %v2478, %v2858
      %v2860 = vpop.f32.mrb[0].mxu0
      %2861 = vmatprep.mubr.f32.mxu0 0.0
      %v2862 = vand.u32 %v213, 4294901760
      %2863 = vmatmul.mubr.f32.gmra.mrb[0].mxu0 %v2862
      %v2864 = vpop.f32.mrb[0].mxu0
      %v2865 = vadd.f32 %v2488, %v2864
      %v2866 = vpop.f32.mrb[0].mxu0
      %2867 = vmatprep.mubr.f32.mxu0 0.0
      %v2868 = vand.u32 %v216, 4294901760
      %2869 = vmatmul.mubr.f32.gmra.mrb[0].mxu0 %v2868
      %v2870 = vpop.f32.mrb[0].mxu0
      %v2871 = vadd.f32 %v2498, %v2870
      %v2872 = vpop.f32.mrb[0].mxu0
      %2873 = vmatprep.mubr.f32.mxu0 0.0
      %v2874 = vand.u32 %v219, 4294901760
      %2875 = vmatmul.mubr.f32.gmra.mrb[0].mxu0 %v2874
      %v2876 = vpop.f32.mrb[0].mxu0
      %v2877 = vadd.f32 %v2508, %v2876
      %v2878 = vpop.f32.mrb[0].mxu0
      %2879 = vmatprep.mubr.f32.mxu0 0.0
      %v2880 = vand.u32 %v222, 4294901760
      %2881 = vmatmul.mubr.f32.gmra.mrb[0].mxu0 %v2880
      %v2882 = vpop.f32.mrb[0].mxu0
      %v2883 = vadd.f32 %v2518, %v2882
      %v2884 = vpop.f32.mrb[0].mxu0
      %2885 = vmatprep.mubr.f32.mxu0 0.0
      %v2886 = vand.u32 %v225, 4294901760
      %2887 = vmatmul.mubr.f32.gmra.mrb[0].mxu0 %v2886
      %v2888 = vpop.f32.mrb[0].mxu0
      %v2889 = vadd.f32 %v2528, %v2888
      %v2890 = vpop.f32.mrb[0].mxu0
      %2891 = vmatprep.mubr.f32.mxu0 0.0
      %v2892 = vand.u32 %v228, 4294901760
      %2893 = vmatmul.mubr.f32.gmra.mrb[0].mxu0 %v2892
      %v2894 = vpop.f32.mrb[0].mxu0
      %v2895 = vadd.f32 %v2538, %v2894
      %v2896 = vpop.f32.mrb[0].mxu0
      %2897 = vmatprep.mubr.f32.mxu0 0.0
      %v2898 = vand.u32 %v231, 4294901760
      %2899 = vmatmul.mubr.f32.gmra.mrb[0].mxu0 %v2898
      %v2900 = vpop.f32.mrb[0].mxu0
      %v2901 = vadd.f32 %v2548, %v2900
      %v2902 = vpop.f32.mrb[0].mxu0
      %2903 = vmatprep.mubr.f32.mxu0 0.0
      %v2904 = vand.u32 %v234, 4294901760
      %2905 = vmatmul.mubr.f32.gmra.mrb[0].mxu0 %v2904
      %v2906 = vpop.f32.mrb[0].mxu0
      %v2907 = vadd.f32 %v2558, %v2906
      %v2908 = vpop.f32.mrb[0].mxu0
      %2909 = vmatprep.mubr.f32.mxu0 0.0
      %v2910 = vand.u32 %v237, 4294901760
      %2911 = vmatmul.mubr.f32.gmra.mrb[0].mxu0 %v2910
      %v2912 = vpop.f32.mrb[0].mxu0
      %v2913 = vadd.f32 %v2568, %v2912
      %v2914 = vpop.f32.mrb[0].mxu0
      %2915 = vmatprep.mubr.f32.mxu0 0.0
      %v2916 = vand.u32 %v240, 4294901760
      %2917 = vmatmul.mubr.f32.gmra.mrb[0].mxu0 %v2916
      %v2918 = vpop.f32.mrb[0].mxu0
      %v2919 = vadd.f32 %v2578, %v2918
      %v2920 = vpop.f32.mrb[0].mxu0
      %2921 = vmatprep.mubr.f32.mxu0 0.0
      %v2922 = vand.u32 %v243, 4294901760
      %2923 = vmatmul.mubr.f32.gmra.mrb[0].mxu0 %v2922
      %v2924 = vpop.f32.mrb[0].mxu0
      %v2925 = vadd.f32 %v2588, %v2924
      %v2926 = vpop.f32.mrb[0].mxu0
      %2927 = vmatprep.mubr.f32.mxu0 0.0
      %v2928 = vand.u32 %v246, 4294901760
      %2929 = vmatmul.mubr.f32.gmra.mrb[0].mxu0 %v2928
      %v2930 = vpop.f32.mrb[0].mxu0
      %v2931 = vadd.f32 %v2598, %v2930
      %v2932 = vpop.f32.mrb[0].mxu0
      %2933 = vmatprep.mubr.f32.mxu0 0.0
      %v2934 = vand.u32 %v249, 4294901760
      %2935 = vmatmul.mubr.f32.gmra.mrb[0].mxu0 %v2934
      %v2936 = vpop.f32.mrb[0].mxu0
      %v2937 = vadd.f32 %v2608, %v2936
      %v2938 = vpop.f32.mrb[0].mxu0
      %2939 = vmatprep.mubr.f32.mxu0 0.0
      %v2940 = vand.u32 %v252, 4294901760
      %2941 = vmatmul.mubr.f32.gmra.mrb[0].mxu0 %v2940
      %v2942 = vpop.f32.mrb[0].mxu0
      %v2943 = vadd.f32 %v2618, %v2942
      %v2944 = vpop.f32.mrb[0].mxu0
      %2945 = vmatprep.mubr.f32.mxu0 0.0
      %v2946 = vand.u32 %v255, 4294901760
      %2947 = vmatmul.mubr.f32.gmra.mrb[0].mxu0 %v2946
      %v2948 = vpop.f32.mrb[0].mxu0
      %v2949 = vadd.f32 %v2628, %v2948
      %v2950 = vpop.f32.mrb[0].mxu0
      %2951 = vmatprep.mubr.f32.mxu0 0.0
      %v2952 = vand.u32 %v258, 4294901760
      %2953 = vmatmul.mubr.f32.gmra.mrb[0].mxu0 %v2952
      %v2954 = vpop.f32.mrb[0].mxu0
      %v2955 = vadd.f32 %v2638, %v2954
      %v2956 = vpop.f32.mrb[0].mxu0
      %2957 = vmatprep.mubr.f32.mxu0 0.0
      %v2958 = vand.u32 %v261, 4294901760
      %2959 = vmatmul.mubr.f32.gmra.mrb[0].mxu0 %v2958
      %v2960 = vpop.f32.mrb[0].mxu0
      %v2961 = vadd.f32 %v2648, %v2960
      %v2962 = vpop.f32.mrb[0].mxu0
      %2963 = vmatprep.mubr.f32.mxu0 0.0
      %v2964 = vand.u32 %v264, 4294901760
      %2965 = vmatmul.mubr.f32.gmra.mrb[0].mxu0 %v2964
      %v2966 = vpop.f32.mrb[0].mxu0
      %v2967 = vadd.f32 %v2658, %v2966
      %v2968 = vpop.f32.mrb[0].mxu0
      %2969 = vmatprep.mubr.f32.mxu0 0.0
      %v2970 = vand.u32 %v267, 4294901760
      %2971 = vmatmul.mubr.f32.gmra.mrb[0].mxu0 %v2970
      %v2972 = vpop.f32.mrb[0].mxu0
      %v2973 = vadd.f32 %v2668, %v2972
      %v2974 = vpop.f32.mrb[0].mxu0
      %2975 = vmatprep.mubr.f32.mxu0 0.0
      %v2976 = vand.u32 %v270, 4294901760
      %2977 = vmatmul.mubr.f32.gmra.mrb[0].mxu0 %v2976
      %v2978 = vpop.f32.mrb[0].mxu0
      %v2979 = vadd.f32 %v2678, %v2978
      %v2980 = vpop.f32.mrb[0].mxu0
      %2981 = vmatprep.mubr.f32.mxu0 0.0
      %v2982 = vand.u32 %v273, 4294901760
      %2983 = vmatmul.mubr.f32.gmra.mrb[0].mxu0 %v2982
      %v2984 = vpop.f32.mrb[0].mxu0
      %v2985 = vadd.f32 %v2688, %v2984
      %v2986 = vpop.f32.mrb[0].mxu0
      %2987 = vmatprep.mubr.f32.mxu0 0.0
      %v2988 = vand.u32 %v276, 4294901760
      %2989 = vmatmul.mubr.f32.gmra.mrb[0].mxu0 %v2988
      %v2990 = vpop.f32.mrb[0].mxu0
      %v2991 = vadd.f32 %v2698, %v2990
      %v2992 = vpop.f32.mrb[0].mxu0
      %2993 = vmatprep.mubr.f32.mxu0 0.0
      %v2994 = vand.u32 %v279, 4294901760
      %2995 = vmatmul.mubr.f32.gmra.mrb[0].mxu0 %v2994
      %v2996 = vpop.f32.mrb[0].mxu0
      %v2997 = vadd.f32 %v2708, %v2996
      %v2998 = vpop.f32.mrb[0].mxu0
      %2999 = vmatprep.mubr.f32.mxu0 0.0
      %v3000 = vand.u32 %v282, 4294901760
      %3001 = vmatmul.mubr.f32.gmra.mrb[0].mxu0 %v3000
      %v3002 = vpop.f32.mrb[0].mxu0
      %v3003 = vadd.f32 %v2718, %v3002
      %v3004 = vpop.f32.mrb[0].mxu0
      %3005 = vmatprep.mubr.f32.mxu0 0.0
      %v3006 = vand.u32 %v285, 4294901760
      %3007 = vmatmul.mubr.f32.gmra.mrb[0].mxu0 %v3006
      %v3008 = vpop.f32.mrb[0].mxu0
      %v3009 = vadd.f32 %v2728, %v3008
      %v3010 = vpop.f32.mrb[0].mxu0
      %3011 = vmatprep.mubr.f32.mxu0 0.0
      %v3012 = vand.u32 %v288, 4294901760
      %3013 = vmatmul.mubr.f32.gmra.mrb[0].mxu0 %v3012
      %v3014 = vpop.f32.mrb[0].mxu0
      %v3015 = vadd.f32 %v2738, %v3014
      %v3016 = vpop.f32.mrb[0].mxu0
      %3017 = vdwg.mxu0
      %3018 = vmatprep.subr.mxu0 0.0
      %v3019 = vand.u32 %v183, 4294901760
      %v3020 = vsub.f32 %v183, %v3019
      %3021 = vmatpush1.msra.mxu0 %v3020
      %3022 = vmatprep.subr.mxu0 0.0
      %v3023 = vand.u32 %v186, 4294901760
      %v3024 = vsub.f32 %v186, %v3023
      %3025 = vmatpush1.msra.mxu0 %v3024
      %3026 = vmatprep.subr.mxu0 0.0
      %v3027 = vand.u32 %v189, 4294901760
      %v3028 = vsub.f32 %v189, %v3027
      %3029 = vmatpush1.msra.mxu0 %v3028
      %3030 = vmatprep.subr.mxu0 0.0
      %v3031 = vand.u32 %v192, 4294901760
      %v3032 = vsub.f32 %v192, %v3031
      %3033 = vmatpush1.msra.mxu0 %v3032
      %3034 = vmatprep.subr.mxu0 0.0
      %3035 = vmatpush1.msra.mxu0 0.0
      %3036 = vmatprep.subr.mxu0 0.0
      %3037 = vmatpush1.msra.mxu0 0.0
      %3038 = vmatprep.subr.mxu0 0.0
      %3039 = vmatpush1.msra.mxu0 0.0
      %3040 = vmatprep.subr.mxu0 0.0
      %3041 = vmatpush1.msra.mxu0 0.0
      %3042 = vmatprep.subr.mxu0 0.0
      %3043 = vmatpush1.msra.mxu0 0.0
      %3044 = vmatprep.subr.mxu0 0.0
      %3045 = vmatpush1.msra.mxu0 0.0
      %3046 = vmatprep.subr.mxu0 0.0
      %3047 = vmatpush1.msra.mxu0 0.0
      %3048 = vmatprep.subr.mxu0 0.0
      %3049 = vmatpush1.msra.mxu0 0.0
      %3050 = vmatprep.subr.mxu0 0.0
      %3051 = vmatpush1.msra.mxu0 0.0
      %3052 = vmatprep.subr.mxu0 0.0
      %3053 = vmatpush1.msra.mxu0 0.0
      %3054 = vmatprep.subr.mxu0 0.0
      %3055 = vmatpush1.msra.mxu0 0.0
      %3056 = vmatprep.subr.mxu0 0.0
      %3057 = vmatpush1.msra.mxu0 0.0
      %3058 = vmatprep.subr.mxu0 0.0
      %3059 = vmatpush1.msra.mxu0 0.0
      %3060 = vmatprep.subr.mxu0 0.0
      %3061 = vmatpush1.msra.mxu0 0.0
      %3062 = vmatprep.subr.mxu0 0.0
      %3063 = vmatpush1.msra.mxu0 0.0
      %3064 = vmatprep.subr.mxu0 0.0
      %3065 = vmatpush1.msra.mxu0 0.0
      %3066 = vmatprep.subr.mxu0 0.0
      %3067 = vmatpush1.msra.mxu0 0.0
      %3068 = vmatprep.subr.mxu0 0.0
      %3069 = vmatpush1.msra.mxu0 0.0
      %3070 = vmatprep.subr.mxu0 0.0
      %3071 = vmatpush1.msra.mxu0 0.0
      %3072 = vmatprep.subr.mxu0 0.0
      %3073 = vmatpush1.msra.mxu0 0.0
      %3074 = vmatprep.subr.mxu0 0.0
      %3075 = vmatpush1.msra.mxu0 0.0
      %3076 = vmatprep.subr.mxu0 0.0
      %3077 = vmatpush1.msra.mxu0 0.0
      %3078 = vmatprep.subr.mxu0 0.0
      %3079 = vmatpush1.msra.mxu0 0.0
      %3080 = vmatprep.subr.mxu0 0.0
      %3081 = vmatpush1.msra.mxu0 0.0
      %3082 = vmatprep.subr.mxu0 0.0
      %3083 = vmatpush1.msra.mxu0 0.0
      %3084 = vmatprep.subr.mxu0 0.0
      %3085 = vmatpush1.msra.mxu0 0.0
      %3086 = vmatprep.subr.mxu0 0.0
      %3087 = vmatpush1.msra.mxu0 0.0
      %3088 = vmatprep.subr.mxu0 0.0
      %3089 = vmatpush1.msra.mxu0 0.0
      %3090 = vmatprep.mubr.f32.mxu0 0.0
      %v3091 = vand.u32 %v195, 4294901760
      %v3092 = vsub.f32 %v195, %v3091
      %3093 = vmatmul.mubr.f32.gmra.mrb[0].mxu0 %v3092
      %v3094 = vpop.f32.mrb[0].mxu0
      %v3095 = vadd.f32 %v2829, %v3094
      %v3096 = vpop.f32.mrb[0].mxu0
      %3097 = vmatprep.mubr.f32.mxu0 0.0
      %v3098 = vand.u32 %v198, 4294901760
      %v3099 = vsub.f32 %v198, %v3098
      %3100 = vmatmul.mubr.f32.gmra.mrb[0].mxu0 %v3099
      %v3101 = vpop.f32.mrb[0].mxu0
      %v3102 = vadd.f32 %v2835, %v3101
      %v3103 = vpop.f32.mrb[0].mxu0
      %3104 = vmatprep.mubr.f32.mxu0 0.0
      %v3105 = vand.u32 %v201, 4294901760
      %v3106 = vsub.f32 %v201, %v3105
      %3107 = vmatmul.mubr.f32.gmra.mrb[0].mxu0 %v3106
      %v3108 = vpop.f32.mrb[0].mxu0
      %v3109 = vadd.f32 %v2841, %v3108
      %v3110 = vpop.f32.mrb[0].mxu0
      %3111 = vmatprep.mubr.f32.mxu0 0.0
      %v3112 = vand.u32 %v204, 4294901760
      %v3113 = vsub.f32 %v204, %v3112
      %3114 = vmatmul.mubr.f32.gmra.mrb[0].mxu0 %v3113
      %v3115 = vpop.f32.mrb[0].mxu0
      %v3116 = vadd.f32 %v2847, %v3115
      %v3117 = vpop.f32.mrb[0].mxu0
      %3118 = vmatprep.mubr.f32.mxu0 0.0
      %v3119 = vand.u32 %v207, 4294901760
      %v3120 = vsub.f32 %v207, %v3119
      %3121 = vmatmul.mubr.f32.gmra.mrb[0].mxu0 %v3120
      %v3122 = vpop.f32.mrb[0].mxu0
      %v3123 = vadd.f32 %v2853, %v3122
      %v3124 = vpop.f32.mrb[0].mxu0
      %3125 = vmatprep.mubr.f32.mxu0 0.0
      %v3126 = vand.u32 %v210, 4294901760
      %v3127 = vsub.f32 %v210, %v3126
      %3128 = vmatmul.mubr.f32.gmra.mrb[0].mxu0 %v3127
      %v3129 = vpop.f32.mrb[0].mxu0
      %v3130 = vadd.f32 %v2859, %v3129
      %v3131 = vpop.f32.mrb[0].mxu0
      %3132 = vmatprep.mubr.f32.mxu0 0.0
      %v3133 = vand.u32 %v213, 4294901760
      %v3134 = vsub.f32 %v213, %v3133
      %3135 = vmatmul.mubr.f32.gmra.mrb[0].mxu0 %v3134
      %v3136 = vpop.f32.mrb[0].mxu0
      %v3137 = vadd.f32 %v2865, %v3136
      %v3138 = vpop.f32.mrb[0].mxu0
      %3139 = vmatprep.mubr.f32.mxu0 0.0
      %v3140 = vand.u32 %v216, 4294901760
      %v3141 = vsub.f32 %v216, %v3140
      %3142 = vmatmul.mubr.f32.gmra.mrb[0].mxu0 %v3141
      %v3143 = vpop.f32.mrb[0].mxu0
      %v3144 = vadd.f32 %v2871, %v3143
      %v3145 = vpop.f32.mrb[0].mxu0
      %3146 = vmatprep.mubr.f32.mxu0 0.0
      %v3147 = vand.u32 %v219, 4294901760
      %v3148 = vsub.f32 %v219, %v3147
      %3149 = vmatmul.mubr.f32.gmra.mrb[0].mxu0 %v3148
      %v3150 = vpop.f32.mrb[0].mxu0
      %v3151 = vadd.f32 %v2877, %v3150
      %v3152 = vpop.f32.mrb[0].mxu0
      %3153 = vmatprep.mubr.f32.mxu0 0.0
      %v3154 = vand.u32 %v222, 4294901760
      %v3155 = vsub.f32 %v222, %v3154
      %3156 = vmatmul.mubr.f32.gmra.mrb[0].mxu0 %v3155
      %v3157 = vpop.f32.mrb[0].mxu0
      %v3158 = vadd.f32 %v2883, %v3157
      %v3159 = vpop.f32.mrb[0].mxu0
      %3160 = vmatprep.mubr.f32.mxu0 0.0
      %v3161 = vand.u32 %v225, 4294901760
      %v3162 = vsub.f32 %v225, %v3161
      %3163 = vmatmul.mubr.f32.gmra.mrb[0].mxu0 %v3162
      %v3164 = vpop.f32.mrb[0].mxu0
      %v3165 = vadd.f32 %v2889, %v3164
      %v3166 = vpop.f32.mrb[0].mxu0
      %3167 = vmatprep.mubr.f32.mxu0 0.0
      %v3168 = vand.u32 %v228, 4294901760
      %v3169 = vsub.f32 %v228, %v3168
      %3170 = vmatmul.mubr.f32.gmra.mrb[0].mxu0 %v3169
      %v3171 = vpop.f32.mrb[0].mxu0
      %v3172 = vadd.f32 %v2895, %v3171
      %v3173 = vpop.f32.mrb[0].mxu0
      %3174 = vmatprep.mubr.f32.mxu0 0.0
      %v3175 = vand.u32 %v231, 4294901760
      %v3176 = vsub.f32 %v231, %v3175
      %3177 = vmatmul.mubr.f32.gmra.mrb[0].mxu0 %v3176
      %v3178 = vpop.f32.mrb[0].mxu0
      %v3179 = vadd.f32 %v2901, %v3178
      %v3180 = vpop.f32.mrb[0].mxu0
      %3181 = vmatprep.mubr.f32.mxu0 0.0
      %v3182 = vand.u32 %v234, 4294901760
      %v3183 = vsub.f32 %v234, %v3182
      %3184 = vmatmul.mubr.f32.gmra.mrb[0].mxu0 %v3183
      %v3185 = vpop.f32.mrb[0].mxu0
      %v3186 = vadd.f32 %v2907, %v3185
      %v3187 = vpop.f32.mrb[0].mxu0
      %3188 = vmatprep.mubr.f32.mxu0 0.0
      %v3189 = vand.u32 %v237, 4294901760
      %v3190 = vsub.f32 %v237, %v3189
      %3191 = vmatmul.mubr.f32.gmra.mrb[0].mxu0 %v3190
      %v3192 = vpop.f32.mrb[0].mxu0
      %v3193 = vadd.f32 %v2913, %v3192
      %v3194 = vpop.f32.mrb[0].mxu0
      %3195 = vmatprep.mubr.f32.mxu0 0.0
      %v3196 = vand.u32 %v240, 4294901760
      %v3197 = vsub.f32 %v240, %v3196
      %3198 = vmatmul.mubr.f32.gmra.mrb[0].mxu0 %v3197
      %v3199 = vpop.f32.mrb[0].mxu0
      %v3200 = vadd.f32 %v2919, %v3199
      %v3201 = vpop.f32.mrb[0].mxu0
      %3202 = vmatprep.mubr.f32.mxu0 0.0
      %v3203 = vand.u32 %v243, 4294901760
      %v3204 = vsub.f32 %v243, %v3203
      %3205 = vmatmul.mubr.f32.gmra.mrb[0].mxu0 %v3204
      %v3206 = vpop.f32.mrb[0].mxu0
      %v3207 = vadd.f32 %v2925, %v3206
      %v3208 = vpop.f32.mrb[0].mxu0
      %3209 = vmatprep.mubr.f32.mxu0 0.0
      %v3210 = vand.u32 %v246, 4294901760
      %v3211 = vsub.f32 %v246, %v3210
      %3212 = vmatmul.mubr.f32.gmra.mrb[0].mxu0 %v3211
      %v3213 = vpop.f32.mrb[0].mxu0
      %v3214 = vadd.f32 %v2931, %v3213
      %v3215 = vpop.f32.mrb[0].mxu0
      %3216 = vmatprep.mubr.f32.mxu0 0.0
      %v3217 = vand.u32 %v249, 4294901760
      %v3218 = vsub.f32 %v249, %v3217
      %3219 = vmatmul.mubr.f32.gmra.mrb[0].mxu0 %v3218
      %v3220 = vpop.f32.mrb[0].mxu0
      %v3221 = vadd.f32 %v2937, %v3220
      %v3222 = vpop.f32.mrb[0].mxu0
      %3223 = vmatprep.mubr.f32.mxu0 0.0
      %v3224 = vand.u32 %v252, 4294901760
      %v3225 = vsub.f32 %v252, %v3224
      %3226 = vmatmul.mubr.f32.gmra.mrb[0].mxu0 %v3225
      %v3227 = vpop.f32.mrb[0].mxu0
      %v3228 = vadd.f32 %v2943, %v3227
      %v3229 = vpop.f32.mrb[0].mxu0
      %3230 = vmatprep.mubr.f32.mxu0 0.0
      %v3231 = vand.u32 %v255, 4294901760
      %v3232 = vsub.f32 %v255, %v3231
      %3233 = vmatmul.mubr.f32.gmra.mrb[0].mxu0 %v3232
      %v3234 = vpop.f32.mrb[0].mxu0
      %v3235 = vadd.f32 %v2949, %v3234
      %v3236 = vpop.f32.mrb[0].mxu0
      %3237 = vmatprep.mubr.f32.mxu0 0.0
      %v3238 = vand.u32 %v258, 4294901760
      %v3239 = vsub.f32 %v258, %v3238
      %3240 = vmatmul.mubr.f32.gmra.mrb[0].mxu0 %v3239
      %v3241 = vpop.f32.mrb[0].mxu0
      %v3242 = vadd.f32 %v2955, %v3241
      %v3243 = vpop.f32.mrb[0].mxu0
      %3244 = vmatprep.mubr.f32.mxu0 0.0
      %v3245 = vand.u32 %v261, 4294901760
      %v3246 = vsub.f32 %v261, %v3245
      %3247 = vmatmul.mubr.f32.gmra.mrb[0].mxu0 %v3246
      %v3248 = vpop.f32.mrb[0].mxu0
      %v3249 = vadd.f32 %v2961, %v3248
      %v3250 = vpop.f32.mrb[0].mxu0
      %3251 = vmatprep.mubr.f32.mxu0 0.0
      %v3252 = vand.u32 %v264, 4294901760
      %v3253 = vsub.f32 %v264, %v3252
      %3254 = vmatmul.mubr.f32.gmra.mrb[0].mxu0 %v3253
      %v3255 = vpop.f32.mrb[0].mxu0
      %v3256 = vadd.f32 %v2967, %v3255
      %v3257 = vpop.f32.mrb[0].mxu0
      %3258 = vmatprep.mubr.f32.mxu0 0.0
      %v3259 = vand.u32 %v267, 4294901760
      %v3260 = vsub.f32 %v267, %v3259
      %3261 = vmatmul.mubr.f32.gmra.mrb[0].mxu0 %v3260
      %v3262 = vpop.f32.mrb[0].mxu0
      %v3263 = vadd.f32 %v2973, %v3262
      %v3264 = vpop.f32.mrb[0].mxu0
      %3265 = vmatprep.mubr.f32.mxu0 0.0
      %v3266 = vand.u32 %v270, 4294901760
      %v3267 = vsub.f32 %v270, %v3266
      %3268 = vmatmul.mubr.f32.gmra.mrb[0].mxu0 %v3267
      %v3269 = vpop.f32.mrb[0].mxu0
      %v3270 = vadd.f32 %v2979, %v3269
      %v3271 = vpop.f32.mrb[0].mxu0
      %3272 = vmatprep.mubr.f32.mxu0 0.0
      %v3273 = vand.u32 %v273, 4294901760
      %v3274 = vsub.f32 %v273, %v3273
      %3275 = vmatmul.mubr.f32.gmra.mrb[0].mxu0 %v3274
      %v3276 = vpop.f32.mrb[0].mxu0
      %v3277 = vadd.f32 %v2985, %v3276
      %v3278 = vpop.f32.mrb[0].mxu0
      %3279 = vmatprep.mubr.f32.mxu0 0.0
      %v3280 = vand.u32 %v276, 4294901760
      %v3281 = vsub.f32 %v276, %v3280
      %3282 = vmatmul.mubr.f32.gmra.mrb[0].mxu0 %v3281
      %v3283 = vpop.f32.mrb[0].mxu0
      %v3284 = vadd.f32 %v2991, %v3283
      %v3285 = vpop.f32.mrb[0].mxu0
      %3286 = vmatprep.mubr.f32.mxu0 0.0
      %v3287 = vand.u32 %v279, 4294901760
      %v3288 = vsub.f32 %v279, %v3287
      %3289 = vmatmul.mubr.f32.gmra.mrb[0].mxu0 %v3288
      %v3290 = vpop.f32.mrb[0].mxu0
      %v3291 = vadd.f32 %v2997, %v3290
      %v3292 = vpop.f32.mrb[0].mxu0
      %3293 = vmatprep.mubr.f32.mxu0 0.0
      %v3294 = vand.u32 %v282, 4294901760
      %v3295 = vsub.f32 %v282, %v3294
      %3296 = vmatmul.mubr.f32.gmra.mrb[0].mxu0 %v3295
      %v3297 = vpop.f32.mrb[0].mxu0
      %v3298 = vadd.f32 %v3003, %v3297
      %v3299 = vpop.f32.mrb[0].mxu0
      %3300 = vmatprep.mubr.f32.mxu0 0.0
      %v3301 = vand.u32 %v285, 4294901760
      %v3302 = vsub.f32 %v285, %v3301
      %3303 = vmatmul.mubr.f32.gmra.mrb[0].mxu0 %v3302
      %v3304 = vpop.f32.mrb[0].mxu0
      %v3305 = vadd.f32 %v3009, %v3304
      %v3306 = vpop.f32.mrb[0].mxu0
      %3307 = vmatprep.mubr.f32.mxu0 0.0
      %v3308 = vand.u32 %v288, 4294901760
      %v3309 = vsub.f32 %v288, %v3308
      %3310 = vmatmul.mubr.f32.gmra.mrb[0].mxu0 %v3309
      %v3311 = vpop.f32.mrb[0].mxu0
      %v3312 = vadd.f32 %v3015, %v3311
      %v3313 = vpop.f32.mrb[0].mxu0
      %3314 = vdwg.mxu0
      %3315 = vmatprep.subr.mxu0 0.0
      %v3316 = vand.u32 %v183, 4294901760
      %3317 = vmatpush1.msra.mxu0 %v3316
      %3318 = vmatprep.subr.mxu0 0.0
      %v3319 = vand.u32 %v186, 4294901760
      %3320 = vmatpush1.msra.mxu0 %v3319
      %3321 = vmatprep.subr.mxu0 0.0
      %v3322 = vand.u32 %v189, 4294901760
      %3323 = vmatpush1.msra.mxu0 %v3322
      %3324 = vmatprep.subr.mxu0 0.0
      %v3325 = vand.u32 %v192, 4294901760
      %3326 = vmatpush1.msra.mxu0 %v3325
      %3327 = vmatprep.subr.mxu0 0.0
      %3328 = vmatpush1.msra.mxu0 0.0
      %3329 = vmatprep.subr.mxu0 0.0
      %3330 = vmatpush1.msra.mxu0 0.0
      %3331 = vmatprep.subr.mxu0 0.0
      %3332 = vmatpush1.msra.mxu0 0.0
      %3333 = vmatprep.subr.mxu0 0.0
      %3334 = vmatpush1.msra.mxu0 0.0
      %3335 = vmatprep.subr.mxu0 0.0
      %3336 = vmatpush1.msra.mxu0 0.0
      %3337 = vmatprep.subr.mxu0 0.0
      %3338 = vmatpush1.msra.mxu0 0.0
      %3339 = vmatprep.subr.mxu0 0.0
      %3340 = vmatpush1.msra.mxu0 0.0
      %3341 = vmatprep.subr.mxu0 0.0
      %3342 = vmatpush1.msra.mxu0 0.0
      %3343 = vmatprep.subr.mxu0 0.0
      %3344 = vmatpush1.msra.mxu0 0.0
      %3345 = vmatprep.subr.mxu0 0.0
      %3346 = vmatpush1.msra.mxu0 0.0
      %3347 = vmatprep.subr.mxu0 0.0
      %3348 = vmatpush1.msra.mxu0 0.0
      %3349 = vmatprep.subr.mxu0 0.0
      %3350 = vmatpush1.msra.mxu0 0.0
      %3351 = vmatprep.subr.mxu0 0.0
      %3352 = vmatpush1.msra.mxu0 0.0
      %3353 = vmatprep.subr.mxu0 0.0
      %3354 = vmatpush1.msra.mxu0 0.0
      %3355 = vmatprep.subr.mxu0 0.0
      %3356 = vmatpush1.msra.mxu0 0.0
      %3357 = vmatprep.subr.mxu0 0.0
      %3358 = vmatpush1.msra.mxu0 0.0
      %3359 = vmatprep.subr.mxu0 0.0
      %3360 = vmatpush1.msra.mxu0 0.0
      %3361 = vmatprep.subr.mxu0 0.0
      %3362 = vmatpush1.msra.mxu0 0.0
      %3363 = vmatprep.subr.mxu0 0.0
      %3364 = vmatpush1.msra.mxu0 0.0
      %3365 = vmatprep.subr.mxu0 0.0
      %3366 = vmatpush1.msra.mxu0 0.0
      %3367 = vmatprep.subr.mxu0 0.0
      %3368 = vmatpush1.msra.mxu0 0.0
      %3369 = vmatprep.subr.mxu0 0.0
      %3370 = vmatpush1.msra.mxu0 0.0
      %3371 = vmatprep.subr.mxu0 0.0
      %3372 = vmatpush1.msra.mxu0 0.0
      %3373 = vmatprep.subr.mxu0 0.0
      %3374 = vmatpush1.msra.mxu0 0.0
      %3375 = vmatprep.subr.mxu0 0.0
      %3376 = vmatpush1.msra.mxu0 0.0
      %3377 = vmatprep.subr.mxu0 0.0
      %3378 = vmatpush1.msra.mxu0 0.0
      %3379 = vmatprep.subr.mxu0 0.0
      %3380 = vmatpush1.msra.mxu0 0.0
      %3381 = vmatprep.subr.mxu0 0.0
      %3382 = vmatpush1.msra.mxu0 0.0
      %3383 = vmatprep.mubr.f32.mxu0 0.0
      %v3384 = vand.u32 %v195, 4294901760
      %v3385 = vsub.f32 %v195, %v3384
      %v3386 = vand.u32 %v3385, 4294901760
      %3387 = vmatmul.mubr.f32.gmra.mrb[0].mxu0 %v3386
      %v3388 = vpop.f32.mrb[0].mxu0
      %v3389 = vadd.f32 %v3095, %v3388
      %v3390 = vpop.f32.mrb[0].mxu0
      %3391 = vmatprep.mubr.f32.mxu0 0.0
      %v3392 = vand.u32 %v198, 4294901760
      %v3393 = vsub.f32 %v198, %v3392
      %v3394 = vand.u32 %v3393, 4294901760
      %3395 = vmatmul.mubr.f32.gmra.mrb[0].mxu0 %v3394
      %v3396 = vpop.f32.mrb[0].mxu0
      %v3397 = vadd.f32 %v3102, %v3396
      %v3398 = vpop.f32.mrb[0].mxu0
      %3399 = vmatprep.mubr.f32.mxu0 0.0
      %v3400 = vand.u32 %v201, 4294901760
      %v3401 = vsub.f32 %v201, %v3400
      %v3402 = vand.u32 %v3401, 4294901760
      %3403 = vmatmul.mubr.f32.gmra.mrb[0].mxu0 %v3402
      %v3404 = vpop.f32.mrb[0].mxu0
      %v3405 = vadd.f32 %v3109, %v3404
      %v3406 = vpop.f32.mrb[0].mxu0
      %3407 = vmatprep.mubr.f32.mxu0 0.0
      %v3408 = vand.u32 %v204, 4294901760
      %v3409 = vsub.f32 %v204, %v3408
      %v3410 = vand.u32 %v3409, 4294901760
      %3411 = vmatmul.mubr.f32.gmra.mrb[0].mxu0 %v3410
      %v3412 = vpop.f32.mrb[0].mxu0
      %v3413 = vadd.f32 %v3116, %v3412
      %v3414 = vpop.f32.mrb[0].mxu0
      %3415 = vmatprep.mubr.f32.mxu0 0.0
      %v3416 = vand.u32 %v207, 4294901760
      %v3417 = vsub.f32 %v207, %v3416
      %v3418 = vand.u32 %v3417, 4294901760
      %3419 = vmatmul.mubr.f32.gmra.mrb[0].mxu0 %v3418
      %v3420 = vpop.f32.mrb[0].mxu0
      %v3421 = vadd.f32 %v3123, %v3420
      %v3422 = vpop.f32.mrb[0].mxu0
      %3423 = vmatprep.mubr.f32.mxu0 0.0
      %v3424 = vand.u32 %v210, 4294901760
      %v3425 = vsub.f32 %v210, %v3424
      %v3426 = vand.u32 %v3425, 4294901760
      %3427 = vmatmul.mubr.f32.gmra.mrb[0].mxu0 %v3426
      %v3428 = vpop.f32.mrb[0].mxu0
      %v3429 = vadd.f32 %v3130, %v3428
      %v3430 = vpop.f32.mrb[0].mxu0
      %3431 = vmatprep.mubr.f32.mxu0 0.0
      %v3432 = vand.u32 %v213, 4294901760
      %v3433 = vsub.f32 %v213, %v3432
      %v3434 = vand.u32 %v3433, 4294901760
      %3435 = vmatmul.mubr.f32.gmra.mrb[0].mxu0 %v3434
      %v3436 = vpop.f32.mrb[0].mxu0
      %v3437 = vadd.f32 %v3137, %v3436
      %v3438 = vpop.f32.mrb[0].mxu0
      %3439 = vmatprep.mubr.f32.mxu0 0.0
      %v3440 = vand.u32 %v216, 4294901760
      %v3441 = vsub.f32 %v216, %v3440
      %v3442 = vand.u32 %v3441, 4294901760
      %3443 = vmatmul.mubr.f32.gmra.mrb[0].mxu0 %v3442
      %v3444 = vpop.f32.mrb[0].mxu0
      %v3445 = vadd.f32 %v3144, %v3444
      %v3446 = vpop.f32.mrb[0].mxu0
      %3447 = vmatprep.mubr.f32.mxu0 0.0
      %v3448 = vand.u32 %v219, 4294901760
      %v3449 = vsub.f32 %v219, %v3448
      %v3450 = vand.u32 %v3449, 4294901760
      %3451 = vmatmul.mubr.f32.gmra.mrb[0].mxu0 %v3450
      %v3452 = vpop.f32.mrb[0].mxu0
      %v3453 = vadd.f32 %v3151, %v3452
      %v3454 = vpop.f32.mrb[0].mxu0
      %3455 = vmatprep.mubr.f32.mxu0 0.0
      %v3456 = vand.u32 %v222, 4294901760
      %v3457 = vsub.f32 %v222, %v3456
      %v3458 = vand.u32 %v3457, 4294901760
      %3459 = vmatmul.mubr.f32.gmra.mrb[0].mxu0 %v3458
      %v3460 = vpop.f32.mrb[0].mxu0
      %v3461 = vadd.f32 %v3158, %v3460
      %v3462 = vpop.f32.mrb[0].mxu0
      %3463 = vmatprep.mubr.f32.mxu0 0.0
      %v3464 = vand.u32 %v225, 4294901760
      %v3465 = vsub.f32 %v225, %v3464
      %v3466 = vand.u32 %v3465, 4294901760
      %3467 = vmatmul.mubr.f32.gmra.mrb[0].mxu0 %v3466
      %v3468 = vpop.f32.mrb[0].mxu0
      %v3469 = vadd.f32 %v3165, %v3468
      %v3470 = vpop.f32.mrb[0].mxu0
      %3471 = vmatprep.mubr.f32.mxu0 0.0
      %v3472 = vand.u32 %v228, 4294901760
      %v3473 = vsub.f32 %v228, %v3472
      %v3474 = vand.u32 %v3473, 4294901760
      %3475 = vmatmul.mubr.f32.gmra.mrb[0].mxu0 %v3474
      %v3476 = vpop.f32.mrb[0].mxu0
      %v3477 = vadd.f32 %v3172, %v3476
      %v3478 = vpop.f32.mrb[0].mxu0
      %3479 = vmatprep.mubr.f32.mxu0 0.0
      %v3480 = vand.u32 %v231, 4294901760
      %v3481 = vsub.f32 %v231, %v3480
      %v3482 = vand.u32 %v3481, 4294901760
      %3483 = vmatmul.mubr.f32.gmra.mrb[0].mxu0 %v3482
      %v3484 = vpop.f32.mrb[0].mxu0
      %v3485 = vadd.f32 %v3179, %v3484
      %v3486 = vpop.f32.mrb[0].mxu0
      %3487 = vmatprep.mubr.f32.mxu0 0.0
      %v3488 = vand.u32 %v234, 4294901760
      %v3489 = vsub.f32 %v234, %v3488
      %v3490 = vand.u32 %v3489, 4294901760
      %3491 = vmatmul.mubr.f32.gmra.mrb[0].mxu0 %v3490
      %v3492 = vpop.f32.mrb[0].mxu0
      %v3493 = vadd.f32 %v3186, %v3492
      %v3494 = vpop.f32.mrb[0].mxu0
      %3495 = vmatprep.mubr.f32.mxu0 0.0
      %v3496 = vand.u32 %v237, 4294901760
      %v3497 = vsub.f32 %v237, %v3496
      %v3498 = vand.u32 %v3497, 4294901760
      %3499 = vmatmul.mubr.f32.gmra.mrb[0].mxu0 %v3498
      %v3500 = vpop.f32.mrb[0].mxu0
      %v3501 = vadd.f32 %v3193, %v3500
      %v3502 = vpop.f32.mrb[0].mxu0
      %3503 = vmatprep.mubr.f32.mxu0 0.0
      %v3504 = vand.u32 %v240, 4294901760
      %v3505 = vsub.f32 %v240, %v3504
      %v3506 = vand.u32 %v3505, 4294901760
      %3507 = vmatmul.mubr.f32.gmra.mrb[0].mxu0 %v3506
      %v3508 = vpop.f32.mrb[0].mxu0
      %v3509 = vadd.f32 %v3200, %v3508
      %v3510 = vpop.f32.mrb[0].mxu0
      %3511 = vmatprep.mubr.f32.mxu0 0.0
      %v3512 = vand.u32 %v243, 4294901760
      %v3513 = vsub.f32 %v243, %v3512
      %v3514 = vand.u32 %v3513, 4294901760
      %3515 = vmatmul.mubr.f32.gmra.mrb[0].mxu0 %v3514
      %v3516 = vpop.f32.mrb[0].mxu0
      %v3517 = vadd.f32 %v3207, %v3516
      %v3518 = vpop.f32.mrb[0].mxu0
      %3519 = vmatprep.mubr.f32.mxu0 0.0
      %v3520 = vand.u32 %v246, 4294901760
      %v3521 = vsub.f32 %v246, %v3520
      %v3522 = vand.u32 %v3521, 4294901760
      %3523 = vmatmul.mubr.f32.gmra.mrb[0].mxu0 %v3522
      %v3524 = vpop.f32.mrb[0].mxu0
      %v3525 = vadd.f32 %v3214, %v3524
      %v3526 = vpop.f32.mrb[0].mxu0
      %3527 = vmatprep.mubr.f32.mxu0 0.0
      %v3528 = vand.u32 %v249, 4294901760
      %v3529 = vsub.f32 %v249, %v3528
      %v3530 = vand.u32 %v3529, 4294901760
      %3531 = vmatmul.mubr.f32.gmra.mrb[0].mxu0 %v3530
      %v3532 = vpop.f32.mrb[0].mxu0
      %v3533 = vadd.f32 %v3221, %v3532
      %v3534 = vpop.f32.mrb[0].mxu0
      %3535 = vmatprep.mubr.f32.mxu0 0.0
      %v3536 = vand.u32 %v252, 4294901760
      %v3537 = vsub.f32 %v252, %v3536
      %v3538 = vand.u32 %v3537, 4294901760
      %3539 = vmatmul.mubr.f32.gmra.mrb[0].mxu0 %v3538
      %v3540 = vpop.f32.mrb[0].mxu0
      %v3541 = vadd.f32 %v3228, %v3540
      %v3542 = vpop.f32.mrb[0].mxu0
      %3543 = vmatprep.mubr.f32.mxu0 0.0
      %v3544 = vand.u32 %v255, 4294901760
      %v3545 = vsub.f32 %v255, %v3544
      %v3546 = vand.u32 %v3545, 4294901760
      %3547 = vmatmul.mubr.f32.gmra.mrb[0].mxu0 %v3546
      %v3548 = vpop.f32.mrb[0].mxu0
      %v3549 = vadd.f32 %v3235, %v3548
      %v3550 = vpop.f32.mrb[0].mxu0
      %3551 = vmatprep.mubr.f32.mxu0 0.0
      %v3552 = vand.u32 %v258, 4294901760
      %v3553 = vsub.f32 %v258, %v3552
      %v3554 = vand.u32 %v3553, 4294901760
      %3555 = vmatmul.mubr.f32.gmra.mrb[0].mxu0 %v3554
      %v3556 = vpop.f32.mrb[0].mxu0
      %v3557 = vadd.f32 %v3242, %v3556
      %v3558 = vpop.f32.mrb[0].mxu0
      %3559 = vmatprep.mubr.f32.mxu0 0.0
      %v3560 = vand.u32 %v261, 4294901760
      %v3561 = vsub.f32 %v261, %v3560
      %v3562 = vand.u32 %v3561, 4294901760
      %3563 = vmatmul.mubr.f32.gmra.mrb[0].mxu0 %v3562
      %v3564 = vpop.f32.mrb[0].mxu0
      %v3565 = vadd.f32 %v3249, %v3564
      %v3566 = vpop.f32.mrb[0].mxu0
      %3567 = vmatprep.mubr.f32.mxu0 0.0
      %v3568 = vand.u32 %v264, 4294901760
      %v3569 = vsub.f32 %v264, %v3568
      %v3570 = vand.u32 %v3569, 4294901760
      %3571 = vmatmul.mubr.f32.gmra.mrb[0].mxu0 %v3570
      %v3572 = vpop.f32.mrb[0].mxu0
      %v3573 = vadd.f32 %v3256, %v3572
      %v3574 = vpop.f32.mrb[0].mxu0
      %3575 = vmatprep.mubr.f32.mxu0 0.0
      %v3576 = vand.u32 %v267, 4294901760
      %v3577 = vsub.f32 %v267, %v3576
      %v3578 = vand.u32 %v3577, 4294901760
      %3579 = vmatmul.mubr.f32.gmra.mrb[0].mxu0 %v3578
      %v3580 = vpop.f32.mrb[0].mxu0
      %v3581 = vadd.f32 %v3263, %v3580
      %v3582 = vpop.f32.mrb[0].mxu0
      %3583 = vmatprep.mubr.f32.mxu0 0.0
      %v3584 = vand.u32 %v270, 4294901760
      %v3585 = vsub.f32 %v270, %v3584
      %v3586 = vand.u32 %v3585, 4294901760
      %3587 = vmatmul.mubr.f32.gmra.mrb[0].mxu0 %v3586
      %v3588 = vpop.f32.mrb[0].mxu0
      %v3589 = vadd.f32 %v3270, %v3588
      %v3590 = vpop.f32.mrb[0].mxu0
      %3591 = vmatprep.mubr.f32.mxu0 0.0
      %v3592 = vand.u32 %v273, 4294901760
      %v3593 = vsub.f32 %v273, %v3592
      %v3594 = vand.u32 %v3593, 4294901760
      %3595 = vmatmul.mubr.f32.gmra.mrb[0].mxu0 %v3594
      %v3596 = vpop.f32.mrb[0].mxu0
      %v3597 = vadd.f32 %v3277, %v3596
      %v3598 = vpop.f32.mrb[0].mxu0
      %3599 = vmatprep.mubr.f32.mxu0 0.0
      %v3600 = vand.u32 %v276, 4294901760
      %v3601 = vsub.f32 %v276, %v3600
      %v3602 = vand.u32 %v3601, 4294901760
      %3603 = vmatmul.mubr.f32.gmra.mrb[0].mxu0 %v3602
      %v3604 = vpop.f32.mrb[0].mxu0
      %v3605 = vadd.f32 %v3284, %v3604
      %v3606 = vpop.f32.mrb[0].mxu0
      %3607 = vmatprep.mubr.f32.mxu0 0.0
      %v3608 = vand.u32 %v279, 4294901760
      %v3609 = vsub.f32 %v279, %v3608
      %v3610 = vand.u32 %v3609, 4294901760
      %3611 = vmatmul.mubr.f32.gmra.mrb[0].mxu0 %v3610
      %v3612 = vpop.f32.mrb[0].mxu0
      %v3613 = vadd.f32 %v3291, %v3612
      %v3614 = vpop.f32.mrb[0].mxu0
      %3615 = vmatprep.mubr.f32.mxu0 0.0
      %v3616 = vand.u32 %v282, 4294901760
      %v3617 = vsub.f32 %v282, %v3616
      %v3618 = vand.u32 %v3617, 4294901760
      %3619 = vmatmul.mubr.f32.gmra.mrb[0].mxu0 %v3618
      %v3620 = vpop.f32.mrb[0].mxu0
      %v3621 = vadd.f32 %v3298, %v3620
      %v3622 = vpop.f32.mrb[0].mxu0
      %3623 = vmatprep.mubr.f32.mxu0 0.0
      %v3624 = vand.u32 %v285, 4294901760
      %v3625 = vsub.f32 %v285, %v3624
      %v3626 = vand.u32 %v3625, 4294901760
      %3627 = vmatmul.mubr.f32.gmra.mrb[0].mxu0 %v3626
      %v3628 = vpop.f32.mrb[0].mxu0
      %v3629 = vadd.f32 %v3305, %v3628
      %v3630 = vpop.f32.mrb[0].mxu0
      %3631 = vmatprep.mubr.f32.mxu0 0.0
      %v3632 = vand.u32 %v288, 4294901760
      %v3633 = vsub.f32 %v288, %v3632
      %v3634 = vand.u32 %v3633, 4294901760
      %3635 = vmatmul.mubr.f32.gmra.mrb[0].mxu0 %v3634
      %v3636 = vpop.f32.mrb[0].mxu0
      %v3637 = vadd.f32 %v3312, %v3636
      %v3638 = vpop.f32.mrb[0].mxu0
      %3639 = vdwg.mxu0
      %3640 = vmatprep.subr.mxu0 0.0
      %v3641 = vand.u32 %v183, 4294901760
      %v3642 = vsub.f32 %v183, %v3641
      %v3643 = vand.u32 %v3642, 4294901760
      %3644 = vmatpush1.msra.mxu0 %v3643
      %3645 = vmatprep.subr.mxu0 0.0
      %v3646 = vand.u32 %v186, 4294901760
      %v3647 = vsub.f32 %v186, %v3646
      %v3648 = vand.u32 %v3647, 4294901760
      %3649 = vmatpush1.msra.mxu0 %v3648
      %3650 = vmatprep.subr.mxu0 0.0
      %v3651 = vand.u32 %v189, 4294901760
      %v3652 = vsub.f32 %v189, %v3651
      %v3653 = vand.u32 %v3652, 4294901760
      %3654 = vmatpush1.msra.mxu0 %v3653
      %3655 = vmatprep.subr.mxu0 0.0
      %v3656 = vand.u32 %v192, 4294901760
      %v3657 = vsub.f32 %v192, %v3656
      %v3658 = vand.u32 %v3657, 4294901760
      %3659 = vmatpush1.msra.mxu0 %v3658
      %3660 = vmatprep.subr.mxu0 0.0
      %3661 = vmatpush1.msra.mxu0 0.0
      %3662 = vmatprep.subr.mxu0 0.0
      %3663 = vmatpush1.msra.mxu0 0.0
      %3664 = vmatprep.subr.mxu0 0.0
      %3665 = vmatpush1.msra.mxu0 0.0
      %3666 = vmatprep.subr.mxu0 0.0
      %3667 = vmatpush1.msra.mxu0 0.0
      %3668 = vmatprep.subr.mxu0 0.0
      %3669 = vmatpush1.msra.mxu0 0.0
      %3670 = vmatprep.subr.mxu0 0.0
      %3671 = vmatpush1.msra.mxu0 0.0
      %3672 = vmatprep.subr.mxu0 0.0
      %3673 = vmatpush1.msra.mxu0 0.0
      %3674 = vmatprep.subr.mxu0 0.0
      %3675 = vmatpush1.msra.mxu0 0.0
      %3676 = vmatprep.subr.mxu0 0.0
      %3677 = vmatpush1.msra.mxu0 0.0
      %3678 = vmatprep.subr.mxu0 0.0
      %3679 = vmatpush1.msra.mxu0 0.0
      %3680 = vmatprep.subr.mxu0 0.0
      %3681 = vmatpush1.msra.mxu0 0.0
      %3682 = vmatprep.subr.mxu0 0.0
      %3683 = vmatpush1.msra.mxu0 0.0
      %3684 = vmatprep.subr.mxu0 0.0
      %3685 = vmatpush1.msra.mxu0 0.0
      %3686 = vmatprep.subr.mxu0 0.0
      %3687 = vmatpush1.msra.mxu0 0.0
      %3688 = vmatprep.subr.mxu0 0.0
      %3689 = vmatpush1.msra.mxu0 0.0
      %3690 = vmatprep.subr.mxu0 0.0
      %3691 = vmatpush1.msra.mxu0 0.0
      %3692 = vmatprep.subr.mxu0 0.0
      %3693 = vmatpush1.msra.mxu0 0.0
      %3694 = vmatprep.subr.mxu0 0.0
      %3695 = vmatpush1.msra.mxu0 0.0
      %3696 = vmatprep.subr.mxu0 0.0
      %3697 = vmatpush1.msra.mxu0 0.0
      %3698 = vmatprep.subr.mxu0 0.0
      %3699 = vmatpush1.msra.mxu0 0.0
      %3700 = vmatprep.subr.mxu0 0.0
      %3701 = vmatpush1.msra.mxu0 0.0
      %3702 = vmatprep.subr.mxu0 0.0
      %3703 = vmatpush1.msra.mxu0 0.0
      %3704 = vmatprep.subr.mxu0 0.0
      %3705 = vmatpush1.msra.mxu0 0.0
      %3706 = vmatprep.subr.mxu0 0.0
      %3707 = vmatpush1.msra.mxu0 0.0
      %3708 = vmatprep.subr.mxu0 0.0
      %3709 = vmatpush1.msra.mxu0 0.0
      %3710 = vmatprep.subr.mxu0 0.0
      %3711 = vmatpush1.msra.mxu0 0.0
      %3712 = vmatprep.subr.mxu0 0.0
      %3713 = vmatpush1.msra.mxu0 0.0
      %3714 = vmatprep.subr.mxu0 0.0
      %3715 = vmatpush1.msra.mxu0 0.0
      %3716 = vmatprep.mubr.f32.mxu0 0.0
      %v3717 = vand.u32 %v195, 4294901760
      %3718 = vmatmul.mubr.f32.gmra.mrb[0].mxu0 %v3717
      %v3719 = vpop.f32.mrb[0].mxu0
      %v3720 = vadd.f32 %v3389, %v3719
      %v3721 = vpop.f32.mrb[0].mxu0
      %3722 = vmatprep.mubr.f32.mxu0 0.0
      %v3723 = vand.u32 %v198, 4294901760
      %3724 = vmatmul.mubr.f32.gmra.mrb[0].mxu0 %v3723
      %v3725 = vpop.f32.mrb[0].mxu0
      %v3726 = vadd.f32 %v3397, %v3725
      %v3727 = vpop.f32.mrb[0].mxu0
      %3728 = vmatprep.mubr.f32.mxu0 0.0
      %v3729 = vand.u32 %v201, 4294901760
      %3730 = vmatmul.mubr.f32.gmra.mrb[0].mxu0 %v3729
      %v3731 = vpop.f32.mrb[0].mxu0
      %v3732 = vadd.f32 %v3405, %v3731
      %v3733 = vpop.f32.mrb[0].mxu0
      %3734 = vmatprep.mubr.f32.mxu0 0.0
      %v3735 = vand.u32 %v204, 4294901760
      %3736 = vmatmul.mubr.f32.gmra.mrb[0].mxu0 %v3735
      %v3737 = vpop.f32.mrb[0].mxu0
      %v3738 = vadd.f32 %v3413, %v3737
      %v3739 = vpop.f32.mrb[0].mxu0
      %3740 = vmatprep.mubr.f32.mxu0 0.0
      %v3741 = vand.u32 %v207, 4294901760
      %3742 = vmatmul.mubr.f32.gmra.mrb[0].mxu0 %v3741
      %v3743 = vpop.f32.mrb[0].mxu0
      %v3744 = vadd.f32 %v3421, %v3743
      %v3745 = vpop.f32.mrb[0].mxu0
      %3746 = vmatprep.mubr.f32.mxu0 0.0
      %v3747 = vand.u32 %v210, 4294901760
      %3748 = vmatmul.mubr.f32.gmra.mrb[0].mxu0 %v3747
      %v3749 = vpop.f32.mrb[0].mxu0
      %v3750 = vadd.f32 %v3429, %v3749
      %v3751 = vpop.f32.mrb[0].mxu0
      %3752 = vmatprep.mubr.f32.mxu0 0.0
      %v3753 = vand.u32 %v213, 4294901760
      %3754 = vmatmul.mubr.f32.gmra.mrb[0].mxu0 %v3753
      %v3755 = vpop.f32.mrb[0].mxu0
      %v3756 = vadd.f32 %v3437, %v3755
      %v3757 = vpop.f32.mrb[0].mxu0
      %3758 = vmatprep.mubr.f32.mxu0 0.0
      %v3759 = vand.u32 %v216, 4294901760
      %3760 = vmatmul.mubr.f32.gmra.mrb[0].mxu0 %v3759
      %v3761 = vpop.f32.mrb[0].mxu0
      %v3762 = vadd.f32 %v3445, %v3761
      %v3763 = vpop.f32.mrb[0].mxu0
      %3764 = vmatprep.mubr.f32.mxu0 0.0
      %v3765 = vand.u32 %v219, 4294901760
      %3766 = vmatmul.mubr.f32.gmra.mrb[0].mxu0 %v3765
      %v3767 = vpop.f32.mrb[0].mxu0
      %v3768 = vadd.f32 %v3453, %v3767
      %v3769 = vpop.f32.mrb[0].mxu0
      %3770 = vmatprep.mubr.f32.mxu0 0.0
      %v3771 = vand.u32 %v222, 4294901760
      %3772 = vmatmul.mubr.f32.gmra.mrb[0].mxu0 %v3771
      %v3773 = vpop.f32.mrb[0].mxu0
      %v3774 = vadd.f32 %v3461, %v3773
      %v3775 = vpop.f32.mrb[0].mxu0
      %3776 = vmatprep.mubr.f32.mxu0 0.0
      %v3777 = vand.u32 %v225, 4294901760
      %3778 = vmatmul.mubr.f32.gmra.mrb[0].mxu0 %v3777
      %v3779 = vpop.f32.mrb[0].mxu0
      %v3780 = vadd.f32 %v3469, %v3779
      %v3781 = vpop.f32.mrb[0].mxu0
      %3782 = vmatprep.mubr.f32.mxu0 0.0
      %v3783 = vand.u32 %v228, 4294901760
      %3784 = vmatmul.mubr.f32.gmra.mrb[0].mxu0 %v3783
      %v3785 = vpop.f32.mrb[0].mxu0
      %v3786 = vadd.f32 %v3477, %v3785
      %v3787 = vpop.f32.mrb[0].mxu0
      %3788 = vmatprep.mubr.f32.mxu0 0.0
      %v3789 = vand.u32 %v231, 4294901760
      %3790 = vmatmul.mubr.f32.gmra.mrb[0].mxu0 %v3789
      %v3791 = vpop.f32.mrb[0].mxu0
      %v3792 = vadd.f32 %v3485, %v3791
      %v3793 = vpop.f32.mrb[0].mxu0
      %3794 = vmatprep.mubr.f32.mxu0 0.0
      %v3795 = vand.u32 %v234, 4294901760
      %3796 = vmatmul.mubr.f32.gmra.mrb[0].mxu0 %v3795
      %v3797 = vpop.f32.mrb[0].mxu0
      %v3798 = vadd.f32 %v3493, %v3797
      %v3799 = vpop.f32.mrb[0].mxu0
      %3800 = vmatprep.mubr.f32.mxu0 0.0
      %v3801 = vand.u32 %v237, 4294901760
      %3802 = vmatmul.mubr.f32.gmra.mrb[0].mxu0 %v3801
      %v3803 = vpop.f32.mrb[0].mxu0
      %v3804 = vadd.f32 %v3501, %v3803
      %v3805 = vpop.f32.mrb[0].mxu0
      %3806 = vmatprep.mubr.f32.mxu0 0.0
      %v3807 = vand.u32 %v240, 4294901760
      %3808 = vmatmul.mubr.f32.gmra.mrb[0].mxu0 %v3807
      %v3809 = vpop.f32.mrb[0].mxu0
      %v3810 = vadd.f32 %v3509, %v3809
      %v3811 = vpop.f32.mrb[0].mxu0
      %3812 = vmatprep.mubr.f32.mxu0 0.0
      %v3813 = vand.u32 %v243, 4294901760
      %3814 = vmatmul.mubr.f32.gmra.mrb[0].mxu0 %v3813
      %v3815 = vpop.f32.mrb[0].mxu0
      %v3816 = vadd.f32 %v3517, %v3815
      %v3817 = vpop.f32.mrb[0].mxu0
      %3818 = vmatprep.mubr.f32.mxu0 0.0
      %v3819 = vand.u32 %v246, 4294901760
      %3820 = vmatmul.mubr.f32.gmra.mrb[0].mxu0 %v3819
      %v3821 = vpop.f32.mrb[0].mxu0
      %v3822 = vadd.f32 %v3525, %v3821
      %v3823 = vpop.f32.mrb[0].mxu0
      %3824 = vmatprep.mubr.f32.mxu0 0.0
      %v3825 = vand.u32 %v249, 4294901760
      %3826 = vmatmul.mubr.f32.gmra.mrb[0].mxu0 %v3825
      %v3827 = vpop.f32.mrb[0].mxu0
      %v3828 = vadd.f32 %v3533, %v3827
      %v3829 = vpop.f32.mrb[0].mxu0
      %3830 = vmatprep.mubr.f32.mxu0 0.0
      %v3831 = vand.u32 %v252, 4294901760
      %3832 = vmatmul.mubr.f32.gmra.mrb[0].mxu0 %v3831
      %v3833 = vpop.f32.mrb[0].mxu0
      %v3834 = vadd.f32 %v3541, %v3833
      %v3835 = vpop.f32.mrb[0].mxu0
      %3836 = vmatprep.mubr.f32.mxu0 0.0
      %v3837 = vand.u32 %v255, 4294901760
      %3838 = vmatmul.mubr.f32.gmra.mrb[0].mxu0 %v3837
      %v3839 = vpop.f32.mrb[0].mxu0
      %v3840 = vadd.f32 %v3549, %v3839
      %v3841 = vpop.f32.mrb[0].mxu0
      %3842 = vmatprep.mubr.f32.mxu0 0.0
      %v3843 = vand.u32 %v258, 4294901760
      %3844 = vmatmul.mubr.f32.gmra.mrb[0].mxu0 %v3843
      %v3845 = vpop.f32.mrb[0].mxu0
      %v3846 = vadd.f32 %v3557, %v3845
      %v3847 = vpop.f32.mrb[0].mxu0
      %3848 = vmatprep.mubr.f32.mxu0 0.0
      %v3849 = vand.u32 %v261, 4294901760
      %3850 = vmatmul.mubr.f32.gmra.mrb[0].mxu0 %v3849
      %v3851 = vpop.f32.mrb[0].mxu0
      %v3852 = vadd.f32 %v3565, %v3851
      %v3853 = vpop.f32.mrb[0].mxu0
      %3854 = vmatprep.mubr.f32.mxu0 0.0
      %v3855 = vand.u32 %v264, 4294901760
      %3856 = vmatmul.mubr.f32.gmra.mrb[0].mxu0 %v3855
      %v3857 = vpop.f32.mrb[0].mxu0
      %v3858 = vadd.f32 %v3573, %v3857
      %v3859 = vpop.f32.mrb[0].mxu0
      %3860 = vmatprep.mubr.f32.mxu0 0.0
      %v3861 = vand.u32 %v267, 4294901760
      %3862 = vmatmul.mubr.f32.gmra.mrb[0].mxu0 %v3861
      %v3863 = vpop.f32.mrb[0].mxu0
      %v3864 = vadd.f32 %v3581, %v3863
      %v3865 = vpop.f32.mrb[0].mxu0
      %3866 = vmatprep.mubr.f32.mxu0 0.0
      %v3867 = vand.u32 %v270, 4294901760
      %3868 = vmatmul.mubr.f32.gmra.mrb[0].mxu0 %v3867
      %v3869 = vpop.f32.mrb[0].mxu0
      %v3870 = vadd.f32 %v3589, %v3869
      %v3871 = vpop.f32.mrb[0].mxu0
      %3872 = vmatprep.mubr.f32.mxu0 0.0
      %v3873 = vand.u32 %v273, 4294901760
      %3874 = vmatmul.mubr.f32.gmra.mrb[0].mxu0 %v3873
      %v3875 = vpop.f32.mrb[0].mxu0
      %v3876 = vadd.f32 %v3597, %v3875
      %v3877 = vpop.f32.mrb[0].mxu0
      %3878 = vmatprep.mubr.f32.mxu0 0.0
      %v3879 = vand.u32 %v276, 4294901760
      %3880 = vmatmul.mubr.f32.gmra.mrb[0].mxu0 %v3879
      %v3881 = vpop.f32.mrb[0].mxu0
      %v3882 = vadd.f32 %v3605, %v3881
      %v3883 = vpop.f32.mrb[0].mxu0
      %3884 = vmatprep.mubr.f32.mxu0 0.0
      %v3885 = vand.u32 %v279, 4294901760
      %3886 = vmatmul.mubr.f32.gmra.mrb[0].mxu0 %v3885
      %v3887 = vpop.f32.mrb[0].mxu0
      %v3888 = vadd.f32 %v3613, %v3887
      %v3889 = vpop.f32.mrb[0].mxu0
      %3890 = vmatprep.mubr.f32.mxu0 0.0
      %v3891 = vand.u32 %v282, 4294901760
      %3892 = vmatmul.mubr.f32.gmra.mrb[0].mxu0 %v3891
      %v3893 = vpop.f32.mrb[0].mxu0
      %v3894 = vadd.f32 %v3621, %v3893
      %v3895 = vpop.f32.mrb[0].mxu0
      %3896 = vmatprep.mubr.f32.mxu0 0.0
      %v3897 = vand.u32 %v285, 4294901760
      %3898 = vmatmul.mubr.f32.gmra.mrb[0].mxu0 %v3897
      %v3899 = vpop.f32.mrb[0].mxu0
      %v3900 = vadd.f32 %v3629, %v3899
      %v3901 = vpop.f32.mrb[0].mxu0
      %3902 = vmatprep.mubr.f32.mxu0 0.0
      %v3903 = vand.u32 %v288, 4294901760
      %3904 = vmatmul.mubr.f32.gmra.mrb[0].mxu0 %v3903
      %v3905 = vpop.f32.mrb[0].mxu0
      %v3906 = vadd.f32 %v3637, %v3905
      %v3907 = vpop.f32.mrb[0].mxu0
      %3908 = vdwg.mxu0
      %3909 = vmatprep.subr.mxu0 0.0
      %v3910 = vand.u32 %v183, 4294901760
      %3911 = vmatpush1.msra.mxu0 %v3910
      %3912 = vmatprep.subr.mxu0 0.0
      %v3913 = vand.u32 %v186, 4294901760
      %3914 = vmatpush1.msra.mxu0 %v3913
      %3915 = vmatprep.subr.mxu0 0.0
      %v3916 = vand.u32 %v189, 4294901760
      %3917 = vmatpush1.msra.mxu0 %v3916
      %3918 = vmatprep.subr.mxu0 0.0
      %v3919 = vand.u32 %v192, 4294901760
      %3920 = vmatpush1.msra.mxu0 %v3919
      %3921 = vmatprep.subr.mxu0 0.0
      %3922 = vmatpush1.msra.mxu0 0.0
      %3923 = vmatprep.subr.mxu0 0.0
      %3924 = vmatpush1.msra.mxu0 0.0
      %3925 = vmatprep.subr.mxu0 0.0
      %3926 = vmatpush1.msra.mxu0 0.0
      %3927 = vmatprep.subr.mxu0 0.0
      %3928 = vmatpush1.msra.mxu0 0.0
      %3929 = vmatprep.subr.mxu0 0.0
      %3930 = vmatpush1.msra.mxu0 0.0
      %3931 = vmatprep.subr.mxu0 0.0
      %3932 = vmatpush1.msra.mxu0 0.0
      %3933 = vmatprep.subr.mxu0 0.0
      %3934 = vmatpush1.msra.mxu0 0.0
      %3935 = vmatprep.subr.mxu0 0.0
      %3936 = vmatpush1.msra.mxu0 0.0
      %3937 = vmatprep.subr.mxu0 0.0
      %3938 = vmatpush1.msra.mxu0 0.0
      %3939 = vmatprep.subr.mxu0 0.0
      %3940 = vmatpush1.msra.mxu0 0.0
      %3941 = vmatprep.subr.mxu0 0.0
      %3942 = vmatpush1.msra.mxu0 0.0
      %3943 = vmatprep.subr.mxu0 0.0
      %3944 = vmatpush1.msra.mxu0 0.0
      %3945 = vmatprep.subr.mxu0 0.0
      %3946 = vmatpush1.msra.mxu0 0.0
      %3947 = vmatprep.subr.mxu0 0.0
      %3948 = vmatpush1.msra.mxu0 0.0
      %3949 = vmatprep.subr.mxu0 0.0
      %3950 = vmatpush1.msra.mxu0 0.0
      %3951 = vmatprep.subr.mxu0 0.0
      %3952 = vmatpush1.msra.mxu0 0.0
      %3953 = vmatprep.subr.mxu0 0.0
      %3954 = vmatpush1.msra.mxu0 0.0
      %3955 = vmatprep.subr.mxu0 0.0
      %3956 = vmatpush1.msra.mxu0 0.0
      %3957 = vmatprep.subr.mxu0 0.0
      %3958 = vmatpush1.msra.mxu0 0.0
      %3959 = vmatprep.subr.mxu0 0.0
      %3960 = vmatpush1.msra.mxu0 0.0
      %3961 = vmatprep.subr.mxu0 0.0
      %3962 = vmatpush1.msra.mxu0 0.0
      %3963 = vmatprep.subr.mxu0 0.0
      %3964 = vmatpush1.msra.mxu0 0.0
      %3965 = vmatprep.subr.mxu0 0.0
      %3966 = vmatpush1.msra.mxu0 0.0
      %3967 = vmatprep.subr.mxu0 0.0
      %3968 = vmatpush1.msra.mxu0 0.0
      %3969 = vmatprep.subr.mxu0 0.0
      %3970 = vmatpush1.msra.mxu0 0.0
      %3971 = vmatprep.subr.mxu0 0.0
      %3972 = vmatpush1.msra.mxu0 0.0
      %3973 = vmatprep.subr.mxu0 0.0
      %3974 = vmatpush1.msra.mxu0 0.0
      %3975 = vmatprep.subr.mxu0 0.0
      %3976 = vmatpush1.msra.mxu0 0.0
      %3977 = vmatprep.mubr.f32.mxu0 0.0
      %v3978 = vand.u32 %v195, 4294901760
      %3979 = vmatmul.mubr.f32.gmra.mrb[0].mxu0 %v3978
      %v3980 = vpop.f32.mrb[0].mxu0
      %v3981 = vadd.f32 %v3720, %v3980
      %v3982 = vpop.f32.mrb[0].mxu0
      %3983 = vmatprep.mubr.f32.mxu0 0.0
      %v3984 = vand.u32 %v198, 4294901760
      %3985 = vmatmul.mubr.f32.gmra.mrb[0].mxu0 %v3984
      %v3986 = vpop.f32.mrb[0].mxu0
      %v3987 = vadd.f32 %v3726, %v3986
      %v3988 = vpop.f32.mrb[0].mxu0
      %3989 = vmatprep.mubr.f32.mxu0 0.0
      %v3990 = vand.u32 %v201, 4294901760
      %3991 = vmatmul.mubr.f32.gmra.mrb[0].mxu0 %v3990
      %v3992 = vpop.f32.mrb[0].mxu0
      %v3993 = vadd.f32 %v3732, %v3992
      %v3994 = vpop.f32.mrb[0].mxu0
      %3995 = vmatprep.mubr.f32.mxu0 0.0
      %v3996 = vand.u32 %v204, 4294901760
      %3997 = vmatmul.mubr.f32.gmra.mrb[0].mxu0 %v3996
      %v3998 = vpop.f32.mrb[0].mxu0
      %v3999 = vadd.f32 %v3738, %v3998
      %v4000 = vpop.f32.mrb[0].mxu0
      %4001 = vmatprep.mubr.f32.mxu0 0.0
      %v4002 = vand.u32 %v207, 4294901760
      %4003 = vmatmul.mubr.f32.gmra.mrb[0].mxu0 %v4002
      %v4004 = vpop.f32.mrb[0].mxu0
      %v4005 = vadd.f32 %v3744, %v4004
      %v4006 = vpop.f32.mrb[0].mxu0
      %4007 = vmatprep.mubr.f32.mxu0 0.0
      %v4008 = vand.u32 %v210, 4294901760
      %4009 = vmatmul.mubr.f32.gmra.mrb[0].mxu0 %v4008
      %v4010 = vpop.f32.mrb[0].mxu0
      %v4011 = vadd.f32 %v3750, %v4010
      %v4012 = vpop.f32.mrb[0].mxu0
      %4013 = vmatprep.mubr.f32.mxu0 0.0
      %v4014 = vand.u32 %v213, 4294901760
      %4015 = vmatmul.mubr.f32.gmra.mrb[0].mxu0 %v4014
      %v4016 = vpop.f32.mrb[0].mxu0
      %v4017 = vadd.f32 %v3756, %v4016
      %v4018 = vpop.f32.mrb[0].mxu0
      %4019 = vmatprep.mubr.f32.mxu0 0.0
      %v4020 = vand.u32 %v216, 4294901760
      %4021 = vmatmul.mubr.f32.gmra.mrb[0].mxu0 %v4020
      %v4022 = vpop.f32.mrb[0].mxu0
      %v4023 = vadd.f32 %v3762, %v4022
      %v4024 = vpop.f32.mrb[0].mxu0
      %4025 = vmatprep.mubr.f32.mxu0 0.0
      %v4026 = vand.u32 %v219, 4294901760
      %4027 = vmatmul.mubr.f32.gmra.mrb[0].mxu0 %v4026
      %v4028 = vpop.f32.mrb[0].mxu0
      %v4029 = vadd.f32 %v3768, %v4028
      %v4030 = vpop.f32.mrb[0].mxu0
      %4031 = vmatprep.mubr.f32.mxu0 0.0
      %v4032 = vand.u32 %v222, 4294901760
      %4033 = vmatmul.mubr.f32.gmra.mrb[0].mxu0 %v4032
      %v4034 = vpop.f32.mrb[0].mxu0
      %v4035 = vadd.f32 %v3774, %v4034
      %v4036 = vpop.f32.mrb[0].mxu0
      %4037 = vmatprep.mubr.f32.mxu0 0.0
      %v4038 = vand.u32 %v225, 4294901760
      %4039 = vmatmul.mubr.f32.gmra.mrb[0].mxu0 %v4038
      %v4040 = vpop.f32.mrb[0].mxu0
      %v4041 = vadd.f32 %v3780, %v4040
      %v4042 = vpop.f32.mrb[0].mxu0
      %4043 = vmatprep.mubr.f32.mxu0 0.0
      %v4044 = vand.u32 %v228, 4294901760
      %4045 = vmatmul.mubr.f32.gmra.mrb[0].mxu0 %v4044
      %v4046 = vpop.f32.mrb[0].mxu0
      %v4047 = vadd.f32 %v3786, %v4046
      %v4048 = vpop.f32.mrb[0].mxu0
      %4049 = vmatprep.mubr.f32.mxu0 0.0
      %v4050 = vand.u32 %v231, 4294901760
      %4051 = vmatmul.mubr.f32.gmra.mrb[0].mxu0 %v4050
      %v4052 = vpop.f32.mrb[0].mxu0
      %v4053 = vadd.f32 %v3792, %v4052
      %v4054 = vpop.f32.mrb[0].mxu0
      %4055 = vmatprep.mubr.f32.mxu0 0.0
      %v4056 = vand.u32 %v234, 4294901760
      %4057 = vmatmul.mubr.f32.gmra.mrb[0].mxu0 %v4056
      %v4058 = vpop.f32.mrb[0].mxu0
      %v4059 = vadd.f32 %v3798, %v4058
      %v4060 = vpop.f32.mrb[0].mxu0
      %4061 = vmatprep.mubr.f32.mxu0 0.0
      %v4062 = vand.u32 %v237, 4294901760
      %4063 = vmatmul.mubr.f32.gmra.mrb[0].mxu0 %v4062
      %v4064 = vpop.f32.mrb[0].mxu0
      %v4065 = vadd.f32 %v3804, %v4064
      %v4066 = vpop.f32.mrb[0].mxu0
      %4067 = vmatprep.mubr.f32.mxu0 0.0
      %v4068 = vand.u32 %v240, 4294901760
      %4069 = vmatmul.mubr.f32.gmra.mrb[0].mxu0 %v4068
      %v4070 = vpop.f32.mrb[0].mxu0
      %v4071 = vadd.f32 %v3810, %v4070
      %v4072 = vpop.f32.mrb[0].mxu0
      %4073 = vmatprep.mubr.f32.mxu0 0.0
      %v4074 = vand.u32 %v243, 4294901760
      %4075 = vmatmul.mubr.f32.gmra.mrb[0].mxu0 %v4074
      %v4076 = vpop.f32.mrb[0].mxu0
      %v4077 = vadd.f32 %v3816, %v4076
      %v4078 = vpop.f32.mrb[0].mxu0
      %4079 = vmatprep.mubr.f32.mxu0 0.0
      %v4080 = vand.u32 %v246, 4294901760
      %4081 = vmatmul.mubr.f32.gmra.mrb[0].mxu0 %v4080
      %v4082 = vpop.f32.mrb[0].mxu0
      %v4083 = vadd.f32 %v3822, %v4082
      %v4084 = vpop.f32.mrb[0].mxu0
      %4085 = vmatprep.mubr.f32.mxu0 0.0
      %v4086 = vand.u32 %v249, 4294901760
      %4087 = vmatmul.mubr.f32.gmra.mrb[0].mxu0 %v4086
      %v4088 = vpop.f32.mrb[0].mxu0
      %v4089 = vadd.f32 %v3828, %v4088
      %v4090 = vpop.f32.mrb[0].mxu0
      %4091 = vmatprep.mubr.f32.mxu0 0.0
      %v4092 = vand.u32 %v252, 4294901760
      %4093 = vmatmul.mubr.f32.gmra.mrb[0].mxu0 %v4092
      %v4094 = vpop.f32.mrb[0].mxu0
      %v4095 = vadd.f32 %v3834, %v4094
      %v4096 = vpop.f32.mrb[0].mxu0
      %4097 = vmatprep.mubr.f32.mxu0 0.0
      %v4098 = vand.u32 %v255, 4294901760
      %4099 = vmatmul.mubr.f32.gmra.mrb[0].mxu0 %v4098
      %v4100 = vpop.f32.mrb[0].mxu0
      %v4101 = vadd.f32 %v3840, %v4100
      %v4102 = vpop.f32.mrb[0].mxu0
      %4103 = vmatprep.mubr.f32.mxu0 0.0
      %v4104 = vand.u32 %v258, 4294901760
      %4105 = vmatmul.mubr.f32.gmra.mrb[0].mxu0 %v4104
      %v4106 = vpop.f32.mrb[0].mxu0
      %v4107 = vadd.f32 %v3846, %v4106
      %v4108 = vpop.f32.mrb[0].mxu0
      %4109 = vmatprep.mubr.f32.mxu0 0.0
      %v4110 = vand.u32 %v261, 4294901760
      %4111 = vmatmul.mubr.f32.gmra.mrb[0].mxu0 %v4110
      %v4112 = vpop.f32.mrb[0].mxu0
      %v4113 = vadd.f32 %v3852, %v4112
      %v4114 = vpop.f32.mrb[0].mxu0
      %4115 = vmatprep.mubr.f32.mxu0 0.0
      %v4116 = vand.u32 %v264, 4294901760
      %4117 = vmatmul.mubr.f32.gmra.mrb[0].mxu0 %v4116
      %v4118 = vpop.f32.mrb[0].mxu0
      %v4119 = vadd.f32 %v3858, %v4118
      %v4120 = vpop.f32.mrb[0].mxu0
      %4121 = vmatprep.mubr.f32.mxu0 0.0
      %v4122 = vand.u32 %v267, 4294901760
      %4123 = vmatmul.mubr.f32.gmra.mrb[0].mxu0 %v4122
      %v4124 = vpop.f32.mrb[0].mxu0
      %v4125 = vadd.f32 %v3864, %v4124
      %v4126 = vpop.f32.mrb[0].mxu0
      %4127 = vmatprep.mubr.f32.mxu0 0.0
      %v4128 = vand.u32 %v270, 4294901760
      %4129 = vmatmul.mubr.f32.gmra.mrb[0].mxu0 %v4128
      %v4130 = vpop.f32.mrb[0].mxu0
      %v4131 = vadd.f32 %v3870, %v4130
      %v4132 = vpop.f32.mrb[0].mxu0
      %4133 = vmatprep.mubr.f32.mxu0 0.0
      %v4134 = vand.u32 %v273, 4294901760
      %4135 = vmatmul.mubr.f32.gmra.mrb[0].mxu0 %v4134
      %v4136 = vpop.f32.mrb[0].mxu0
      %v4137 = vadd.f32 %v3876, %v4136
      %v4138 = vpop.f32.mrb[0].mxu0
      %4139 = vmatprep.mubr.f32.mxu0 0.0
      %v4140 = vand.u32 %v276, 4294901760
      %4141 = vmatmul.mubr.f32.gmra.mrb[0].mxu0 %v4140
      %v4142 = vpop.f32.mrb[0].mxu0
      %v4143 = vadd.f32 %v3882, %v4142
      %v4144 = vpop.f32.mrb[0].mxu0
      %4145 = vmatprep.mubr.f32.mxu0 0.0
      %v4146 = vand.u32 %v279, 4294901760
      %4147 = vmatmul.mubr.f32.gmra.mrb[0].mxu0 %v4146
      %v4148 = vpop.f32.mrb[0].mxu0
      %v4149 = vadd.f32 %v3888, %v4148
      %v4150 = vpop.f32.mrb[0].mxu0
      %4151 = vmatprep.mubr.f32.mxu0 0.0
      %v4152 = vand.u32 %v282, 4294901760
      %4153 = vmatmul.mubr.f32.gmra.mrb[0].mxu0 %v4152
      %v4154 = vpop.f32.mrb[0].mxu0
      %v4155 = vadd.f32 %v3894, %v4154
      %v4156 = vpop.f32.mrb[0].mxu0
      %4157 = vmatprep.mubr.f32.mxu0 0.0
      %v4158 = vand.u32 %v285, 4294901760
      %4159 = vmatmul.mubr.f32.gmra.mrb[0].mxu0 %v4158
      %v4160 = vpop.f32.mrb[0].mxu0
      %v4161 = vadd.f32 %v3900, %v4160
      %v4162 = vpop.f32.mrb[0].mxu0
      %4163 = vmatprep.mubr.f32.mxu0 0.0
      %v4164 = vand.u32 %v288, 4294901760
      %4165 = vmatmul.mubr.f32.gmra.mrb[0].mxu0 %v4164
      %v4166 = vpop.f32.mrb[0].mxu0
      %v4167 = vadd.f32 %v3906, %v4166
      %v4168 = vpop.f32.mrb[0].mxu0
      %4169 = vdwg.mxu0
      %4170 = vst [vmem:[%s147] sm:$0xff] %v2131
      %4171 = vst [vmem:[%s147 + $0x8] sm:$0xff] %v2133
      %4172 = vst.msk [vmem:[%s147 + $0x10] sm:$0xff] %vm193, %v3981
      %4173 = vst [vmem:[%s147 + $0x18] sm:$0xff] %v2138
      %4174 = vst [vmem:[%s147 + $0x20] sm:$0xff] %v2140
      %4175 = vst.msk [vmem:[%s147 + $0x28] sm:$0xff] %vm193, %v3987
      %4176 = vst [vmem:[%s147 + $0x30] sm:$0xff] %v2145
      %4177 = vst [vmem:[%s147 + $0x38] sm:$0xff] %v2147
      %4178 = vst.msk [vmem:[%s147 + $0x40] sm:$0xff] %vm193, %v3993
      %4179 = vst [vmem:[%s147 + $0x48] sm:$0xff] %v2152
      %4180 = vst [vmem:[%s147 + $0x50] sm:$0xff] %v2154
      %4181 = vst.msk [vmem:[%s147 + $0x58] sm:$0xff] %vm193, %v3999
      %4182 = vst [vmem:[%s147 + $0x60] sm:$0xff] %v2159
      %4183 = vst [vmem:[%s147 + $0x68] sm:$0xff] %v2161
      %4184 = vst.msk [vmem:[%s147 + $0x70] sm:$0xff] %vm193, %v4005
      %4185 = vst [vmem:[%s147 + $0x78] sm:$0xff] %v2166
      %4186 = vst [vmem:[%s147 + $0x80] sm:$0xff] %v2168
      %4187 = vst.msk [vmem:[%s147 + $0x88] sm:$0xff] %vm193, %v4011
      %4188 = vst [vmem:[%s147 + $0x90] sm:$0xff] %v2173
      %4189 = vst [vmem:[%s147 + $0x98] sm:$0xff] %v2175
      %4190 = vst.msk [vmem:[%s147 + $0xa0] sm:$0xff] %vm193, %v4017
      %4191 = vst [vmem:[%s147 + $0xa8] sm:$0xff] %v2180
      %4192 = vst [vmem:[%s147 + $0xb0] sm:$0xff] %v2182
      %4193 = vst.msk [vmem:[%s147 + $0xb8] sm:$0xff] %vm193, %v4023
      %4194 = vst [vmem:[%s147 + $0xc0] sm:$0xff] %v2187
      %4195 = vst [vmem:[%s147 + $0xc8] sm:$0xff] %v2189
      %4196 = vst.msk [vmem:[%s147 + $0xd0] sm:$0xff] %vm193, %v4029
      %4197 = vst [vmem:[%s147 + $0xd8] sm:$0xff] %v2194
      %4198 = vst [vmem:[%s147 + $0xe0] sm:$0xff] %v2196
      %4199 = vst.msk [vmem:[%s147 + $0xe8] sm:$0xff] %vm193, %v4035
      %4200 = vst [vmem:[%s147 + $0xf0] sm:$0xff] %v2201
      %4201 = vst [vmem:[%s147 + $0xf8] sm:$0xff] %v2203
      %4202 = vst.msk [vmem:[%s147 + $0x100] sm:$0xff] %vm193, %v4041
      %4203 = vst [vmem:[%s147 + $0x108] sm:$0xff] %v2208
      %4204 = vst [vmem:[%s147 + $0x110] sm:$0xff] %v2210
      %4205 = vst.msk [vmem:[%s147 + $0x118] sm:$0xff] %vm193, %v4047
      %4206 = vst [vmem:[%s147 + $0x120] sm:$0xff] %v2215
      %4207 = vst [vmem:[%s147 + $0x128] sm:$0xff] %v2217
      %4208 = vst.msk [vmem:[%s147 + $0x130] sm:$0xff] %vm193, %v4053
      %4209 = vst [vmem:[%s147 + $0x138] sm:$0xff] %v2222
      %4210 = vst [vmem:[%s147 + $0x140] sm:$0xff] %v2224
      %4211 = vst.msk [vmem:[%s147 + $0x148] sm:$0xff] %vm193, %v4059
      %4212 = vst [vmem:[%s147 + $0x150] sm:$0xff] %v2229
      %4213 = vst [vmem:[%s147 + $0x158] sm:$0xff] %v2231
      %4214 = vst.msk [vmem:[%s147 + $0x160] sm:$0xff] %vm193, %v4065
      %4215 = vst [vmem:[%s147 + $0x168] sm:$0xff] %v2236
      %4216 = vst [vmem:[%s147 + $0x170] sm:$0xff] %v2238
      %4217 = vst.msk [vmem:[%s147 + $0x178] sm:$0xff] %vm193, %v4071
      %4218 = vst [vmem:[%s147 + $0x180] sm:$0xff] %v2243
      %4219 = vst [vmem:[%s147 + $0x188] sm:$0xff] %v2245
      %4220 = vst.msk [vmem:[%s147 + $0x190] sm:$0xff] %vm193, %v4077
      %4221 = vst [vmem:[%s147 + $0x198] sm:$0xff] %v2250
      %4222 = vst [vmem:[%s147 + $0x1a0] sm:$0xff] %v2252
      %4223 = vst.msk [vmem:[%s147 + $0x1a8] sm:$0xff] %vm193, %v4083
      %4224 = vst [vmem:[%s147 + $0x1b0] sm:$0xff] %v2257
      %4225 = vst [vmem:[%s147 + $0x1b8] sm:$0xff] %v2259
      %4226 = vst.msk [vmem:[%s147 + $0x1c0] sm:$0xff] %vm193, %v4089
      %4227 = vst [vmem:[%s147 + $0x1c8] sm:$0xff] %v2264
      %4228 = vst [vmem:[%s147 + $0x1d0] sm:$0xff] %v2266
      %4229 = vst.msk [vmem:[%s147 + $0x1d8] sm:$0xff] %vm193, %v4095
      %4230 = vst [vmem:[%s147 + $0x1e0] sm:$0xff] %v2271
      %4231 = vst [vmem:[%s147 + $0x1e8] sm:$0xff] %v2273
      %4232 = vst.msk [vmem:[%s147 + $0x1f0] sm:$0xff] %vm193, %v4101
      %4233 = vst [vmem:[%s147 + $0x1f8] sm:$0xff] %v2278
      %4234 = vst [vmem:[%s147 + $0x200] sm:$0xff] %v2280
      %4235 = vst.msk [vmem:[%s147 + $0x208] sm:$0xff] %vm193, %v4107
      %4236 = vst [vmem:[%s147 + $0x210] sm:$0xff] %v2285
      %4237 = vst [vmem:[%s147 + $0x218] sm:$0xff] %v2287
      %4238 = vst.msk [vmem:[%s147 + $0x220] sm:$0xff] %vm193, %v4113
      %4239 = vst [vmem:[%s147 + $0x228] sm:$0xff] %v2292
      %4240 = vst [vmem:[%s147 + $0x230] sm:$0xff] %v2294
      %4241 = vst.msk [vmem:[%s147 + $0x238] sm:$0xff] %vm193, %v4119
      %4242 = vst [vmem:[%s147 + $0x240] sm:$0xff] %v2299
      %4243 = vst [vmem:[%s147 + $0x248] sm:$0xff] %v2301
      %4244 = vst.msk [vmem:[%s147 + $0x250] sm:$0xff] %vm193, %v4125
      %4245 = vst [vmem:[%s147 + $0x258] sm:$0xff] %v2306
      %4246 = vst [vmem:[%s147 + $0x260] sm:$0xff] %v2308
      %4247 = vst.msk [vmem:[%s147 + $0x268] sm:$0xff] %vm193, %v4131
      %4248 = vst [vmem:[%s147 + $0x270] sm:$0xff] %v2313
      %4249 = vst [vmem:[%s147 + $0x278] sm:$0xff] %v2315
      %4250 = vst.msk [vmem:[%s147 + $0x280] sm:$0xff] %vm193, %v4137
      %4251 = vst [vmem:[%s147 + $0x288] sm:$0xff] %v2320
      %4252 = vst [vmem:[%s147 + $0x290] sm:$0xff] %v2322
      %4253 = vst.msk [vmem:[%s147 + $0x298] sm:$0xff] %vm193, %v4143
      %4254 = vst [vmem:[%s147 + $0x2a0] sm:$0xff] %v2327
      %4255 = vst [vmem:[%s147 + $0x2a8] sm:$0xff] %v2329
      %4256 = vst.msk [vmem:[%s147 + $0x2b0] sm:$0xff] %vm193, %v4149
      %4257 = vst [vmem:[%s147 + $0x2b8] sm:$0xff] %v2334
      %4258 = vst [vmem:[%s147 + $0x2c0] sm:$0xff] %v2336
      %4259 = vst.msk [vmem:[%s147 + $0x2c8] sm:$0xff] %vm193, %v4155
      %4260 = vst [vmem:[%s147 + $0x2d0] sm:$0xff] %v2341
      %4261 = vst [vmem:[%s147 + $0x2d8] sm:$0xff] %v2343
      %4262 = vst.msk [vmem:[%s147 + $0x2e0] sm:$0xff] %vm193, %v4161
      %4263 = vst [vmem:[%s147 + $0x2e8] sm:$0xff] %v2348
      %4264 = vst [vmem:[%s147 + $0x2f0] sm:$0xff] %v2350
      %4265 = vst.msk [vmem:[%s147 + $0x2f8] sm:$0xff] %vm193, %v4167
      %s4266 = smul.u32 32, %s13
      %p4267 = scmp.lt.s32.totalorder %s4266, 63
      %s4268 = scalar_select %p4267, %s4266, 63
      %s4269 = smul.addr %s4268, 3
      %s4270 = smul.addr %s4269, 8
      %s4271 = scalar_lea.vmem %s2, %s4270
      // Predicated region
      $region29: #{tpu_custom_call.1} parent=27 // pred_check
        %p4272 = pneg %p78
      $region30: #{tpu_custom_call.1} parent=27 // pred_check_branch
        %4274 = sbr.rel (%p4272) target = $region32
      $region31: #{tpu_custom_call.1} parent=27 // pred_region
        %s4275 = smul.u32 32, %s13
      $region32: #{tpu_custom_call.1} parent=27 // pred_fallthru
        _
    $region28: #{tpu_custom_call.1} parent=5 // pred_fallthru
      _
    %p4276 = scmp.le.s32.totalorder 2, %s8
    // Predicated region
    $region33: #{tpu_custom_call.1} parent=5 // pred_check
      %p4277 = pneg %p4276
    $region34: #{tpu_custom_call.1} parent=5 // pred_check_branch
      %4279 = sbr.rel (%p4277) target = $region36
    $region35: #{tpu_custom_call.1} parent=5 // pred_region
      %s4280 = ssub.s32 %s8, 2
      // Predicated region
      $region37: #{tpu_custom_call.1} parent=35 // pred_check
        %p4281 = pneg %p84
      $region38: #{tpu_custom_call.1} parent=35 // pred_check_branch
        %4283 = sbr.rel (%p4281) target = $region40
      $region39: #{tpu_custom_call.1} parent=35 // pred_region
        %s4284 = smul.u32 32, %s14
        %p4285 = scmp.lt.s32.totalorder %s4284, 63
        %s4286 = scalar_select %p4285, %s4284, 63
        %s4287 = smul.addr %s4286, 3
        %s4288 = smul.addr %s4287, 8
        %s4289 = scalar_lea.vmem %s2, %s4288
      $region40: #{tpu_custom_call.1} parent=35 // pred_fallthru
        _
    $region36: #{tpu_custom_call.1} parent=5 // pred_fallthru
      _
  $region6: #{tpu_custom_call.1} parent=0 // loop_footer
    %s12 = sadd.s32 1, %s8
  $region7: #{tpu_custom_call.1} parent=0 // loop_footer_branch
    %7 = sbr.rel target = $region3
  $region8: #{tpu_custom_call.1} parent=0 // loop_exit
    _

</llo_original>
